<compile_context>
chip_gen: v5e
topology: v5e:2x2
jax: 0.10.0
libtpu: 0.0.40
codegen_flags: <defaults>
</compile_context>

<pallas_src>
import functools

import jax
import jax.numpy as jnp
import numpy as np
from jax import lax
from jax.experimental import pallas as pl
from jax.experimental.pallas import tpu as pltpu


def _round_up(x, m):
    return (x + m - 1) // m * m


def _hard_sigmoid(x):
    # hard_sigmoid(x) = clip(0.2*x + 0.5, 0, 1) — exactly the double
    # F.threshold trick in the reference.
    return jnp.clip(0.2 * x + 0.5, 0.0, 1.0)


def _recurrent_kernel(x_ref, wih_ref, whh_ref, b_ref, h0_ref, c0_ref,
                      out_ref, hn_ref, cn_ref,
                      h_scr, c_scr, pre_scr,
                      *, hp, bp, tc, t_real, mask_tail, unroll):
    """One grid step == `tc` timesteps of the hard-sigmoid LSTM recurrence.

    x_ref   : (tc*bp, Ip) bf16  input chunk, time-major rows (t, b) flattened.
    wih_ref : (Ip, 4Hp)  bf16   input weight^T, VMEM resident (gate order ifog).
    whh_ref : (Hp, 4Hp)  bf16   recurrent weight^T, VMEM resident.
    b_ref   : (1, 4Hp)   f32    b_ih + b_hh, VMEM resident.
    """
    s = pl.program_id(0)

    @pl.when(s == 0)
    def _():
        h_scr[...] = h0_ref[...]
        c_scr[...] = c0_ref[...]

    # Fused, time-parallel input projection for the whole chunk: one big
    # (tc*bp, Ip) @ (Ip, 4Hp) MXU GEMM + f32 bias add, entirely in VMEM.
    pre_scr[...] = (
        jnp.dot(x_ref[...], wih_ref[...], preferred_element_type=jnp.float32)
        + b_ref[...])

    whh = whh_ref[...]  # loaded once per grid step, reused across tc steps

    def body(t, carry):
        h, c = carry
        row = pl.multiple_of(t * bp, bp)
        # Only this small recurrent matmul sits on the serial critical path.
        gates = pre_scr[pl.ds(row, bp), :] + jnp.dot(
            h.astype(whh.dtype), whh, preferred_element_type=jnp.float32)
        # Gates laid out [i | f | o | g]: one wide hard-sigmoid clip over the
        # first 3*Hp lanes (lane-aligned), one tanh (EUP) over the rest.
        sig = _hard_sigmoid(gates[:, :3 * hp])
        ingate = sig[:, 0 * hp:1 * hp]
        forgetgate = sig[:, 1 * hp:2 * hp]
        outgate = sig[:, 2 * hp:3 * hp]
        cellgate = jnp.tanh(gates[:, 3 * hp:])

        c_new = forgetgate * c + ingate * cellgate
        h_new = outgate * jnp.tanh(c_new)

        if mask_tail:
            # T was padded up to a multiple of tc: freeze the carry on padded
            # timesteps so h_n / c_n reflect the true sequence end.
            valid = (s * tc + t) < t_real
            h_new = jnp.where(valid, h_new, h)
            c_new = jnp.where(valid, c_new, c)

        out_ref[pl.ds(row, bp), :] = h_new.astype(out_ref.dtype)
        return (h_new, c_new)

    h, c = lax.fori_loop(0, tc, body, (h_scr[...], c_scr[...]), unroll=unroll)
    h_scr[...] = h
    c_scr[...] = c

    @pl.when(s == pl.num_programs(0) - 1)
    def _():
        hn_ref[...] = h
        cn_ref[...] = c


def _vmem_block_bytes(tc, bp, ip, hp, out_itemsize):
    """Rough VMEM footprint of one grid step (used to cap Tc + set the limit)."""
    x_blk = 2 * tc * bp * ip * 2                                # bf16, 2 bufs
    out_blk = 2 * tc * bp * hp * out_itemsize                   # 2 bufs
    pre_scr = tc * bp * 4 * hp * 4                              # f32 scratch
    weights = ip * 4 * hp * 2 + hp * 4 * hp * 2 + 4 * hp * 4    # resident
    states = 8 * bp * hp * 4                                    # h0/c0/hn/cn/scratch
    return x_blk + out_blk + pre_scr + weights + states


def lstm_hard_sigmoid(x, w_ih, w_hh, b_ih, b_hh, h0=None, c0=None, *,
                      time_chunk=8, matmul_dtype=jnp.bfloat16,
                      out_dtype=jnp.float32,
                      vmem_budget_bytes=40 * 1024 * 1024):
    """Forward of LSTMHardSigmoid (1 layer, unidirectional, bias=True).

    x     : (T, B, I)  float32
    w_ih  : (4H, I), w_hh : (4H, H), b_ih/b_hh : (4H,)
    h0/c0 : (1, B, H)  (zeros if None, matching the PyTorch module)
    Returns (output (T,B,H), (h_n (1,B,H), c_n (1,B,H))).
    """
    T, B, I = x.shape
    gate_size, H = w_hh.shape
    assert gate_size == 4 * H and w_ih.shape == (4 * H, I)

    f32 = jnp.float32
    out_isz = jnp.dtype(out_dtype).itemsize

    Hp = _round_up(H, 128)          # hidden padded to lane multiple
    Bp = _round_up(B, 8)            # batch padded to sublane multiple
    Ip = _round_up(I, 128)          # input padded to lane multiple

    # ---- time chunking: shrink Tc until the VMEM estimate fits the budget --
    Tc = max(1, min(int(time_chunk), T))
    while Tc > 1 and _vmem_block_bytes(Tc, Bp, Ip, Hp, out_isz) > vmem_budget_bytes:
        Tc -= 1
    Tp = _round_up(T, Tc)
    mask_tail = (Tp != T)

    est = _vmem_block_bytes(Tc, Bp, Ip, Hp, out_isz)
    vmem_limit = int(min(max(2 * est + (2 << 20), 16 << 20), 56 << 20))

    # Full unroll only while the per-step gate block stays small; otherwise a
    # moderate unroll avoids a spill-bound regime.
    unroll = Tc if (Bp * 4 * Hp * 4) <= (64 * 1024) else min(4, Tc)

    # ---- reorder gate blocks [i, f, g, o] -> [i, f, o, g], pad each to Hp ---
    def reorder_pad_rows(w):  # (4H, ...) -> (4Hp, ...)
        chunks = [w[k * H:(k + 1) * H] for k in (0, 1, 3, 2)]  # i, f, o, g
        chunks = [jnp.pad(ch, ((0, Hp - H),) + ((0, 0),) * (w.ndim - 1))
                  for ch in chunks]
        return jnp.concatenate(chunks, axis=0)

    wih_r = reorder_pad_rows(jnp.asarray(w_ih, f32))                 # (4Hp, I)
    wih_r = jnp.pad(wih_r, ((0, 0), (0, Ip - I)))                    # (4Hp, Ip)
    whh_r = reorder_pad_rows(jnp.asarray(w_hh, f32))                 # (4Hp, H)
    whh_r = jnp.pad(whh_r, ((0, 0), (0, Hp - H)))                    # (4Hp, Hp)
    b_r = reorder_pad_rows(
        jnp.asarray(b_ih + b_hh, f32).reshape(4 * H, 1))[:, 0]       # (4Hp,)

    wih_t = wih_r.T.astype(matmul_dtype)                             # (Ip, 4Hp)
    whh_t = whh_r.T.astype(matmul_dtype)                             # (Hp, 4Hp)
    b2d = b_r.reshape(1, 4 * Hp)                                     # (1, 4Hp) f32

    # ---- pad + flatten x to (Tp*Bp, Ip) bf16 (only stream into the kernel) -
    x_p = jnp.pad(jnp.asarray(x, f32),
                  ((0, Tp - T), (0, Bp - B), (0, Ip - I)))
    x2d = x_p.reshape(Tp * Bp, Ip).astype(matmul_dtype)

    # ---- initial states (zero-padded lanes keep the recurrence clean) ------
    def pad_state(s):
        if s is None:
            return jnp.zeros((Bp, Hp), f32)
        s = jnp.asarray(s, f32).reshape(B, H)
        return jnp.pad(s, ((0, Bp - B), (0, Hp - H)))

    h0p = pad_state(h0)
    c0p = pad_state(c0)

    kernel = functools.partial(_recurrent_kernel, hp=Hp, bp=Bp, tc=Tc,
                               t_real=T, mask_tail=mask_tail, unroll=unroll)

    def run(single_buffer):
        def resident_spec(shape):
            if single_buffer:
                return pl.BlockSpec(shape, lambda s: tuple(0 for _ in shape),
                                    pipeline_mode=pl.Buffered(buffer_count=1))
            return pl.BlockSpec(shape, lambda s: tuple(0 for _ in shape))

        return pl.pallas_call(
            kernel,
            out_shape=(
                jax.ShapeDtypeStruct((Tp * Bp, Hp), out_dtype),
                jax.ShapeDtypeStruct((Bp, Hp), f32),
                jax.ShapeDtypeStruct((Bp, Hp), f32),
            ),
            grid_spec=pltpu.PrefetchScalarGridSpec(
                num_scalar_prefetch=0,
                grid=(Tp // Tc,),
                in_specs=[
                    pl.BlockSpec((Tc * Bp, Ip), lambda s: (s, 0)),   # x chunk
                    resident_spec((Ip, 4 * Hp)),                     # W_ih^T
                    resident_spec((Hp, 4 * Hp)),                     # W_hh^T
                    resident_spec((1, 4 * Hp)),                      # bias
                    resident_spec((Bp, Hp)),                         # h0
                    resident_spec((Bp, Hp)),                         # c0
                ],
                out_specs=[
                    pl.BlockSpec((Tc * Bp, Hp), lambda s: (s, 0)),   # output chunk
                    pl.BlockSpec((Bp, Hp), lambda s: (0, 0)),        # h_n
                    pl.BlockSpec((Bp, Hp), lambda s: (0, 0)),        # c_n
                ],
                scratch_shapes=[
                    pltpu.VMEM((Bp, Hp), f32),                       # h carry
                    pltpu.VMEM((Bp, Hp), f32),                       # c carry
                    pltpu.VMEM((Tc * Bp, 4 * Hp), f32),              # pre-gates
                ],
            ),
            compiler_params=pltpu.CompilerParams(
                dimension_semantics=("arbitrary",),   # sequential state carry
                vmem_limit_bytes=vmem_limit,
            ),
        )(x2d, wih_t, whh_t, b2d, h0p, c0p)

    try:
        out, h_n, c_n = run(single_buffer=True)
    except Exception:
        # Fallback if single-buffering via pl.Buffered(1) is rejected by this
        # JAX version; identical semantics, just more VMEM.
        out, h_n, c_n = run(single_buffer=False)

    # Strip time/batch/hidden padding.
    out = out.astype(f32).reshape(Tp, Bp, Hp)[:T, :B, :H]
    h_n = h_n[None, :B, :H]
    c_n = c_n[None, :B, :H]
    return out, (h_n, c_n)


def _reference(x, w_ih, w_hh, b_ih, b_hh):
    """Pure-JAX reference of the PyTorch LSTMHardSigmoid forward (zero init)."""
    T, B, I = x.shape
    H = w_hh.shape[1]

    def step(carry, xt):
        h, c = carry
        gates = xt @ w_ih.T + b_ih + h @ w_hh.T + b_hh
        i, f, g, o = jnp.split(gates, 4, axis=1)
        i = _hard_sigmoid(i)
        f = _hard_sigmoid(f)
        g = jnp.tanh(g)
        o = _hard_sigmoid(o)
        c = f * c + i * g
        h = o * jnp.tanh(c)
        return (h, c), h

    init = (jnp.zeros((B, H), x.dtype), jnp.zeros((B, H), x.dtype))
    (h_n, c_n), out = jax.lax.scan(step, init, x)
    return out, (h_n[None], c_n[None])


def _make_params(key, I, H):
    # reset_parameters(): uniform(-stdv, stdv), stdv = 1/sqrt(hidden_size)
    stdv = 1.0 / np.sqrt(H)
    k_wih, k_whh, k_bih, k_bhh = jax.random.split(key, 4)
    w_ih = jax.random.uniform(k_wih, (4 * H, I), jnp.float32, -stdv, stdv)
    w_hh = jax.random.uniform(k_whh, (4 * H, H), jnp.float32, -stdv, stdv)
    b_ih = jax.random.uniform(k_bih, (4 * H,), jnp.float32, -stdv, stdv)
    b_hh = jax.random.uniform(k_bhh, (4 * H,), jnp.float32, -stdv, stdv)
    return w_ih, w_hh, b_ih, b_hh


if __name__ == "__main__":
    key = jax.random.PRNGKey(0)
    k1, k2, k3, k4 = jax.random.split(key, 4)

    # ---- Test 1: shapes consistent with the module (T=8, B=2, I=16, H=32) --
    T, B, I, H = 8, 2, 16, 32
    w_ih, w_hh, b_ih, b_hh = _make_params(k1, I, H)
    x = jax.random.normal(k2, (T, B, I), jnp.float32)

    out, (h_n, c_n) = lstm_hard_sigmoid(x, w_ih, w_hh, b_ih, b_hh)
    jax.block_until_ready((out, h_n, c_n))

    ref_out, (ref_h, ref_c) = _reference(x, w_ih, w_hh, b_ih, b_hh)
    np.testing.assert_allclose(np.asarray(out), np.asarray(ref_out), rtol=2e-2, atol=2e-2)
    np.testing.assert_allclose(np.asarray(h_n), np.asarray(ref_h), rtol=2e-2, atol=2e-2)
    np.testing.assert_allclose(np.asarray(c_n), np.asarray(ref_c), rtol=2e-2, atol=2e-2)

    # ---- Test 2: awkward (prime) T exercises the padded-tail masking path --
    T2, B2 = 37, 3
    w_ih2, w_hh2, b_ih2, b_hh2 = _make_params(k3, I, H)
    x2 = jax.random.normal(k4, (T2, B2, I), jnp.float32)

    out2, (h_n2, c_n2) = lstm_hard_sigmoid(x2, w_ih2, w_hh2, b_ih2, b_hh2)
    jax.block_until_ready((out2, h_n2, c_n2))

    ref_out2, (ref_h2, ref_c2) = _reference(x2, w_ih2, w_hh2, b_ih2, b_hh2)
    np.testing.assert_allclose(np.asarray(out2), np.asarray(ref_out2), rtol=3e-2, atol=3e-2)
    np.testing.assert_allclose(np.asarray(h_n2), np.asarray(ref_h2), rtol=3e-2, atol=3e-2)
    np.testing.assert_allclose(np.asarray(c_n2), np.asarray(ref_c2), rtol=3e-2, atol=3e-2)

    print("KERNEL_OK")
</pallas_src>

<mosaic_0001>
module attributes {stable_mosaic.version = 11 : i64} {
  func.func @_recurrent_kernel(%arg0: i32, %arg1: memref<64x128xbf16, #tpu.memory_space<vmem>>, %arg2: memref<128x512xbf16, #tpu.memory_space<vmem>>, %arg3: memref<128x512xbf16, #tpu.memory_space<vmem>>, %arg4: memref<1x512xf32, #tpu.memory_space<vmem>>, %arg5: memref<8x128xf32, #tpu.memory_space<vmem>>, %arg6: memref<8x128xf32, #tpu.memory_space<vmem>>, %arg7: memref<64x128xf32, #tpu.memory_space<vmem>>, %arg8: memref<8x128xf32, #tpu.memory_space<vmem>>, %arg9: memref<8x128xf32, #tpu.memory_space<vmem>>, %arg10: memref<8x128xf32, #tpu.memory_space<vmem>>, %arg11: memref<8x128xf32, #tpu.memory_space<vmem>>, %arg12: memref<64x512xf32, #tpu.memory_space<vmem>>) attributes {dimension_semantics = [#tpu.dimension_semantics<arbitrary>], iteration_bounds = array<i64: 1>, scalar_prefetch = 0 : i64, scratch_operands = 3 : i64, tpu.core_type = #tpu.core_type<tc>, window_params = [{transform_indices = @transform_0, window_bounds = array<i64: 64, 128>}, {pipeline_mode = #tpu.pipeline_mode<synchronous>, transform_indices = @transform_1, window_bounds = array<i64: 128, 512>}, {pipeline_mode = #tpu.pipeline_mode<synchronous>, transform_indices = @transform_2, window_bounds = array<i64: 128, 512>}, {pipeline_mode = #tpu.pipeline_mode<synchronous>, transform_indices = @transform_3, window_bounds = array<i64: 1, 512>}, {pipeline_mode = #tpu.pipeline_mode<synchronous>, transform_indices = @transform_4, window_bounds = array<i64: 8, 128>}, {pipeline_mode = #tpu.pipeline_mode<synchronous>, transform_indices = @transform_5, window_bounds = array<i64: 8, 128>}, {transform_indices = @transform_6, window_bounds = array<i64: 64, 128>}, {pipeline_mode = #tpu.pipeline_mode<synchronous>, transform_indices = @transform_7, window_bounds = array<i64: 8, 128>}, {pipeline_mode = #tpu.pipeline_mode<synchronous>, transform_indices = @transform_8, window_bounds = array<i64: 8, 128>}]} {
    %c0_i32 = arith.constant 0 : i32
    %0 = arith.cmpi eq, %arg0, %c0_i32 : i32
    %1 = arith.extui %0 : i1 to i32
    %c0_i32_0 = arith.constant 0 : i32
    %2 = arith.cmpi ne, %1, %c0_i32_0 : i32
    scf.if %2 {
      %c0_85 = arith.constant 0 : index
      %c0_86 = arith.constant 0 : index
      %242 = vector.load %arg5[%c0_85, %c0_86] : memref<8x128xf32, #tpu.memory_space<vmem>>, vector<8x128xf32>
      %c0_87 = arith.constant 0 : index
      %c0_88 = arith.constant 0 : index
      %243 = vector.load %arg10[%c0_87, %c0_88] : memref<8x128xf32, #tpu.memory_space<vmem>>, vector<8x128xf32>
      tpu.vector_store %arg10[%c0_87, %c0_88], %242 {strides = array<i32>} : memref<8x128xf32, #tpu.memory_space<vmem>>, vector<8x128xf32>,
      %c0_89 = arith.constant 0 : index
      %c0_90 = arith.constant 0 : index
      %244 = vector.load %arg6[%c0_89, %c0_90] : memref<8x128xf32, #tpu.memory_space<vmem>>, vector<8x128xf32>
      %c0_91 = arith.constant 0 : index
      %c0_92 = arith.constant 0 : index
      %245 = vector.load %arg11[%c0_91, %c0_92] : memref<8x128xf32, #tpu.memory_space<vmem>>, vector<8x128xf32>
      tpu.vector_store %arg11[%c0_91, %c0_92], %244 {strides = array<i32>} : memref<8x128xf32, #tpu.memory_space<vmem>>, vector<8x128xf32>,
    } else {
    }
    %c0 = arith.constant 0 : index
    %c0_1 = arith.constant 0 : index
    %3 = vector.load %arg1[%c0, %c0_1] : memref<64x128xbf16, #tpu.memory_space<vmem>>, vector<64x128xbf16>
    %c0_2 = arith.constant 0 : index
    %c0_3 = arith.constant 0 : index
    %4 = vector.load %arg2[%c0_2, %c0_3] : memref<128x512xbf16, #tpu.memory_space<vmem>>, vector<128x512xbf16>
    %cst = arith.constant dense<0.000000e+00> : vector<64x512xf32>
    %5 = tpu.matmul %3, %4, %cst {dimension_numbers = #tpu.dot_dimension_numbers<[1], [0], [0], [1], [0, 0, 1, 1], [], []>} : vector<64x128xbf16>, vector<128x512xbf16>, vector<64x512xf32> -> vector<64x512xf32>
    %c0_4 = arith.constant 0 : index
    %c0_5 = arith.constant 0 : index
    %6 = vector.load %arg4[%c0_4, %c0_5] : memref<1x512xf32, #tpu.memory_space<vmem>>, vector<1x512xf32>
    %7 = vector.broadcast %6 : vector<1x512xf32> to vector<64x512xf32>
    %8 = arith.addf %5, %7 : vector<64x512xf32>
    %c0_6 = arith.constant 0 : index
    %c0_7 = arith.constant 0 : index
    %9 = vector.load %arg12[%c0_6, %c0_7] : memref<64x512xf32, #tpu.memory_space<vmem>>, vector<64x512xf32>
    tpu.vector_store %arg12[%c0_6, %c0_7], %8 {strides = array<i32>} : memref<64x512xf32, #tpu.memory_space<vmem>>, vector<64x512xf32>,
    %c0_8 = arith.constant 0 : index
    %c0_9 = arith.constant 0 : index
    %10 = vector.load %arg3[%c0_8, %c0_9] : memref<128x512xbf16, #tpu.memory_space<vmem>>, vector<128x512xbf16>
    %c0_10 = arith.constant 0 : index
    %c0_11 = arith.constant 0 : index
    %11 = vector.load %arg10[%c0_10, %c0_11] : memref<8x128xf32, #tpu.memory_space<vmem>>, vector<8x128xf32>
    %c0_12 = arith.constant 0 : index
    %c0_13 = arith.constant 0 : index
    %12 = vector.load %arg11[%c0_12, %c0_13] : memref<8x128xf32, #tpu.memory_space<vmem>>, vector<8x128xf32>
    %c0_i32_14 = arith.constant 0 : i32
    %c8_i32 = arith.constant 8 : i32
    %13 = arith.muli %c0_i32_14, %c8_i32 : i32
    %14 = tpu.assume_multiple %13, 8 : i32
    %15 = arith.index_cast %14 : i32 to index
    %c0_15 = arith.constant 0 : index
    %16 = vector.load %arg12[%15, %c0_15] : memref<64x512xf32, #tpu.memory_space<vmem>>, vector<8x512xf32>
    %17 = arith.truncf %11 : vector<8x128xf32> to vector<8x128xbf16>
    %cst_16 = arith.constant dense<0.000000e+00> : vector<8x512xf32>
    %18 = tpu.matmul %17, %10, %cst_16 {dimension_numbers = #tpu.dot_dimension_numbers<[1], [0], [0], [1], [0, 0, 1, 1], [], []>} : vector<8x128xbf16>, vector<128x512xbf16>, vector<8x512xf32> -> vector<8x512xf32>
    %19 = arith.addf %16, %18 : vector<8x512xf32>
    %20 = vector.extract_strided_slice %19 {offsets = [0, 0], sizes = [8, 384], strides = [1, 1]} : vector<8x512xf32> to vector<8x384xf32>
    %cst_17 = arith.constant 2.000000e-01 : f32
    %21 = vector.broadcast %cst_17 : f32 to vector<8x384xf32>
    %22 = arith.mulf %21, %20 : vector<8x384xf32>
    %cst_18 = arith.constant 5.000000e-01 : f32
    %23 = vector.broadcast %cst_18 : f32 to vector<8x384xf32>
    %24 = arith.addf %22, %23 : vector<8x384xf32>
    %cst_19 = arith.constant 0.000000e+00 : f32
    %cst_20 = arith.constant 1.000000e+00 : f32
    %25 = vector.broadcast %cst_19 : f32 to vector<8x384xf32>
    %26 = arith.maximumf %25, %24 : vector<8x384xf32>
    %27 = vector.broadcast %cst_20 : f32 to vector<8x384xf32>
    %28 = arith.minimumf %27, %26 : vector<8x384xf32>
    %29 = vector.extract_strided_slice %28 {offsets = [0, 0], sizes = [8, 128], strides = [1, 1]} : vector<8x384xf32> to vector<8x128xf32>
    %30 = vector.extract_strided_slice %28 {offsets = [0, 128], sizes = [8, 128], strides = [1, 1]} : vector<8x384xf32> to vector<8x128xf32>
    %31 = vector.extract_strided_slice %28 {offsets = [0, 256], sizes = [8, 128], strides = [1, 1]} : vector<8x384xf32> to vector<8x128xf32>
    %32 = vector.extract_strided_slice %19 {offsets = [0, 384], sizes = [8, 128], strides = [1, 1]} : vector<8x512xf32> to vector<8x128xf32>
    %33 = math.tanh %32 : vector<8x128xf32>
    %34 = arith.mulf %30, %12 : vector<8x128xf32>
    %35 = arith.mulf %29, %33 : vector<8x128xf32>
    %36 = arith.addf %34, %35 : vector<8x128xf32>
    %37 = math.tanh %36 : vector<8x128xf32>
    %38 = arith.mulf %31, %37 : vector<8x128xf32>
    %39 = arith.index_cast %14 : i32 to index
    %c0_21 = arith.constant 0 : index
    %40 = vector.load %arg7[%39, %c0_21] : memref<64x128xf32, #tpu.memory_space<vmem>>, vector<8x128xf32>
    tpu.vector_store %arg7[%39, %c0_21], %38 {strides = array<i32>} : memref<64x128xf32, #tpu.memory_space<vmem>>, vector<8x128xf32>,
    %c1_i32 = arith.constant 1 : i32
    %c8_i32_22 = arith.constant 8 : i32
    %41 = arith.muli %c1_i32, %c8_i32_22 : i32
    %42 = tpu.assume_multiple %41, 8 : i32
    %43 = arith.index_cast %42 : i32 to index
    %c0_23 = arith.constant 0 : index
    %44 = vector.load %arg12[%43, %c0_23] : memref<64x512xf32, #tpu.memory_space<vmem>>, vector<8x512xf32>
    %45 = arith.truncf %38 : vector<8x128xf32> to vector<8x128xbf16>
    %cst_24 = arith.constant dense<0.000000e+00> : vector<8x512xf32>
    %46 = tpu.matmul %45, %10, %cst_24 {dimension_numbers = #tpu.dot_dimension_numbers<[1], [0], [0], [1], [0, 0, 1, 1], [], []>} : vector<8x128xbf16>, vector<128x512xbf16>, vector<8x512xf32> -> vector<8x512xf32>
    %47 = arith.addf %44, %46 : vector<8x512xf32>
    %48 = vector.extract_strided_slice %47 {offsets = [0, 0], sizes = [8, 384], strides = [1, 1]} : vector<8x512xf32> to vector<8x384xf32>
    %cst_25 = arith.constant 2.000000e-01 : f32
    %49 = vector.broadcast %cst_25 : f32 to vector<8x384xf32>
    %50 = arith.mulf %49, %48 : vector<8x384xf32>
    %cst_26 = arith.constant 5.000000e-01 : f32
    %51 = vector.broadcast %cst_26 : f32 to vector<8x384xf32>
    %52 = arith.addf %50, %51 : vector<8x384xf32>
    %cst_27 = arith.constant 0.000000e+00 : f32
    %cst_28 = arith.constant 1.000000e+00 : f32
    %53 = vector.broadcast %cst_27 : f32 to vector<8x384xf32>
    %54 = arith.maximumf %53, %52 : vector<8x384xf32>
    %55 = vector.broadcast %cst_28 : f32 to vector<8x384xf32>
    %56 = arith.minimumf %55, %54 : vector<8x384xf32>
    %57 = vector.extract_strided_slice %56 {offsets = [0, 0], sizes = [8, 128], strides = [1, 1]} : vector<8x384xf32> to vector<8x128xf32>
    %58 = vector.extract_strided_slice %56 {offsets = [0, 128], sizes = [8, 128], strides = [1, 1]} : vector<8x384xf32> to vector<8x128xf32>
    %59 = vector.extract_strided_slice %56 {offsets = [0, 256], sizes = [8, 128], strides = [1, 1]} : vector<8x384xf32> to vector<8x128xf32>
    %60 = vector.extract_strided_slice %47 {offsets = [0, 384], sizes = [8, 128], strides = [1, 1]} : vector<8x512xf32> to vector<8x128xf32>
    %61 = math.tanh %60 : vector<8x128xf32>
    %62 = arith.mulf %58, %36 : vector<8x128xf32>
    %63 = arith.mulf %57, %61 : vector<8x128xf32>
    %64 = arith.addf %62, %63 : vector<8x128xf32>
    %65 = math.tanh %64 : vector<8x128xf32>
    %66 = arith.mulf %59, %65 : vector<8x128xf32>
    %67 = arith.index_cast %42 : i32 to index
    %c0_29 = arith.constant 0 : index
    %68 = vector.load %arg7[%67, %c0_29] : memref<64x128xf32, #tpu.memory_space<vmem>>, vector<8x128xf32>
    tpu.vector_store %arg7[%67, %c0_29], %66 {strides = array<i32>} : memref<64x128xf32, #tpu.memory_space<vmem>>, vector<8x128xf32>,
    %c2_i32 = arith.constant 2 : i32
    %c8_i32_30 = arith.constant 8 : i32
    %69 = arith.muli %c2_i32, %c8_i32_30 : i32
    %70 = tpu.assume_multiple %69, 8 : i32
    %71 = arith.index_cast %70 : i32 to index
    %c0_31 = arith.constant 0 : index
    %72 = vector.load %arg12[%71, %c0_31] : memref<64x512xf32, #tpu.memory_space<vmem>>, vector<8x512xf32>
    %73 = arith.truncf %66 : vector<8x128xf32> to vector<8x128xbf16>
    %cst_32 = arith.constant dense<0.000000e+00> : vector<8x512xf32>
    %74 = tpu.matmul %73, %10, %cst_32 {dimension_numbers = #tpu.dot_dimension_numbers<[1], [0], [0], [1], [0, 0, 1, 1], [], []>} : vector<8x128xbf16>, vector<128x512xbf16>, vector<8x512xf32> -> vector<8x512xf32>
    %75 = arith.addf %72, %74 : vector<8x512xf32>
    %76 = vector.extract_strided_slice %75 {offsets = [0, 0], sizes = [8, 384], strides = [1, 1]} : vector<8x512xf32> to vector<8x384xf32>
    %cst_33 = arith.constant 2.000000e-01 : f32
    %77 = vector.broadcast %cst_33 : f32 to vector<8x384xf32>
    %78 = arith.mulf %77, %76 : vector<8x384xf32>
    %cst_34 = arith.constant 5.000000e-01 : f32
    %79 = vector.broadcast %cst_34 : f32 to vector<8x384xf32>
    %80 = arith.addf %78, %79 : vector<8x384xf32>
    %cst_35 = arith.constant 0.000000e+00 : f32
    %cst_36 = arith.constant 1.000000e+00 : f32
    %81 = vector.broadcast %cst_35 : f32 to vector<8x384xf32>
    %82 = arith.maximumf %81, %80 : vector<8x384xf32>
    %83 = vector.broadcast %cst_36 : f32 to vector<8x384xf32>
    %84 = arith.minimumf %83, %82 : vector<8x384xf32>
    %85 = vector.extract_strided_slice %84 {offsets = [0, 0], sizes = [8, 128], strides = [1, 1]} : vector<8x384xf32> to vector<8x128xf32>
    %86 = vector.extract_strided_slice %84 {offsets = [0, 128], sizes = [8, 128], strides = [1, 1]} : vector<8x384xf32> to vector<8x128xf32>
    %87 = vector.extract_strided_slice %84 {offsets = [0, 256], sizes = [8, 128], strides = [1, 1]} : vector<8x384xf32> to vector<8x128xf32>
    %88 = vector.extract_strided_slice %75 {offsets = [0, 384], sizes = [8, 128], strides = [1, 1]} : vector<8x512xf32> to vector<8x128xf32>
    %89 = math.tanh %88 : vector<8x128xf32>
    %90 = arith.mulf %86, %64 : vector<8x128xf32>
    %91 = arith.mulf %85, %89 : vector<8x128xf32>
    %92 = arith.addf %90, %91 : vector<8x128xf32>
    %93 = math.tanh %92 : vector<8x128xf32>
    %94 = arith.mulf %87, %93 : vector<8x128xf32>
    %95 = arith.index_cast %70 : i32 to index
    %c0_37 = arith.constant 0 : index
    %96 = vector.load %arg7[%95, %c0_37] : memref<64x128xf32, #tpu.memory_space<vmem>>, vector<8x128xf32>
    tpu.vector_store %arg7[%95, %c0_37], %94 {strides = array<i32>} : memref<64x128xf32, #tpu.memory_space<vmem>>, vector<8x128xf32>,
    %c3_i32 = arith.constant 3 : i32
    %c8_i32_38 = arith.constant 8 : i32
    %97 = arith.muli %c3_i32, %c8_i32_38 : i32
    %98 = tpu.assume_multiple %97, 8 : i32
    %99 = arith.index_cast %98 : i32 to index
    %c0_39 = arith.constant 0 : index
    %100 = vector.load %arg12[%99, %c0_39] : memref<64x512xf32, #tpu.memory_space<vmem>>, vector<8x512xf32>
    %101 = arith.truncf %94 : vector<8x128xf32> to vector<8x128xbf16>
    %cst_40 = arith.constant dense<0.000000e+00> : vector<8x512xf32>
    %102 = tpu.matmul %101, %10, %cst_40 {dimension_numbers = #tpu.dot_dimension_numbers<[1], [0], [0], [1], [0, 0, 1, 1], [], []>} : vector<8x128xbf16>, vector<128x512xbf16>, vector<8x512xf32> -> vector<8x512xf32>
    %103 = arith.addf %100, %102 : vector<8x512xf32>
    %104 = vector.extract_strided_slice %103 {offsets = [0, 0], sizes = [8, 384], strides = [1, 1]} : vector<8x512xf32> to vector<8x384xf32>
    %cst_41 = arith.constant 2.000000e-01 : f32
    %105 = vector.broadcast %cst_41 : f32 to vector<8x384xf32>
    %106 = arith.mulf %105, %104 : vector<8x384xf32>
    %cst_42 = arith.constant 5.000000e-01 : f32
    %107 = vector.broadcast %cst_42 : f32 to vector<8x384xf32>
    %108 = arith.addf %106, %107 : vector<8x384xf32>
    %cst_43 = arith.constant 0.000000e+00 : f32
    %cst_44 = arith.constant 1.000000e+00 : f32
    %109 = vector.broadcast %cst_43 : f32 to vector<8x384xf32>
    %110 = arith.maximumf %109, %108 : vector<8x384xf32>
    %111 = vector.broadcast %cst_44 : f32 to vector<8x384xf32>
    %112 = arith.minimumf %111, %110 : vector<8x384xf32>
    %113 = vector.extract_strided_slice %112 {offsets = [0, 0], sizes = [8, 128], strides = [1, 1]} : vector<8x384xf32> to vector<8x128xf32>
    %114 = vector.extract_strided_slice %112 {offsets = [0, 128], sizes = [8, 128], strides = [1, 1]} : vector<8x384xf32> to vector<8x128xf32>
    %115 = vector.extract_strided_slice %112 {offsets = [0, 256], sizes = [8, 128], strides = [1, 1]} : vector<8x384xf32> to vector<8x128xf32>
    %116 = vector.extract_strided_slice %103 {offsets = [0, 384], sizes = [8, 128], strides = [1, 1]} : vector<8x512xf32> to vector<8x128xf32>
    %117 = math.tanh %116 : vector<8x128xf32>
    %118 = arith.mulf %114, %92 : vector<8x128xf32>
    %119 = arith.mulf %113, %117 : vector<8x128xf32>
    %120 = arith.addf %118, %119 : vector<8x128xf32>
    %121 = math.tanh %120 : vector<8x128xf32>
    %122 = arith.mulf %115, %121 : vector<8x128xf32>
    %123 = arith.index_cast %98 : i32 to index
    %c0_45 = arith.constant 0 : index
    %124 = vector.load %arg7[%123, %c0_45] : memref<64x128xf32, #tpu.memory_space<vmem>>, vector<8x128xf32>
    tpu.vector_store %arg7[%123, %c0_45], %122 {strides = array<i32>} : memref<64x128xf32, #tpu.memory_space<vmem>>, vector<8x128xf32>,
    %c4_i32 = arith.constant 4 : i32
    %c8_i32_46 = arith.constant 8 : i32
    %125 = arith.muli %c4_i32, %c8_i32_46 : i32
    %126 = tpu.assume_multiple %125, 8 : i32
    %127 = arith.index_cast %126 : i32 to index
    %c0_47 = arith.constant 0 : index
    %128 = vector.load %arg12[%127, %c0_47] : memref<64x512xf32, #tpu.memory_space<vmem>>, vector<8x512xf32>
    %129 = arith.truncf %122 : vector<8x128xf32> to vector<8x128xbf16>
    %cst_48 = arith.constant dense<0.000000e+00> : vector<8x512xf32>
    %130 = tpu.matmul %129, %10, %cst_48 {dimension_numbers = #tpu.dot_dimension_numbers<[1], [0], [0], [1], [0, 0, 1, 1], [], []>} : vector<8x128xbf16>, vector<128x512xbf16>, vector<8x512xf32> -> vector<8x512xf32>
    %131 = arith.addf %128, %130 : vector<8x512xf32>
    %132 = vector.extract_strided_slice %131 {offsets = [0, 0], sizes = [8, 384], strides = [1, 1]} : vector<8x512xf32> to vector<8x384xf32>
    %cst_49 = arith.constant 2.000000e-01 : f32
    %133 = vector.broadcast %cst_49 : f32 to vector<8x384xf32>
    %134 = arith.mulf %133, %132 : vector<8x384xf32>
    %cst_50 = arith.constant 5.000000e-01 : f32
    %135 = vector.broadcast %cst_50 : f32 to vector<8x384xf32>
    %136 = arith.addf %134, %135 : vector<8x384xf32>
    %cst_51 = arith.constant 0.000000e+00 : f32
    %cst_52 = arith.constant 1.000000e+00 : f32
    %137 = vector.broadcast %cst_51 : f32 to vector<8x384xf32>
    %138 = arith.maximumf %137, %136 : vector<8x384xf32>
    %139 = vector.broadcast %cst_52 : f32 to vector<8x384xf32>
    %140 = arith.minimumf %139, %138 : vector<8x384xf32>
    %141 = vector.extract_strided_slice %140 {offsets = [0, 0], sizes = [8, 128], strides = [1, 1]} : vector<8x384xf32> to vector<8x128xf32>
    %142 = vector.extract_strided_slice %140 {offsets = [0, 128], sizes = [8, 128], strides = [1, 1]} : vector<8x384xf32> to vector<8x128xf32>
    %143 = vector.extract_strided_slice %140 {offsets = [0, 256], sizes = [8, 128], strides = [1, 1]} : vector<8x384xf32> to vector<8x128xf32>
    %144 = vector.extract_strided_slice %131 {offsets = [0, 384], sizes = [8, 128], strides = [1, 1]} : vector<8x512xf32> to vector<8x128xf32>
    %145 = math.tanh %144 : vector<8x128xf32>
    %146 = arith.mulf %142, %120 : vector<8x128xf32>
    %147 = arith.mulf %141, %145 : vector<8x128xf32>
    %148 = arith.addf %146, %147 : vector<8x128xf32>
    %149 = math.tanh %148 : vector<8x128xf32>
    %150 = arith.mulf %143, %149 : vector<8x128xf32>
    %151 = arith.index_cast %126 : i32 to index
    %c0_53 = arith.constant 0 : index
    %152 = vector.load %arg7[%151, %c0_53] : memref<64x128xf32, #tpu.memory_space<vmem>>, vector<8x128xf32>
    tpu.vector_store %arg7[%151, %c0_53], %150 {strides = array<i32>} : memref<64x128xf32, #tpu.memory_space<vmem>>, vector<8x128xf32>,
    %c5_i32 = arith.constant 5 : i32
    %c8_i32_54 = arith.constant 8 : i32
    %153 = arith.muli %c5_i32, %c8_i32_54 : i32
    %154 = tpu.assume_multiple %153, 8 : i32
    %155 = arith.index_cast %154 : i32 to index
    %c0_55 = arith.constant 0 : index
    %156 = vector.load %arg12[%155, %c0_55] : memref<64x512xf32, #tpu.memory_space<vmem>>, vector<8x512xf32>
    %157 = arith.truncf %150 : vector<8x128xf32> to vector<8x128xbf16>
    %cst_56 = arith.constant dense<0.000000e+00> : vector<8x512xf32>
    %158 = tpu.matmul %157, %10, %cst_56 {dimension_numbers = #tpu.dot_dimension_numbers<[1], [0], [0], [1], [0, 0, 1, 1], [], []>} : vector<8x128xbf16>, vector<128x512xbf16>, vector<8x512xf32> -> vector<8x512xf32>
    %159 = arith.addf %156, %158 : vector<8x512xf32>
    %160 = vector.extract_strided_slice %159 {offsets = [0, 0], sizes = [8, 384], strides = [1, 1]} : vector<8x512xf32> to vector<8x384xf32>
    %cst_57 = arith.constant 2.000000e-01 : f32
    %161 = vector.broadcast %cst_57 : f32 to vector<8x384xf32>
    %162 = arith.mulf %161, %160 : vector<8x384xf32>
    %cst_58 = arith.constant 5.000000e-01 : f32
    %163 = vector.broadcast %cst_58 : f32 to vector<8x384xf32>
    %164 = arith.addf %162, %163 : vector<8x384xf32>
    %cst_59 = arith.constant 0.000000e+00 : f32
    %cst_60 = arith.constant 1.000000e+00 : f32
    %165 = vector.broadcast %cst_59 : f32 to vector<8x384xf32>
    %166 = arith.maximumf %165, %164 : vector<8x384xf32>
    %167 = vector.broadcast %cst_60 : f32 to vector<8x384xf32>
    %168 = arith.minimumf %167, %166 : vector<8x384xf32>
    %169 = vector.extract_strided_slice %168 {offsets = [0, 0], sizes = [8, 128], strides = [1, 1]} : vector<8x384xf32> to vector<8x128xf32>
    %170 = vector.extract_strided_slice %168 {offsets = [0, 128], sizes = [8, 128], strides = [1, 1]} : vector<8x384xf32> to vector<8x128xf32>
    %171 = vector.extract_strided_slice %168 {offsets = [0, 256], sizes = [8, 128], strides = [1, 1]} : vector<8x384xf32> to vector<8x128xf32>
    %172 = vector.extract_strided_slice %159 {offsets = [0, 384], sizes = [8, 128], strides = [1, 1]} : vector<8x512xf32> to vector<8x128xf32>
    %173 = math.tanh %172 : vector<8x128xf32>
    %174 = arith.mulf %170, %148 : vector<8x128xf32>
    %175 = arith.mulf %169, %173 : vector<8x128xf32>
    %176 = arith.addf %174, %175 : vector<8x128xf32>
    %177 = math.tanh %176 : vector<8x128xf32>
    %178 = arith.mulf %171, %177 : vector<8x128xf32>
    %179 = arith.index_cast %154 : i32 to index
    %c0_61 = arith.constant 0 : index
    %180 = vector.load %arg7[%179, %c0_61] : memref<64x128xf32, #tpu.memory_space<vmem>>, vector<8x128xf32>
    tpu.vector_store %arg7[%179, %c0_61], %178 {strides = array<i32>} : memref<64x128xf32, #tpu.memory_space<vmem>>, vector<8x128xf32>,
    %c6_i32 = arith.constant 6 : i32
    %c8_i32_62 = arith.constant 8 : i32
    %181 = arith.muli %c6_i32, %c8_i32_62 : i32
    %182 = tpu.assume_multiple %181, 8 : i32
    %183 = arith.index_cast %182 : i32 to index
    %c0_63 = arith.constant 0 : index
    %184 = vector.load %arg12[%183, %c0_63] : memref<64x512xf32, #tpu.memory_space<vmem>>, vector<8x512xf32>
    %185 = arith.truncf %178 : vector<8x128xf32> to vector<8x128xbf16>
    %cst_64 = arith.constant dense<0.000000e+00> : vector<8x512xf32>
    %186 = tpu.matmul %185, %10, %cst_64 {dimension_numbers = #tpu.dot_dimension_numbers<[1], [0], [0], [1], [0, 0, 1, 1], [], []>} : vector<8x128xbf16>, vector<128x512xbf16>, vector<8x512xf32> -> vector<8x512xf32>
    %187 = arith.addf %184, %186 : vector<8x512xf32>
    %188 = vector.extract_strided_slice %187 {offsets = [0, 0], sizes = [8, 384], strides = [1, 1]} : vector<8x512xf32> to vector<8x384xf32>
    %cst_65 = arith.constant 2.000000e-01 : f32
    %189 = vector.broadcast %cst_65 : f32 to vector<8x384xf32>
    %190 = arith.mulf %189, %188 : vector<8x384xf32>
    %cst_66 = arith.constant 5.000000e-01 : f32
    %191 = vector.broadcast %cst_66 : f32 to vector<8x384xf32>
    %192 = arith.addf %190, %191 : vector<8x384xf32>
    %cst_67 = arith.constant 0.000000e+00 : f32
    %cst_68 = arith.constant 1.000000e+00 : f32
    %193 = vector.broadcast %cst_67 : f32 to vector<8x384xf32>
    %194 = arith.maximumf %193, %192 : vector<8x384xf32>
    %195 = vector.broadcast %cst_68 : f32 to vector<8x384xf32>
    %196 = arith.minimumf %195, %194 : vector<8x384xf32>
    %197 = vector.extract_strided_slice %196 {offsets = [0, 0], sizes = [8, 128], strides = [1, 1]} : vector<8x384xf32> to vector<8x128xf32>
    %198 = vector.extract_strided_slice %196 {offsets = [0, 128], sizes = [8, 128], strides = [1, 1]} : vector<8x384xf32> to vector<8x128xf32>
    %199 = vector.extract_strided_slice %196 {offsets = [0, 256], sizes = [8, 128], strides = [1, 1]} : vector<8x384xf32> to vector<8x128xf32>
    %200 = vector.extract_strided_slice %187 {offsets = [0, 384], sizes = [8, 128], strides = [1, 1]} : vector<8x512xf32> to vector<8x128xf32>
    %201 = math.tanh %200 : vector<8x128xf32>
    %202 = arith.mulf %198, %176 : vector<8x128xf32>
    %203 = arith.mulf %197, %201 : vector<8x128xf32>
    %204 = arith.addf %202, %203 : vector<8x128xf32>
    %205 = math.tanh %204 : vector<8x128xf32>
    %206 = arith.mulf %199, %205 : vector<8x128xf32>
    %207 = arith.index_cast %182 : i32 to index
    %c0_69 = arith.constant 0 : index
    %208 = vector.load %arg7[%207, %c0_69] : memref<64x128xf32, #tpu.memory_space<vmem>>, vector<8x128xf32>
    tpu.vector_store %arg7[%207, %c0_69], %206 {strides = array<i32>} : memref<64x128xf32, #tpu.memory_space<vmem>>, vector<8x128xf32>,
    %c7_i32 = arith.constant 7 : i32
    %c8_i32_70 = arith.constant 8 : i32
    %209 = arith.muli %c7_i32, %c8_i32_70 : i32
    %210 = tpu.assume_multiple %209, 8 : i32
    %211 = arith.index_cast %210 : i32 to index
    %c0_71 = arith.constant 0 : index
    %212 = vector.load %arg12[%211, %c0_71] : memref<64x512xf32, #tpu.memory_space<vmem>>, vector<8x512xf32>
    %213 = arith.truncf %206 : vector<8x128xf32> to vector<8x128xbf16>
    %cst_72 = arith.constant dense<0.000000e+00> : vector<8x512xf32>
    %214 = tpu.matmul %213, %10, %cst_72 {dimension_numbers = #tpu.dot_dimension_numbers<[1], [0], [0], [1], [0, 0, 1, 1], [], []>} : vector<8x128xbf16>, vector<128x512xbf16>, vector<8x512xf32> -> vector<8x512xf32>
    %215 = arith.addf %212, %214 : vector<8x512xf32>
    %216 = vector.extract_strided_slice %215 {offsets = [0, 0], sizes = [8, 384], strides = [1, 1]} : vector<8x512xf32> to vector<8x384xf32>
    %cst_73 = arith.constant 2.000000e-01 : f32
    %217 = vector.broadcast %cst_73 : f32 to vector<8x384xf32>
    %218 = arith.mulf %217, %216 : vector<8x384xf32>
    %cst_74 = arith.constant 5.000000e-01 : f32
    %219 = vector.broadcast %cst_74 : f32 to vector<8x384xf32>
    %220 = arith.addf %218, %219 : vector<8x384xf32>
    %cst_75 = arith.constant 0.000000e+00 : f32
    %cst_76 = arith.constant 1.000000e+00 : f32
    %221 = vector.broadcast %cst_75 : f32 to vector<8x384xf32>
    %222 = arith.maximumf %221, %220 : vector<8x384xf32>
    %223 = vector.broadcast %cst_76 : f32 to vector<8x384xf32>
    %224 = arith.minimumf %223, %222 : vector<8x384xf32>
    %225 = vector.extract_strided_slice %224 {offsets = [0, 0], sizes = [8, 128], strides = [1, 1]} : vector<8x384xf32> to vector<8x128xf32>
    %226 = vector.extract_strided_slice %224 {offsets = [0, 128], sizes = [8, 128], strides = [1, 1]} : vector<8x384xf32> to vector<8x128xf32>
    %227 = vector.extract_strided_slice %224 {offsets = [0, 256], sizes = [8, 128], strides = [1, 1]} : vector<8x384xf32> to vector<8x128xf32>
    %228 = vector.extract_strided_slice %215 {offsets = [0, 384], sizes = [8, 128], strides = [1, 1]} : vector<8x512xf32> to vector<8x128xf32>
    %229 = math.tanh %228 : vector<8x128xf32>
    %230 = arith.mulf %226, %204 : vector<8x128xf32>
    %231 = arith.mulf %225, %229 : vector<8x128xf32>
    %232 = arith.addf %230, %231 : vector<8x128xf32>
    %233 = math.tanh %232 : vector<8x128xf32>
    %234 = arith.mulf %227, %233 : vector<8x128xf32>
    %235 = arith.index_cast %210 : i32 to index
    %c0_77 = arith.constant 0 : index
    %236 = vector.load %arg7[%235, %c0_77] : memref<64x128xf32, #tpu.memory_space<vmem>>, vector<8x128xf32>
    tpu.vector_store %arg7[%235, %c0_77], %234 {strides = array<i32>} : memref<64x128xf32, #tpu.memory_space<vmem>>, vector<8x128xf32>,
    %c8_i32_78 = arith.constant 8 : i32
    %c0_79 = arith.constant 0 : index
    %c0_80 = arith.constant 0 : index
    %237 = vector.load %arg10[%c0_79, %c0_80] : memref<8x128xf32, #tpu.memory_space<vmem>>, vector<8x128xf32>
    tpu.vector_store %arg10[%c0_79, %c0_80], %234 {strides = array<i32>} : memref<8x128xf32, #tpu.memory_space<vmem>>, vector<8x128xf32>,
    %c0_81 = arith.constant 0 : index
    %c0_82 = arith.constant 0 : index
    %238 = vector.load %arg11[%c0_81, %c0_82] : memref<8x128xf32, #tpu.memory_space<vmem>>, vector<8x128xf32>
    tpu.vector_store %arg11[%c0_81, %c0_82], %232 {strides = array<i32>} : memref<8x128xf32, #tpu.memory_space<vmem>>, vector<8x128xf32>,
    %c0_i32_83 = arith.constant 0 : i32
    %239 = arith.cmpi eq, %arg0, %c0_i32_83 : i32
    %240 = arith.extui %239 : i1 to i32
    %c0_i32_84 = arith.constant 0 : i32
    %241 = arith.cmpi ne, %240, %c0_i32_84 : i32
    scf.if %241 {
      %c0_85 = arith.constant 0 : index
      %c0_86 = arith.constant 0 : index
      %242 = vector.load %arg8[%c0_85, %c0_86] : memref<8x128xf32, #tpu.memory_space<vmem>>, vector<8x128xf32>
      tpu.vector_store %arg8[%c0_85, %c0_86], %234 {strides = array<i32>} : memref<8x128xf32, #tpu.memory_space<vmem>>, vector<8x128xf32>,
      %c0_87 = arith.constant 0 : index
      %c0_88 = arith.constant 0 : index
      %243 = vector.load %arg9[%c0_87, %c0_88] : memref<8x128xf32, #tpu.memory_space<vmem>>, vector<8x128xf32>
      tpu.vector_store %arg9[%c0_87, %c0_88], %232 {strides = array<i32>} : memref<8x128xf32, #tpu.memory_space<vmem>>, vector<8x128xf32>,
    } else {
    }
    return
  }
  func.func @transform_0(%arg0: i32) -> (i32, i32) {
    %c0_i32 = arith.constant 0 : i32
    %c0_i32_0 = arith.constant 0 : i32
    return %arg0, %c0_i32 : i32, i32
  }
  func.func @transform_1(%arg0: i32) -> (i32, i32) {
    %c0_i32 = arith.constant 0 : i32
    %c0_i32_0 = arith.constant 0 : i32
    %c0_i32_1 = arith.constant 0 : i32
    return %c0_i32, %c0_i32_0 : i32, i32
  }
  func.func @transform_2(%arg0: i32) -> (i32, i32) {
    %c0_i32 = arith.constant 0 : i32
    %c0_i32_0 = arith.constant 0 : i32
    %c0_i32_1 = arith.constant 0 : i32
    return %c0_i32, %c0_i32_0 : i32, i32
  }
  func.func @transform_3(%arg0: i32) -> (i32, i32) {
    %c0_i32 = arith.constant 0 : i32
    %c0_i32_0 = arith.constant 0 : i32
    %c0_i32_1 = arith.constant 0 : i32
    return %c0_i32, %c0_i32_0 : i32, i32
  }
  func.func @transform_4(%arg0: i32) -> (i32, i32) {
    %c0_i32 = arith.constant 0 : i32
    %c0_i32_0 = arith.constant 0 : i32
    %c0_i32_1 = arith.constant 0 : i32
    return %c0_i32, %c0_i32_0 : i32, i32
  }
  func.func @transform_5(%arg0: i32) -> (i32, i32) {
    %c0_i32 = arith.constant 0 : i32
    %c0_i32_0 = arith.constant 0 : i32
    %c0_i32_1 = arith.constant 0 : i32
    return %c0_i32, %c0_i32_0 : i32, i32
  }
  func.func @transform_6(%arg0: i32) -> (i32, i32) {
    %c0_i32 = arith.constant 0 : i32
    %c0_i32_0 = arith.constant 0 : i32
    return %arg0, %c0_i32 : i32, i32
  }
  func.func @transform_7(%arg0: i32) -> (i32, i32) {
    %c0_i32 = arith.constant 0 : i32
    %c0_i32_0 = arith.constant 0 : i32
    %c0_i32_1 = arith.constant 0 : i32
    return %c0_i32, %c0_i32_0 : i32, i32
  }
  func.func @transform_8(%arg0: i32) -> (i32, i32) {
    %c0_i32 = arith.constant 0 : i32
    %c0_i32_0 = arith.constant 0 : i32
    %c0_i32_1 = arith.constant 0 : i32
    return %c0_i32, %c0_i32_0 : i32, i32
  }
}

module attributes {stable_mosaic.version = 11 : i64} {
  func.func @_recurrent_kernel(%arg0: i32, %arg1: memref<64x128xbf16, #tpu.memory_space<vmem>>, %arg2: memref<128x512xbf16, #tpu.memory_space<vmem>>, %arg3: memref<128x512xbf16, #tpu.memory_space<vmem>>, %arg4: memref<1x512xf32, #tpu.memory_space<vmem>>, %arg5: memref<8x128xf32, #tpu.memory_space<vmem>>, %arg6: memref<8x128xf32, #tpu.memory_space<vmem>>, %arg7: memref<64x128xf32, #tpu.memory_space<vmem>>, %arg8: memref<8x128xf32, #tpu.memory_space<vmem>>, %arg9: memref<8x128xf32, #tpu.memory_space<vmem>>, %arg10: memref<8x128xf32, #tpu.memory_space<vmem>>, %arg11: memref<8x128xf32, #tpu.memory_space<vmem>>, %arg12: memref<64x512xf32, #tpu.memory_space<vmem>>) attributes {dimension_semantics = [#tpu.dimension_semantics<arbitrary>], iteration_bounds = array<i64: 1>, scalar_prefetch = 0 : i64, scratch_operands = 3 : i64, tpu.core_type = #tpu.core_type<tc>, window_params = [{transform_indices = @transform_0, window_bounds = array<i64: 64, 128>}, {pipeline_mode = #tpu.pipeline_mode<synchronous>, transform_indices = @transform_1, window_bounds = array<i64: 128, 512>}, {pipeline_mode = #tpu.pipeline_mode<synchronous>, transform_indices = @transform_2, window_bounds = array<i64: 128, 512>}, {pipeline_mode = #tpu.pipeline_mode<synchronous>, transform_indices = @transform_3, window_bounds = array<i64: 1, 512>}, {pipeline_mode = #tpu.pipeline_mode<synchronous>, transform_indices = @transform_4, window_bounds = array<i64: 8, 128>}, {pipeline_mode = #tpu.pipeline_mode<synchronous>, transform_indices = @transform_5, window_bounds = array<i64: 8, 128>}, {transform_indices = @transform_6, window_bounds = array<i64: 64, 128>}, {pipeline_mode = #tpu.pipeline_mode<synchronous>, transform_indices = @transform_7, window_bounds = array<i64: 8, 128>}, {pipeline_mode = #tpu.pipeline_mode<synchronous>, transform_indices = @transform_8, window_bounds = array<i64: 8, 128>}]} {
    %c0_i32 = arith.constant 0 : i32
    %0 = arith.cmpi eq, %arg0, %c0_i32 : i32
    %1 = arith.extui %0 : i1 to i32
    %c0_i32_0 = arith.constant 0 : i32
    %2 = arith.cmpi ne, %1, %c0_i32_0 : i32
    scf.if %2 {
      %c0_85 = arith.constant 0 : index
      %c0_86 = arith.constant 0 : index
      %242 = vector.load %arg5[%c0_85, %c0_86] : memref<8x128xf32, #tpu.memory_space<vmem>>, vector<8x128xf32>
      %c0_87 = arith.constant 0 : index
      %c0_88 = arith.constant 0 : index
      %243 = vector.load %arg10[%c0_87, %c0_88] : memref<8x128xf32, #tpu.memory_space<vmem>>, vector<8x128xf32>
      tpu.vector_store %arg10[%c0_87, %c0_88], %242 {strides = array<i32>} : memref<8x128xf32, #tpu.memory_space<vmem>>, vector<8x128xf32>,
      %c0_89 = arith.constant 0 : index
      %c0_90 = arith.constant 0 : index
      %244 = vector.load %arg6[%c0_89, %c0_90] : memref<8x128xf32, #tpu.memory_space<vmem>>, vector<8x128xf32>
      %c0_91 = arith.constant 0 : index
      %c0_92 = arith.constant 0 : index
      %245 = vector.load %arg11[%c0_91, %c0_92] : memref<8x128xf32, #tpu.memory_space<vmem>>, vector<8x128xf32>
      tpu.vector_store %arg11[%c0_91, %c0_92], %244 {strides = array<i32>} : memref<8x128xf32, #tpu.memory_space<vmem>>, vector<8x128xf32>,
    } else {
    }
    %c0 = arith.constant 0 : index
    %c0_1 = arith.constant 0 : index
    %3 = vector.load %arg1[%c0, %c0_1] : memref<64x128xbf16, #tpu.memory_space<vmem>>, vector<64x128xbf16>
    %c0_2 = arith.constant 0 : index
    %c0_3 = arith.constant 0 : index
    %4 = vector.load %arg2[%c0_2, %c0_3] : memref<128x512xbf16, #tpu.memory_space<vmem>>, vector<128x512xbf16>
    %cst = arith.constant dense<0.000000e+00> : vector<64x512xf32>
    %5 = tpu.matmul %3, %4, %cst {dimension_numbers = #tpu.dot_dimension_numbers<[1], [0], [0], [1], [0, 0, 1, 1], [], []>} : vector<64x128xbf16>, vector<128x512xbf16>, vector<64x512xf32> -> vector<64x512xf32>
    %c0_4 = arith.constant 0 : index
    %c0_5 = arith.constant 0 : index
    %6 = vector.load %arg4[%c0_4, %c0_5] : memref<1x512xf32, #tpu.memory_space<vmem>>, vector<1x512xf32>
    %7 = vector.broadcast %6 : vector<1x512xf32> to vector<64x512xf32>
    %8 = arith.addf %5, %7 : vector<64x512xf32>
    %c0_6 = arith.constant 0 : index
    %c0_7 = arith.constant 0 : index
    %9 = vector.load %arg12[%c0_6, %c0_7] : memref<64x512xf32, #tpu.memory_space<vmem>>, vector<64x512xf32>
    tpu.vector_store %arg12[%c0_6, %c0_7], %8 {strides = array<i32>} : memref<64x512xf32, #tpu.memory_space<vmem>>, vector<64x512xf32>,
    %c0_8 = arith.constant 0 : index
    %c0_9 = arith.constant 0 : index
    %10 = vector.load %arg3[%c0_8, %c0_9] : memref<128x512xbf16, #tpu.memory_space<vmem>>, vector<128x512xbf16>
    %c0_10 = arith.constant 0 : index
    %c0_11 = arith.constant 0 : index
    %11 = vector.load %arg10[%c0_10, %c0_11] : memref<8x128xf32, #tpu.memory_space<vmem>>, vector<8x128xf32>
    %c0_12 = arith.constant 0 : index
    %c0_13 = arith.constant 0 : index
    %12 = vector.load %arg11[%c0_12, %c0_13] : memref<8x128xf32, #tpu.memory_space<vmem>>, vector<8x128xf32>
    %c0_i32_14 = arith.constant 0 : i32
    %c8_i32 = arith.constant 8 : i32
    %13 = arith.muli %c0_i32_14, %c8_i32 : i32
    %14 = tpu.assume_multiple %13, 8 : i32
    %15 = arith.index_cast %14 : i32 to index
    %c0_15 = arith.constant 0 : index
    %16 = vector.load %arg12[%15, %c0_15] : memref<64x512xf32, #tpu.memory_space<vmem>>, vector<8x512xf32>
    %17 = arith.truncf %11 : vector<8x128xf32> to vector<8x128xbf16>
    %cst_16 = arith.constant dense<0.000000e+00> : vector<8x512xf32>
    %18 = tpu.matmul %17, %10, %cst_16 {dimension_numbers = #tpu.dot_dimension_numbers<[1], [0], [0], [1], [0, 0, 1, 1], [], []>} : vector<8x128xbf16>, vector<128x512xbf16>, vector<8x512xf32> -> vector<8x512xf32>
    %19 = arith.addf %16, %18 : vector<8x512xf32>
    %20 = vector.extract_strided_slice %19 {offsets = [0, 0], sizes = [8, 384], strides = [1, 1]} : vector<8x512xf32> to vector<8x384xf32>
    %cst_17 = arith.constant 2.000000e-01 : f32
    %21 = vector.broadcast %cst_17 : f32 to vector<8x384xf32>
    %22 = arith.mulf %21, %20 : vector<8x384xf32>
    %cst_18 = arith.constant 5.000000e-01 : f32
    %23 = vector.broadcast %cst_18 : f32 to vector<8x384xf32>
    %24 = arith.addf %22, %23 : vector<8x384xf32>
    %cst_19 = arith.constant 0.000000e+00 : f32
    %cst_20 = arith.constant 1.000000e+00 : f32
    %25 = vector.broadcast %cst_19 : f32 to vector<8x384xf32>
    %26 = arith.maximumf %25, %24 : vector<8x384xf32>
    %27 = vector.broadcast %cst_20 : f32 to vector<8x384xf32>
    %28 = arith.minimumf %27, %26 : vector<8x384xf32>
    %29 = vector.extract_strided_slice %28 {offsets = [0, 0], sizes = [8, 128], strides = [1, 1]} : vector<8x384xf32> to vector<8x128xf32>
    %30 = vector.extract_strided_slice %28 {offsets = [0, 128], sizes = [8, 128], strides = [1, 1]} : vector<8x384xf32> to vector<8x128xf32>
    %31 = vector.extract_strided_slice %28 {offsets = [0, 256], sizes = [8, 128], strides = [1, 1]} : vector<8x384xf32> to vector<8x128xf32>
    %32 = vector.extract_strided_slice %19 {offsets = [0, 384], sizes = [8, 128], strides = [1, 1]} : vector<8x512xf32> to vector<8x128xf32>
    %33 = math.tanh %32 : vector<8x128xf32>
    %34 = arith.mulf %30, %12 : vector<8x128xf32>
    %35 = arith.mulf %29, %33 : vector<8x128xf32>
    %36 = arith.addf %34, %35 : vector<8x128xf32>
    %37 = math.tanh %36 : vector<8x128xf32>
    %38 = arith.mulf %31, %37 : vector<8x128xf32>
    %39 = arith.index_cast %14 : i32 to index
    %c0_21 = arith.constant 0 : index
    %40 = vector.load %arg7[%39, %c0_21] : memref<64x128xf32, #tpu.memory_space<vmem>>, vector<8x128xf32>
    tpu.vector_store %arg7[%39, %c0_21], %38 {strides = array<i32>} : memref<64x128xf32, #tpu.memory_space<vmem>>, vector<8x128xf32>,
    %c1_i32 = arith.constant 1 : i32
    %c8_i32_22 = arith.constant 8 : i32
    %41 = arith.muli %c1_i32, %c8_i32_22 : i32
    %42 = tpu.assume_multiple %41, 8 : i32
    %43 = arith.index_cast %42 : i32 to index
    %c0_23 = arith.constant 0 : index
    %44 = vector.load %arg12[%43, %c0_23] : memref<64x512xf32, #tpu.memory_space<vmem>>, vector<8x512xf32>
    %45 = arith.truncf %38 : vector<8x128xf32> to vector<8x128xbf16>
    %cst_24 = arith.constant dense<0.000000e+00> : vector<8x512xf32>
    %46 = tpu.matmul %45, %10, %cst_24 {dimension_numbers = #tpu.dot_dimension_numbers<[1], [0], [0], [1], [0, 0, 1, 1], [], []>} : vector<8x128xbf16>, vector<128x512xbf16>, vector<8x512xf32> -> vector<8x512xf32>
    %47 = arith.addf %44, %46 : vector<8x512xf32>
    %48 = vector.extract_strided_slice %47 {offsets = [0, 0], sizes = [8, 384], strides = [1, 1]} : vector<8x512xf32> to vector<8x384xf32>
    %cst_25 = arith.constant 2.000000e-01 : f32
    %49 = vector.broadcast %cst_25 : f32 to vector<8x384xf32>
    %50 = arith.mulf %49, %48 : vector<8x384xf32>
    %cst_26 = arith.constant 5.000000e-01 : f32
    %51 = vector.broadcast %cst_26 : f32 to vector<8x384xf32>
    %52 = arith.addf %50, %51 : vector<8x384xf32>
    %cst_27 = arith.constant 0.000000e+00 : f32
    %cst_28 = arith.constant 1.000000e+00 : f32
    %53 = vector.broadcast %cst_27 : f32 to vector<8x384xf32>
    %54 = arith.maximumf %53, %52 : vector<8x384xf32>
    %55 = vector.broadcast %cst_28 : f32 to vector<8x384xf32>
    %56 = arith.minimumf %55, %54 : vector<8x384xf32>
    %57 = vector.extract_strided_slice %56 {offsets = [0, 0], sizes = [8, 128], strides = [1, 1]} : vector<8x384xf32> to vector<8x128xf32>
    %58 = vector.extract_strided_slice %56 {offsets = [0, 128], sizes = [8, 128], strides = [1, 1]} : vector<8x384xf32> to vector<8x128xf32>
    %59 = vector.extract_strided_slice %56 {offsets = [0, 256], sizes = [8, 128], strides = [1, 1]} : vector<8x384xf32> to vector<8x128xf32>
    %60 = vector.extract_strided_slice %47 {offsets = [0, 384], sizes = [8, 128], strides = [1, 1]} : vector<8x512xf32> to vector<8x128xf32>
    %61 = math.tanh %60 : vector<8x128xf32>
    %62 = arith.mulf %58, %36 : vector<8x128xf32>
    %63 = arith.mulf %57, %61 : vector<8x128xf32>
    %64 = arith.addf %62, %63 : vector<8x128xf32>
    %65 = math.tanh %64 : vector<8x128xf32>
    %66 = arith.mulf %59, %65 : vector<8x128xf32>
    %67 = arith.index_cast %42 : i32 to index
    %c0_29 = arith.constant 0 : index
    %68 = vector.load %arg7[%67, %c0_29] : memref<64x128xf32, #tpu.memory_space<vmem>>, vector<8x128xf32>
    tpu.vector_store %arg7[%67, %c0_29], %66 {strides = array<i32>} : memref<64x128xf32, #tpu.memory_space<vmem>>, vector<8x128xf32>,
    %c2_i32 = arith.constant 2 : i32
    %c8_i32_30 = arith.constant 8 : i32
    %69 = arith.muli %c2_i32, %c8_i32_30 : i32
    %70 = tpu.assume_multiple %69, 8 : i32
    %71 = arith.index_cast %70 : i32 to index
    %c0_31 = arith.constant 0 : index
    %72 = vector.load %arg12[%71, %c0_31] : memref<64x512xf32, #tpu.memory_space<vmem>>, vector<8x512xf32>
    %73 = arith.truncf %66 : vector<8x128xf32> to vector<8x128xbf16>
    %cst_32 = arith.constant dense<0.000000e+00> : vector<8x512xf32>
    %74 = tpu.matmul %73, %10, %cst_32 {dimension_numbers = #tpu.dot_dimension_numbers<[1], [0], [0], [1], [0, 0, 1, 1], [], []>} : vector<8x128xbf16>, vector<128x512xbf16>, vector<8x512xf32> -> vector<8x512xf32>
    %75 = arith.addf %72, %74 : vector<8x512xf32>
    %76 = vector.extract_strided_slice %75 {offsets = [0, 0], sizes = [8, 384], strides = [1, 1]} : vector<8x512xf32> to vector<8x384xf32>
    %cst_33 = arith.constant 2.000000e-01 : f32
    %77 = vector.broadcast %cst_33 : f32 to vector<8x384xf32>
    %78 = arith.mulf %77, %76 : vector<8x384xf32>
    %cst_34 = arith.constant 5.000000e-01 : f32
    %79 = vector.broadcast %cst_34 : f32 to vector<8x384xf32>
    %80 = arith.addf %78, %79 : vector<8x384xf32>
    %cst_35 = arith.constant 0.000000e+00 : f32
    %cst_36 = arith.constant 1.000000e+00 : f32
    %81 = vector.broadcast %cst_35 : f32 to vector<8x384xf32>
    %82 = arith.maximumf %81, %80 : vector<8x384xf32>
    %83 = vector.broadcast %cst_36 : f32 to vector<8x384xf32>
    %84 = arith.minimumf %83, %82 : vector<8x384xf32>
    %85 = vector.extract_strided_slice %84 {offsets = [0, 0], sizes = [8, 128], strides = [1, 1]} : vector<8x384xf32> to vector<8x128xf32>
    %86 = vector.extract_strided_slice %84 {offsets = [0, 128], sizes = [8, 128], strides = [1, 1]} : vector<8x384xf32> to vector<8x128xf32>
    %87 = vector.extract_strided_slice %84 {offsets = [0, 256], sizes = [8, 128], strides = [1, 1]} : vector<8x384xf32> to vector<8x128xf32>
    %88 = vector.extract_strided_slice %75 {offsets = [0, 384], sizes = [8, 128], strides = [1, 1]} : vector<8x512xf32> to vector<8x128xf32>
    %89 = math.tanh %88 : vector<8x128xf32>
    %90 = arith.mulf %86, %64 : vector<8x128xf32>
    %91 = arith.mulf %85, %89 : vector<8x128xf32>
    %92 = arith.addf %90, %91 : vector<8x128xf32>
    %93 = math.tanh %92 : vector<8x128xf32>
    %94 = arith.mulf %87, %93 : vector<8x128xf32>
    %95 = arith.index_cast %70 : i32 to index
    %c0_37 = arith.constant 0 : index
    %96 = vector.load %arg7[%95, %c0_37] : memref<64x128xf32, #tpu.memory_space<vmem>>, vector<8x128xf32>
    tpu.vector_store %arg7[%95, %c0_37], %94 {strides = array<i32>} : memref<64x128xf32, #tpu.memory_space<vmem>>, vector<8x128xf32>,
    %c3_i32 = arith.constant 3 : i32
    %c8_i32_38 = arith.constant 8 : i32
    %97 = arith.muli %c3_i32, %c8_i32_38 : i32
    %98 = tpu.assume_multiple %97, 8 : i32
    %99 = arith.index_cast %98 : i32 to index
    %c0_39 = arith.constant 0 : index
    %100 = vector.load %arg12[%99, %c0_39] : memref<64x512xf32, #tpu.memory_space<vmem>>, vector<8x512xf32>
    %101 = arith.truncf %94 : vector<8x128xf32> to vector<8x128xbf16>
    %cst_40 = arith.constant dense<0.000000e+00> : vector<8x512xf32>
    %102 = tpu.matmul %101, %10, %cst_40 {dimension_numbers = #tpu.dot_dimension_numbers<[1], [0], [0], [1], [0, 0, 1, 1], [], []>} : vector<8x128xbf16>, vector<128x512xbf16>, vector<8x512xf32> -> vector<8x512xf32>
    %103 = arith.addf %100, %102 : vector<8x512xf32>
    %104 = vector.extract_strided_slice %103 {offsets = [0, 0], sizes = [8, 384], strides = [1, 1]} : vector<8x512xf32> to vector<8x384xf32>
    %cst_41 = arith.constant 2.000000e-01 : f32
    %105 = vector.broadcast %cst_41 : f32 to vector<8x384xf32>
    %106 = arith.mulf %105, %104 : vector<8x384xf32>
    %cst_42 = arith.constant 5.000000e-01 : f32
    %107 = vector.broadcast %cst_42 : f32 to vector<8x384xf32>
    %108 = arith.addf %106, %107 : vector<8x384xf32>
    %cst_43 = arith.constant 0.000000e+00 : f32
    %cst_44 = arith.constant 1.000000e+00 : f32
    %109 = vector.broadcast %cst_43 : f32 to vector<8x384xf32>
    %110 = arith.maximumf %109, %108 : vector<8x384xf32>
    %111 = vector.broadcast %cst_44 : f32 to vector<8x384xf32>
    %112 = arith.minimumf %111, %110 : vector<8x384xf32>
    %113 = vector.extract_strided_slice %112 {offsets = [0, 0], sizes = [8, 128], strides = [1, 1]} : vector<8x384xf32> to vector<8x128xf32>
    %114 = vector.extract_strided_slice %112 {offsets = [0, 128], sizes = [8, 128], strides = [1, 1]} : vector<8x384xf32> to vector<8x128xf32>
    %115 = vector.extract_strided_slice %112 {offsets = [0, 256], sizes = [8, 128], strides = [1, 1]} : vector<8x384xf32> to vector<8x128xf32>
    %116 = vector.extract_strided_slice %103 {offsets = [0, 384], sizes = [8, 128], strides = [1, 1]} : vector<8x512xf32> to vector<8x128xf32>
    %117 = math.tanh %116 : vector<8x128xf32>
    %118 = arith.mulf %114, %92 : vector<8x128xf32>
    %119 = arith.mulf %113, %117 : vector<8x128xf32>
    %120 = arith.addf %118, %119 : vector<8x128xf32>
    %121 = math.tanh %120 : vector<8x128xf32>
    %122 = arith.mulf %115, %121 : vector<8x128xf32>
    %123 = arith.index_cast %98 : i32 to index
    %c0_45 = arith.constant 0 : index
    %124 = vector.load %arg7[%123, %c0_45] : memref<64x128xf32, #tpu.memory_space<vmem>>, vector<8x128xf32>
    tpu.vector_store %arg7[%123, %c0_45], %122 {strides = array<i32>} : memref<64x128xf32, #tpu.memory_space<vmem>>, vector<8x128xf32>,
    %c4_i32 = arith.constant 4 : i32
    %c8_i32_46 = arith.constant 8 : i32
    %125 = arith.muli %c4_i32, %c8_i32_46 : i32
    %126 = tpu.assume_multiple %125, 8 : i32
    %127 = arith.index_cast %126 : i32 to index
    %c0_47 = arith.constant 0 : index
    %128 = vector.load %arg12[%127, %c0_47] : memref<64x512xf32, #tpu.memory_space<vmem>>, vector<8x512xf32>
    %129 = arith.truncf %122 : vector<8x128xf32> to vector<8x128xbf16>
    %cst_48 = arith.constant dense<0.000000e+00> : vector<8x512xf32>
    %130 = tpu.matmul %129, %10, %cst_48 {dimension_numbers = #tpu.dot_dimension_numbers<[1], [0], [0], [1], [0, 0, 1, 1], [], []>} : vector<8x128xbf16>, vector<128x512xbf16>, vector<8x512xf32> -> vector<8x512xf32>
    %131 = arith.addf %128, %130 : vector<8x512xf32>
    %132 = vector.extract_strided_slice %131 {offsets = [0, 0], sizes = [8, 384], strides = [1, 1]} : vector<8x512xf32> to vector<8x384xf32>
    %cst_49 = arith.constant 2.000000e-01 : f32
    %133 = vector.broadcast %cst_49 : f32 to vector<8x384xf32>
    %134 = arith.mulf %133, %132 : vector<8x384xf32>
    %cst_50 = arith.constant 5.000000e-01 : f32
    %135 = vector.broadcast %cst_50 : f32 to vector<8x384xf32>
    %136 = arith.addf %134, %135 : vector<8x384xf32>
    %cst_51 = arith.constant 0.000000e+00 : f32
    %cst_52 = arith.constant 1.000000e+00 : f32
    %137 = vector.broadcast %cst_51 : f32 to vector<8x384xf32>
    %138 = arith.maximumf %137, %136 : vector<8x384xf32>
    %139 = vector.broadcast %cst_52 : f32 to vector<8x384xf32>
    %140 = arith.minimumf %139, %138 : vector<8x384xf32>
    %141 = vector.extract_strided_slice %140 {offsets = [0, 0], sizes = [8, 128], strides = [1, 1]} : vector<8x384xf32> to vector<8x128xf32>
    %142 = vector.extract_strided_slice %140 {offsets = [0, 128], sizes = [8, 128], strides = [1, 1]} : vector<8x384xf32> to vector<8x128xf32>
    %143 = vector.extract_strided_slice %140 {offsets = [0, 256], sizes = [8, 128], strides = [1, 1]} : vector<8x384xf32> to vector<8x128xf32>
    %144 = vector.extract_strided_slice %131 {offsets = [0, 384], sizes = [8, 128], strides = [1, 1]} : vector<8x512xf32> to vector<8x128xf32>
    %145 = math.tanh %144 : vector<8x128xf32>
    %146 = arith.mulf %142, %120 : vector<8x128xf32>
    %147 = arith.mulf %141, %145 : vector<8x128xf32>
    %148 = arith.addf %146, %147 : vector<8x128xf32>
    %149 = math.tanh %148 : vector<8x128xf32>
    %150 = arith.mulf %143, %149 : vector<8x128xf32>
    %151 = arith.index_cast %126 : i32 to index
    %c0_53 = arith.constant 0 : index
    %152 = vector.load %arg7[%151, %c0_53] : memref<64x128xf32, #tpu.memory_space<vmem>>, vector<8x128xf32>
    tpu.vector_store %arg7[%151, %c0_53], %150 {strides = array<i32>} : memref<64x128xf32, #tpu.memory_space<vmem>>, vector<8x128xf32>,
    %c5_i32 = arith.constant 5 : i32
    %c8_i32_54 = arith.constant 8 : i32
    %153 = arith.muli %c5_i32, %c8_i32_54 : i32
    %154 = tpu.assume_multiple %153, 8 : i32
    %155 = arith.index_cast %154 : i32 to index
    %c0_55 = arith.constant 0 : index
    %156 = vector.load %arg12[%155, %c0_55] : memref<64x512xf32, #tpu.memory_space<vmem>>, vector<8x512xf32>
    %157 = arith.truncf %150 : vector<8x128xf32> to vector<8x128xbf16>
    %cst_56 = arith.constant dense<0.000000e+00> : vector<8x512xf32>
    %158 = tpu.matmul %157, %10, %cst_56 {dimension_numbers = #tpu.dot_dimension_numbers<[1], [0], [0], [1], [0, 0, 1, 1], [], []>} : vector<8x128xbf16>, vector<128x512xbf16>, vector<8x512xf32> -> vector<8x512xf32>
    %159 = arith.addf %156, %158 : vector<8x512xf32>
    %160 = vector.extract_strided_slice %159 {offsets = [0, 0], sizes = [8, 384], strides = [1, 1]} : vector<8x512xf32> to vector<8x384xf32>
    %cst_57 = arith.constant 2.000000e-01 : f32
    %161 = vector.broadcast %cst_57 : f32 to vector<8x384xf32>
    %162 = arith.mulf %161, %160 : vector<8x384xf32>
    %cst_58 = arith.constant 5.000000e-01 : f32
    %163 = vector.broadcast %cst_58 : f32 to vector<8x384xf32>
    %164 = arith.addf %162, %163 : vector<8x384xf32>
    %cst_59 = arith.constant 0.000000e+00 : f32
    %cst_60 = arith.constant 1.000000e+00 : f32
    %165 = vector.broadcast %cst_59 : f32 to vector<8x384xf32>
    %166 = arith.maximumf %165, %164 : vector<8x384xf32>
    %167 = vector.broadcast %cst_60 : f32 to vector<8x384xf32>
    %168 = arith.minimumf %167, %166 : vector<8x384xf32>
    %169 = vector.extract_strided_slice %168 {offsets = [0, 0], sizes = [8, 128], strides = [1, 1]} : vector<8x384xf32> to vector<8x128xf32>
    %170 = vector.extract_strided_slice %168 {offsets = [0, 128], sizes = [8, 128], strides = [1, 1]} : vector<8x384xf32> to vector<8x128xf32>
    %171 = vector.extract_strided_slice %168 {offsets = [0, 256], sizes = [8, 128], strides = [1, 1]} : vector<8x384xf32> to vector<8x128xf32>
    %172 = vector.extract_strided_slice %159 {offsets = [0, 384], sizes = [8, 128], strides = [1, 1]} : vector<8x512xf32> to vector<8x128xf32>
    %173 = math.tanh %172 : vector<8x128xf32>
    %174 = arith.mulf %170, %148 : vector<8x128xf32>
    %175 = arith.mulf %169, %173 : vector<8x128xf32>
    %176 = arith.addf %174, %175 : vector<8x128xf32>
    %177 = math.tanh %176 : vector<8x128xf32>
    %178 = arith.mulf %171, %177 : vector<8x128xf32>
    %179 = arith.index_cast %154 : i32 to index
    %c0_61 = arith.constant 0 : index
    %180 = vector.load %arg7[%179, %c0_61] : memref<64x128xf32, #tpu.memory_space<vmem>>, vector<8x128xf32>
    tpu.vector_store %arg7[%179, %c0_61], %178 {strides = array<i32>} : memref<64x128xf32, #tpu.memory_space<vmem>>, vector<8x128xf32>,
    %c6_i32 = arith.constant 6 : i32
    %c8_i32_62 = arith.constant 8 : i32
    %181 = arith.muli %c6_i32, %c8_i32_62 : i32
    %182 = tpu.assume_multiple %181, 8 : i32
    %183 = arith.index_cast %182 : i32 to index
    %c0_63 = arith.constant 0 : index
    %184 = vector.load %arg12[%183, %c0_63] : memref<64x512xf32, #tpu.memory_space<vmem>>, vector<8x512xf32>
    %185 = arith.truncf %178 : vector<8x128xf32> to vector<8x128xbf16>
    %cst_64 = arith.constant dense<0.000000e+00> : vector<8x512xf32>
    %186 = tpu.matmul %185, %10, %cst_64 {dimension_numbers = #tpu.dot_dimension_numbers<[1], [0], [0], [1], [0, 0, 1, 1], [], []>} : vector<8x128xbf16>, vector<128x512xbf16>, vector<8x512xf32> -> vector<8x512xf32>
    %187 = arith.addf %184, %186 : vector<8x512xf32>
    %188 = vector.extract_strided_slice %187 {offsets = [0, 0], sizes = [8, 384], strides = [1, 1]} : vector<8x512xf32> to vector<8x384xf32>
    %cst_65 = arith.constant 2.000000e-01 : f32
    %189 = vector.broadcast %cst_65 : f32 to vector<8x384xf32>
    %190 = arith.mulf %189, %188 : vector<8x384xf32>
    %cst_66 = arith.constant 5.000000e-01 : f32
    %191 = vector.broadcast %cst_66 : f32 to vector<8x384xf32>
    %192 = arith.addf %190, %191 : vector<8x384xf32>
    %cst_67 = arith.constant 0.000000e+00 : f32
    %cst_68 = arith.constant 1.000000e+00 : f32
    %193 = vector.broadcast %cst_67 : f32 to vector<8x384xf32>
    %194 = arith.maximumf %193, %192 : vector<8x384xf32>
    %195 = vector.broadcast %cst_68 : f32 to vector<8x384xf32>
    %196 = arith.minimumf %195, %194 : vector<8x384xf32>
    %197 = vector.extract_strided_slice %196 {offsets = [0, 0], sizes = [8, 128], strides = [1, 1]} : vector<8x384xf32> to vector<8x128xf32>
    %198 = vector.extract_strided_slice %196 {offsets = [0, 128], sizes = [8, 128], strides = [1, 1]} : vector<8x384xf32> to vector<8x128xf32>
    %199 = vector.extract_strided_slice %196 {offsets = [0, 256], sizes = [8, 128], strides = [1, 1]} : vector<8x384xf32> to vector<8x128xf32>
    %200 = vector.extract_strided_slice %187 {offsets = [0, 384], sizes = [8, 128], strides = [1, 1]} : vector<8x512xf32> to vector<8x128xf32>
    %201 = math.tanh %200 : vector<8x128xf32>
    %202 = arith.mulf %198, %176 : vector<8x128xf32>
    %203 = arith.mulf %197, %201 : vector<8x128xf32>
    %204 = arith.addf %202, %203 : vector<8x128xf32>
    %205 = math.tanh %204 : vector<8x128xf32>
    %206 = arith.mulf %199, %205 : vector<8x128xf32>
    %207 = arith.index_cast %182 : i32 to index
    %c0_69 = arith.constant 0 : index
    %208 = vector.load %arg7[%207, %c0_69] : memref<64x128xf32, #tpu.memory_space<vmem>>, vector<8x128xf32>
    tpu.vector_store %arg7[%207, %c0_69], %206 {strides = array<i32>} : memref<64x128xf32, #tpu.memory_space<vmem>>, vector<8x128xf32>,
    %c7_i32 = arith.constant 7 : i32
    %c8_i32_70 = arith.constant 8 : i32
    %209 = arith.muli %c7_i32, %c8_i32_70 : i32
    %210 = tpu.assume_multiple %209, 8 : i32
    %211 = arith.index_cast %210 : i32 to index
    %c0_71 = arith.constant 0 : index
    %212 = vector.load %arg12[%211, %c0_71] : memref<64x512xf32, #tpu.memory_space<vmem>>, vector<8x512xf32>
    %213 = arith.truncf %206 : vector<8x128xf32> to vector<8x128xbf16>
    %cst_72 = arith.constant dense<0.000000e+00> : vector<8x512xf32>
    %214 = tpu.matmul %213, %10, %cst_72 {dimension_numbers = #tpu.dot_dimension_numbers<[1], [0], [0], [1], [0, 0, 1, 1], [], []>} : vector<8x128xbf16>, vector<128x512xbf16>, vector<8x512xf32> -> vector<8x512xf32>
    %215 = arith.addf %212, %214 : vector<8x512xf32>
    %216 = vector.extract_strided_slice %215 {offsets = [0, 0], sizes = [8, 384], strides = [1, 1]} : vector<8x512xf32> to vector<8x384xf32>
    %cst_73 = arith.constant 2.000000e-01 : f32
    %217 = vector.broadcast %cst_73 : f32 to vector<8x384xf32>
    %218 = arith.mulf %217, %216 : vector<8x384xf32>
    %cst_74 = arith.constant 5.000000e-01 : f32
    %219 = vector.broadcast %cst_74 : f32 to vector<8x384xf32>
    %220 = arith.addf %218, %219 : vector<8x384xf32>
    %cst_75 = arith.constant 0.000000e+00 : f32
    %cst_76 = arith.constant 1.000000e+00 : f32
    %221 = vector.broadcast %cst_75 : f32 to vector<8x384xf32>
    %222 = arith.maximumf %221, %220 : vector<8x384xf32>
    %223 = vector.broadcast %cst_76 : f32 to vector<8x384xf32>
    %224 = arith.minimumf %223, %222 : vector<8x384xf32>
    %225 = vector.extract_strided_slice %224 {offsets = [0, 0], sizes = [8, 128], strides = [1, 1]} : vector<8x384xf32> to vector<8x128xf32>
    %226 = vector.extract_strided_slice %224 {offsets = [0, 128], sizes = [8, 128], strides = [1, 1]} : vector<8x384xf32> to vector<8x128xf32>
    %227 = vector.extract_strided_slice %224 {offsets = [0, 256], sizes = [8, 128], strides = [1, 1]} : vector<8x384xf32> to vector<8x128xf32>
    %228 = vector.extract_strided_slice %215 {offsets = [0, 384], sizes = [8, 128], strides = [1, 1]} : vector<8x512xf32> to vector<8x128xf32>
    %229 = math.tanh %228 : vector<8x128xf32>
    %230 = arith.mulf %226, %204 : vector<8x128xf32>
    %231 = arith.mulf %225, %229 : vector<8x128xf32>
    %232 = arith.addf %230, %231 : vector<8x128xf32>
    %233 = math.tanh %232 : vector<8x128xf32>
    %234 = arith.mulf %227, %233 : vector<8x128xf32>
    %235 = arith.index_cast %210 : i32 to index
    %c0_77 = arith.constant 0 : index
    %236 = vector.load %arg7[%235, %c0_77] : memref<64x128xf32, #tpu.memory_space<vmem>>, vector<8x128xf32>
    tpu.vector_store %arg7[%235, %c0_77], %234 {strides = array<i32>} : memref<64x128xf32, #tpu.memory_space<vmem>>, vector<8x128xf32>,
    %c8_i32_78 = arith.constant 8 : i32
    %c0_79 = arith.constant 0 : index
    %c0_80 = arith.constant 0 : index
    %237 = vector.load %arg10[%c0_79, %c0_80] : memref<8x128xf32, #tpu.memory_space<vmem>>, vector<8x128xf32>
    tpu.vector_store %arg10[%c0_79, %c0_80], %234 {strides = array<i32>} : memref<8x128xf32, #tpu.memory_space<vmem>>, vector<8x128xf32>,
    %c0_81 = arith.constant 0 : index
    %c0_82 = arith.constant 0 : index
    %238 = vector.load %arg11[%c0_81, %c0_82] : memref<8x128xf32, #tpu.memory_space<vmem>>, vector<8x128xf32>
    tpu.vector_store %arg11[%c0_81, %c0_82], %232 {strides = array<i32>} : memref<8x128xf32, #tpu.memory_space<vmem>>, vector<8x128xf32>,
    %c0_i32_83 = arith.constant 0 : i32
    %239 = arith.cmpi eq, %arg0, %c0_i32_83 : i32
    %240 = arith.extui %239 : i1 to i32
    %c0_i32_84 = arith.constant 0 : i32
    %241 = arith.cmpi ne, %240, %c0_i32_84 : i32
    scf.if %241 {
      %c0_85 = arith.constant 0 : index
      %c0_86 = arith.constant 0 : index
      %242 = vector.load %arg8[%c0_85, %c0_86] : memref<8x128xf32, #tpu.memory_space<vmem>>, vector<8x128xf32>
      tpu.vector_store %arg8[%c0_85, %c0_86], %234 {strides = array<i32>} : memref<8x128xf32, #tpu.memory_space<vmem>>, vector<8x128xf32>,
      %c0_87 = arith.constant 0 : index
      %c0_88 = arith.constant 0 : index
      %243 = vector.load %arg9[%c0_87, %c0_88] : memref<8x128xf32, #tpu.memory_space<vmem>>, vector<8x128xf32>
      tpu.vector_store %arg9[%c0_87, %c0_88], %232 {strides = array<i32>} : memref<8x128xf32, #tpu.memory_space<vmem>>, vector<8x128xf32>,
    } else {
    }
    return
  }
  func.func @transform_0(%arg0: i32) -> (i32, i32) {
    %c0_i32 = arith.constant 0 : i32
    %c0_i32_0 = arith.constant 0 : i32
    return %arg0, %c0_i32 : i32, i32
  }
  func.func @transform_1(%arg0: i32) -> (i32, i32) {
    %c0_i32 = arith.constant 0 : i32
    %c0_i32_0 = arith.constant 0 : i32
    %c0_i32_1 = arith.constant 0 : i32
    return %c0_i32, %c0_i32_0 : i32, i32
  }
  func.func @transform_2(%arg0: i32) -> (i32, i32) {
    %c0_i32 = arith.constant 0 : i32
    %c0_i32_0 = arith.constant 0 : i32
    %c0_i32_1 = arith.constant 0 : i32
    return %c0_i32, %c0_i32_0 : i32, i32
  }
  func.func @transform_3(%arg0: i32) -> (i32, i32) {
    %c0_i32 = arith.constant 0 : i32
    %c0_i32_0 = arith.constant 0 : i32
    %c0_i32_1 = arith.constant 0 : i32
    return %c0_i32, %c0_i32_0 : i32, i32
  }
  func.func @transform_4(%arg0: i32) -> (i32, i32) {
    %c0_i32 = arith.constant 0 : i32
    %c0_i32_0 = arith.constant 0 : i32
    %c0_i32_1 = arith.constant 0 : i32
    return %c0_i32, %c0_i32_0 : i32, i32
  }
  func.func @transform_5(%arg0: i32) -> (i32, i32) {
    %c0_i32 = arith.constant 0 : i32
    %c0_i32_0 = arith.constant 0 : i32
    %c0_i32_1 = arith.constant 0 : i32
    return %c0_i32, %c0_i32_0 : i32, i32
  }
  func.func @transform_6(%arg0: i32) -> (i32, i32) {
    %c0_i32 = arith.constant 0 : i32
    %c0_i32_0 = arith.constant 0 : i32
    return %arg0, %c0_i32 : i32, i32
  }
  func.func @transform_7(%arg0: i32) -> (i32, i32) {
    %c0_i32 = arith.constant 0 : i32
    %c0_i32_0 = arith.constant 0 : i32
    %c0_i32_1 = arith.constant 0 : i32
    return %c0_i32, %c0_i32_0 : i32, i32
  }
  func.func @transform_8(%arg0: i32) -> (i32, i32) {
    %c0_i32 = arith.constant 0 : i32
    %c0_i32_0 = arith.constant 0 : i32
    %c0_i32_1 = arith.constant 0 : i32
    return %c0_i32, %c0_i32_0 : i32, i32
  }
}

</mosaic_0001>

<llo_original>
// kernel: tpu_custom_call.1
$region0: #{tpu_custom_call.1}
  #allocation0 [shape = 'u32[]', space=smem, size = 0x4, offset = 0x4, fixed_abs, tag = 'smem constant byte address 0x4 - core index']
  #allocation1 [shape = 'u32[72,128]{1,0:T(1,128)}', space=vmem, size = 0x9000, scoped, tag = 'internal scratch']
  #allocation2 [shape = 'f32[8,128]{1,0:T(8,128)}', space=vmem, size = 0x1000, scoped, tag = 'scratch operand']
  #allocation3 [shape = 'f32[8,128]{1,0:T(8,128)}', space=vmem, size = 0x1000, scoped, tag = 'scratch operand']
  #allocation4 [shape = 'f32[64,512]{1,0:T(8,128)}', space=vmem, size = 0x20000, scoped, tag = 'scratch operand']
  %s0 = inlined_call_operand.hbm [shape: bf16[64,128], index: 0, kind: input, shape index: {}]
  %s1 = inlined_call_operand.hbm [shape: bf16[128,512], index: 1, kind: input, shape index: {}]
  %s2 = inlined_call_operand.hbm [shape: bf16[128,512], index: 2, kind: input, shape index: {}]
  %s3 = inlined_call_operand.hbm [shape: f32[1,512], index: 3, kind: input, shape index: {}]
  %s4 = inlined_call_operand.hbm [shape: f32[8,128], index: 4, kind: input, shape index: {}]
  %s5 = inlined_call_operand.hbm [shape: f32[8,128], index: 5, kind: input, shape index: {}]
  %s6 = inlined_call_operand.hbm [shape: f32[64,128], index: 6, kind: output, shape index: {0}]
  %s7 = inlined_call_operand.hbm [shape: f32[8,128], index: 7, kind: output, shape index: {1}]
  %s8 = inlined_call_operand.hbm [shape: f32[8,128], index: 8, kind: output, shape index: {2}]
  %9 = xla_tuple %s6, %s7, %s8
  %s10 = sld [smem:[#allocation0]]
  $region82: #{tpu_custom_call.1} parent=0
    _
  %s12 = ssub.s32 1, %s10
  %s13 = scalar_select 0, %s12, %s10
  $region1: #{tpu_custom_call.1} parent=0
    #allocation5 [shape = 'u8[16384]{0}', space=vmem, size = 0x4000, scoped, tag = 'input window, operand 0, single buffered']
    #allocation6 [shape = 's32[1]{0}', space=sflag, size = 0x4, scoped, tag = 'scoped memory for tpu_custom_call.1']
    #allocation7 [shape = 's32[1]{0}', space=sflag, size = 0x4, scoped, tag = 'scoped memory for tpu_custom_call.1']
    #allocation8 [shape = 'u8[131072]{0}', space=vmem, size = 0x20000, scoped, tag = 'input window, operand 1, single buffered']
    #allocation9 [shape = 's32[1]{0}', space=sflag, size = 0x4, scoped, tag = 'scoped memory for tpu_custom_call.1']
    #allocation10 [shape = 'u8[131072]{0}', space=vmem, size = 0x20000, scoped, tag = 'input window, operand 2, single buffered']
    #allocation11 [shape = 'u8[2048]{0}', space=vmem, size = 0x800, scoped, tag = 'input window, operand 3, single buffered']
    #allocation12 [shape = 's32[1]{0}', space=sflag, size = 0x4, scoped, tag = 'scoped memory for tpu_custom_call.1']
    #allocation13 [shape = 'u8[4096]{0}', space=vmem, size = 0x1000, scoped, tag = 'input window, operand 4, single buffered']
    #allocation14 [shape = 'u8[4096]{0}', space=vmem, size = 0x1000, scoped, tag = 'input window, operand 5, single buffered']
    #allocation15 [shape = 's32[1]{0}', space=sflag, size = 0x4, scoped, tag = 'scoped memory for tpu_custom_call.1']
    #allocation16 [shape = 'u8[32768]{0}', space=vmem, size = 0x8000, scoped, tag = 'output window, operand 0, single buffered']
    #allocation17 [shape = 'u8[4096]{0}', space=vmem, size = 0x1000, scoped, tag = 'output window, operand 1, single buffered']
    #allocation18 [shape = 's32[1]{0}', space=sflag, size = 0x4, scoped, tag = 'scoped memory for tpu_custom_call.1']
    #allocation19 [shape = 'u8[4096]{0}', space=vmem, size = 0x1000, scoped, tag = 'output window, operand 2, single buffered']
    %14 = vsyncpa [#allocation6], 0
    %15 = vsyncpa [#allocation9], 0
    %16 = vsyncpa [#allocation12], 0
    %17 = vsyncpa [#allocation15], 0
    %18 = vsyncpa [#allocation7], 0
    %19 = vsyncpa [#allocation18], 0
    // Predicated region
    $region2: #{tpu_custom_call.1} parent=1 // pred_check
      _
    $region3: #{tpu_custom_call.1} parent=1 // pred_check_branch
      %21 = sbr.rel (0) target = $region5
    $region4: #{tpu_custom_call.1} parent=1 // pred_region
      %23 = vsyncadd [#allocation6], 0
      %s24 = sshll.u32 %s0, 4
      %s25 = int_to_ptr.hbm [resolvable:$true] %s24
      %s26 = sshll.u32 [#allocation5], 4
      %s27 = int_to_ptr.vmem [resolvable:$true] %s26
      %32 = dma.hbm_to_vmem [thread:$0]  %s25, 512, %s27, [#allocation6], 64, 64, 4
    $region5: #{tpu_custom_call.1} parent=1 // pred_fallthru
      _
    // Predicated region
    $region6: #{tpu_custom_call.1} parent=1 // pred_check
      _
    $region7: #{tpu_custom_call.1} parent=1 // pred_check_branch
      %34 = sbr.rel (0) target = $region9
    $region8: #{tpu_custom_call.1} parent=1 // pred_region
      %36 = vsyncadd [#allocation9], 0
      %s37 = sshll.u32 %s1, 4
      %s38 = int_to_ptr.hbm [resolvable:$true] %s37
      %s39 = sshll.u32 [#allocation8], 4
      %s40 = int_to_ptr.vmem [resolvable:$true] %s39
      %45 = dma.hbm_to_vmem [thread:$0]  %s38, 4096, %s40, [#allocation9], 256, 256, 16
    $region9: #{tpu_custom_call.1} parent=1 // pred_fallthru
      _
    // Predicated region
    $region10: #{tpu_custom_call.1} parent=1 // pred_check
      _
    $region11: #{tpu_custom_call.1} parent=1 // pred_check_branch
      %47 = sbr.rel (0) target = $region13
    $region12: #{tpu_custom_call.1} parent=1 // pred_region
      %49 = vsyncadd [#allocation9], 0
      %s50 = sshll.u32 %s2, 4
      %s51 = int_to_ptr.hbm [resolvable:$true] %s50
      %s52 = sshll.u32 [#allocation10], 4
      %s53 = int_to_ptr.vmem [resolvable:$true] %s52
      %58 = dma.hbm_to_vmem [thread:$0]  %s51, 4096, %s53, [#allocation9], 256, 256, 16
    $region13: #{tpu_custom_call.1} parent=1 // pred_fallthru
      _
    // Predicated region
    $region14: #{tpu_custom_call.1} parent=1 // pred_check
      _
    $region15: #{tpu_custom_call.1} parent=1 // pred_check_branch
      %60 = sbr.rel (0) target = $region17
    $region16: #{tpu_custom_call.1} parent=1 // pred_region
      %62 = vsyncadd [#allocation12], 0
      %s64 = sshll.u32 %s3, 4
      %s65 = int_to_ptr.hbm [resolvable:$true] %s64
      %s66 = sshll.u32 [#allocation11], 4
      %s67 = int_to_ptr.vmem [resolvable:$true] %s66
      %69 = dma.hbm_to_vmem [thread:$0]  %s65, 64, %s67, [#allocation12]
    $region17: #{tpu_custom_call.1} parent=1 // pred_fallthru
      _
    // Predicated region
    $region18: #{tpu_custom_call.1} parent=1 // pred_check
      _
    $region19: #{tpu_custom_call.1} parent=1 // pred_check_branch
      %71 = sbr.rel (0) target = $region21
    $region20: #{tpu_custom_call.1} parent=1 // pred_region
      %73 = vsyncadd [#allocation12], 0
      %s75 = sshll.u32 %s4, 4
      %s76 = int_to_ptr.hbm [resolvable:$true] %s75
      %s77 = sshll.u32 [#allocation13], 4
      %s78 = int_to_ptr.vmem [resolvable:$true] %s77
      %80 = dma.hbm_to_vmem [thread:$0]  %s76, 128, %s78, [#allocation12]
    $region21: #{tpu_custom_call.1} parent=1 // pred_fallthru
      _
    // Predicated region
    $region22: #{tpu_custom_call.1} parent=1 // pred_check
      _
    $region23: #{tpu_custom_call.1} parent=1 // pred_check_branch
      %82 = sbr.rel (0) target = $region25
    $region24: #{tpu_custom_call.1} parent=1 // pred_region
      %84 = vsyncadd [#allocation15], 0
      %s86 = sshll.u32 %s5, 4
      %s87 = int_to_ptr.hbm [resolvable:$true] %s86
      %s88 = sshll.u32 [#allocation14], 4
      %s89 = int_to_ptr.vmem [resolvable:$true] %s88
      %91 = dma.hbm_to_vmem [thread:$0]  %s87, 128, %s89, [#allocation15]
    $region25: #{tpu_custom_call.1} parent=1 // pred_fallthru
      _
    // Predicated region
    $region26: #{tpu_custom_call.1} parent=1 // pred_check
      _
    $region27: #{tpu_custom_call.1} parent=1 // pred_check_branch
      %93 = sbr.rel (0) target = $region29
    $region28: #{tpu_custom_call.1} parent=1 // pred_region
      %95 = dma.done [#allocation6], 512
    $region29: #{tpu_custom_call.1} parent=1 // pred_fallthru
      _
    // Predicated region
    $region30: #{tpu_custom_call.1} parent=1 // pred_check
      _
    $region31: #{tpu_custom_call.1} parent=1 // pred_check_branch
      %97 = sbr.rel (0) target = $region33
    $region32: #{tpu_custom_call.1} parent=1 // pred_region
      %99 = dma.done [#allocation9], 4096
    $region33: #{tpu_custom_call.1} parent=1 // pred_fallthru
      _
    // Predicated region
    $region34: #{tpu_custom_call.1} parent=1 // pred_check
      _
    $region35: #{tpu_custom_call.1} parent=1 // pred_check_branch
      %101 = sbr.rel (0) target = $region37
    $region36: #{tpu_custom_call.1} parent=1 // pred_region
      %103 = dma.done [#allocation9], 4096
    $region37: #{tpu_custom_call.1} parent=1 // pred_fallthru
      _
    // Predicated region
    $region38: #{tpu_custom_call.1} parent=1 // pred_check
      _
    $region39: #{tpu_custom_call.1} parent=1 // pred_check_branch
      %105 = sbr.rel (0) target = $region41
    $region40: #{tpu_custom_call.1} parent=1 // pred_region
      %107 = dma.done [#allocation12], 64
    $region41: #{tpu_custom_call.1} parent=1 // pred_fallthru
      _
    // Predicated region
    $region42: #{tpu_custom_call.1} parent=1 // pred_check
      _
    $region43: #{tpu_custom_call.1} parent=1 // pred_check_branch
      %109 = sbr.rel (0) target = $region45
    $region44: #{tpu_custom_call.1} parent=1 // pred_region
      %111 = dma.done [#allocation12], 128
    $region45: #{tpu_custom_call.1} parent=1 // pred_fallthru
      _
    // Predicated region
    $region46: #{tpu_custom_call.1} parent=1 // pred_check
      _
    $region47: #{tpu_custom_call.1} parent=1 // pred_check_branch
      %113 = sbr.rel (0) target = $region49
    $region48: #{tpu_custom_call.1} parent=1 // pred_region
      %115 = dma.done [#allocation15], 128
    $region49: #{tpu_custom_call.1} parent=1 // pred_fallthru
      _
    %p116 = scmp.eq.s32.totalorder 0, 0
    // Predicated region
    $region50: #{tpu_custom_call.1} parent=1 // pred_check
      %p117 = pneg %p116
    $region51: #{tpu_custom_call.1} parent=1 // pred_check_branch
      %119 = sbr.rel (%p117) target = $region53
    $region52: #{tpu_custom_call.1} parent=1 // pred_region
      %v120 = vld [vmem:[#allocation13] sm:$0xff]
      %121 = vst [vmem:[#allocation2] sm:$0xff] %v120
      %v122 = vld [vmem:[#allocation14] sm:$0xff]
      %123 = vst [vmem:[#allocation3] sm:$0xff] %v122
    $region53: #{tpu_custom_call.1} parent=1 // pred_fallthru
      _
    %v124 = vld [vmem:[#allocation5] sm:$0xf]
    %v125 = vld [vmem:[#allocation5 + $0x4] sm:$0xf]
    %v126 = vld [vmem:[#allocation5 + $0x8] sm:$0xf]
    %v127 = vld [vmem:[#allocation5 + $0xc] sm:$0xf]
    %v128 = vld [vmem:[#allocation5 + $0x10] sm:$0xf]
    %v129 = vld [vmem:[#allocation5 + $0x14] sm:$0xf]
    %v130 = vld [vmem:[#allocation5 + $0x18] sm:$0xf]
    %v131 = vld [vmem:[#allocation5 + $0x1c] sm:$0xf]
    %v132 = vld [vmem:[#allocation8] sm:$0xff]
    %v133 = vld [vmem:[#allocation8 + $0x8] sm:$0xff]
    %v134 = vld [vmem:[#allocation8 + $0x10] sm:$0xff]
    %v135 = vld [vmem:[#allocation8 + $0x18] sm:$0xff]
    %v136 = vld [vmem:[#allocation8 + $0x20] sm:$0xff]
    %v137 = vld [vmem:[#allocation8 + $0x28] sm:$0xff]
    %v138 = vld [vmem:[#allocation8 + $0x30] sm:$0xff]
    %v139 = vld [vmem:[#allocation8 + $0x38] sm:$0xff]
    %v140 = vld [vmem:[#allocation8 + $0x40] sm:$0xff]
    %v141 = vld [vmem:[#allocation8 + $0x48] sm:$0xff]
    %v142 = vld [vmem:[#allocation8 + $0x50] sm:$0xff]
    %v143 = vld [vmem:[#allocation8 + $0x58] sm:$0xff]
    %v144 = vld [vmem:[#allocation8 + $0x60] sm:$0xff]
    %v145 = vld [vmem:[#allocation8 + $0x68] sm:$0xff]
    %v146 = vld [vmem:[#allocation8 + $0x70] sm:$0xff]
    %v147 = vld [vmem:[#allocation8 + $0x78] sm:$0xff]
    %v148 = vld [vmem:[#allocation8 + $0x80] sm:$0xff]
    %v149 = vld [vmem:[#allocation8 + $0x88] sm:$0xff]
    %v150 = vld [vmem:[#allocation8 + $0x90] sm:$0xff]
    %v151 = vld [vmem:[#allocation8 + $0x98] sm:$0xff]
    %v152 = vld [vmem:[#allocation8 + $0xa0] sm:$0xff]
    %v153 = vld [vmem:[#allocation8 + $0xa8] sm:$0xff]
    %v154 = vld [vmem:[#allocation8 + $0xb0] sm:$0xff]
    %v155 = vld [vmem:[#allocation8 + $0xb8] sm:$0xff]
    %v156 = vld [vmem:[#allocation8 + $0xc0] sm:$0xff]
    %v157 = vld [vmem:[#allocation8 + $0xc8] sm:$0xff]
    %v158 = vld [vmem:[#allocation8 + $0xd0] sm:$0xff]
    %v159 = vld [vmem:[#allocation8 + $0xd8] sm:$0xff]
    %v160 = vld [vmem:[#allocation8 + $0xe0] sm:$0xff]
    %v161 = vld [vmem:[#allocation8 + $0xe8] sm:$0xff]
    %v162 = vld [vmem:[#allocation8 + $0xf0] sm:$0xff]
    %v163 = vld [vmem:[#allocation8 + $0xf8] sm:$0xff]
    %v164 = vld [vmem:[#allocation11] sm:$0xf]
    %v166 = vperm.slane %v164, 0
    %v167 = vperm.slane %v164, 1
    %v168 = vperm.slane %v164, 2
    %v169 = vperm.slane %v164, 3
    %v182 = vunpack.c.l.b16 %v124
    %v183 = vunpack.c.l.b16 %v125
    %v184 = vunpack.c.l.b16 %v126
    %v185 = vunpack.c.l.b16 %v127
    %v186 = vunpack.c.l.b16 %v128
    %v187 = vunpack.c.l.b16 %v129
    %v188 = vunpack.c.l.b16 %v130
    %v189 = vunpack.c.l.b16 %v131
    %v190 = vpack.c.b16 %v183, %v182
    %v191 = vpack.c.b16 %v185, %v184
    %v192 = vpack.c.b16 %v187, %v186
    %v193 = vpack.c.b16 %v189, %v188
    %v230 = vunpack.c.l.b16 %v132
    %v231 = vunpack.c.h.b16 %v132
    %v232 = vunpack.c.l.b16 %v133
    %v233 = vunpack.c.h.b16 %v133
    %v234 = vunpack.c.l.b16 %v134
    %v235 = vunpack.c.h.b16 %v134
    %v236 = vunpack.c.l.b16 %v135
    %v237 = vunpack.c.h.b16 %v135
    %v238 = vunpack.c.l.b16 %v136
    %v239 = vunpack.c.h.b16 %v136
    %v240 = vunpack.c.l.b16 %v137
    %v241 = vunpack.c.h.b16 %v137
    %v242 = vunpack.c.l.b16 %v138
    %v243 = vunpack.c.h.b16 %v138
    %v244 = vunpack.c.l.b16 %v139
    %v245 = vunpack.c.h.b16 %v139
    %v246 = vunpack.c.l.b16 %v140
    %v247 = vunpack.c.h.b16 %v140
    %v248 = vunpack.c.l.b16 %v141
    %v249 = vunpack.c.h.b16 %v141
    %v250 = vunpack.c.l.b16 %v142
    %v251 = vunpack.c.h.b16 %v142
    %v252 = vunpack.c.l.b16 %v143
    %v253 = vunpack.c.h.b16 %v143
    %v254 = vunpack.c.l.b16 %v144
    %v255 = vunpack.c.h.b16 %v144
    %v256 = vunpack.c.l.b16 %v145
    %v257 = vunpack.c.h.b16 %v145
    %v258 = vunpack.c.l.b16 %v146
    %v259 = vunpack.c.h.b16 %v146
    %v260 = vunpack.c.l.b16 %v147
    %v261 = vunpack.c.h.b16 %v147
    %v262 = vunpack.c.l.b16 %v148
    %v263 = vunpack.c.h.b16 %v148
    %v264 = vunpack.c.l.b16 %v149
    %v265 = vunpack.c.h.b16 %v149
    %v266 = vunpack.c.l.b16 %v150
    %v267 = vunpack.c.h.b16 %v150
    %v268 = vunpack.c.l.b16 %v151
    %v269 = vunpack.c.h.b16 %v151
    %v270 = vunpack.c.l.b16 %v152
    %v271 = vunpack.c.h.b16 %v152
    %v272 = vunpack.c.l.b16 %v153
    %v273 = vunpack.c.h.b16 %v153
    %v274 = vunpack.c.l.b16 %v154
    %v275 = vunpack.c.h.b16 %v154
    %v276 = vunpack.c.l.b16 %v155
    %v277 = vunpack.c.h.b16 %v155
    %v278 = vunpack.c.l.b16 %v156
    %v279 = vunpack.c.h.b16 %v156
    %v280 = vunpack.c.l.b16 %v157
    %v281 = vunpack.c.h.b16 %v157
    %v282 = vunpack.c.l.b16 %v158
    %v283 = vunpack.c.h.b16 %v158
    %v284 = vunpack.c.l.b16 %v159
    %v285 = vunpack.c.h.b16 %v159
    %v286 = vunpack.c.l.b16 %v160
    %v287 = vunpack.c.h.b16 %v160
    %v288 = vunpack.c.l.b16 %v161
    %v289 = vunpack.c.h.b16 %v161
    %v290 = vunpack.c.l.b16 %v162
    %v291 = vunpack.c.h.b16 %v162
    %v292 = vunpack.c.l.b16 %v163
    %v293 = vunpack.c.h.b16 %v163
    %v294 = vpack.c.b16 %v234, %v230
    %v295 = vpack.c.b16 %v235, %v231
    %v296 = vpack.c.b16 %v236, %v232
    %v297 = vpack.c.b16 %v237, %v233
    %v298 = vpack.c.b16 %v242, %v238
    %v299 = vpack.c.b16 %v243, %v239
    %v300 = vpack.c.b16 %v244, %v240
    %v301 = vpack.c.b16 %v245, %v241
    %v302 = vpack.c.b16 %v250, %v246
    %v303 = vpack.c.b16 %v251, %v247
    %v304 = vpack.c.b16 %v252, %v248
    %v305 = vpack.c.b16 %v253, %v249
    %v306 = vpack.c.b16 %v258, %v254
    %v307 = vpack.c.b16 %v259, %v255
    %v308 = vpack.c.b16 %v260, %v256
    %v309 = vpack.c.b16 %v261, %v257
    %v310 = vpack.c.b16 %v266, %v262
    %v311 = vpack.c.b16 %v267, %v263
    %v312 = vpack.c.b16 %v268, %v264
    %v313 = vpack.c.b16 %v269, %v265
    %v314 = vpack.c.b16 %v274, %v270
    %v315 = vpack.c.b16 %v275, %v271
    %v316 = vpack.c.b16 %v276, %v272
    %v317 = vpack.c.b16 %v277, %v273
    %v318 = vpack.c.b16 %v282, %v278
    %v319 = vpack.c.b16 %v283, %v279
    %v320 = vpack.c.b16 %v284, %v280
    %v321 = vpack.c.b16 %v285, %v281
    %v322 = vpack.c.b16 %v290, %v286
    %v323 = vpack.c.b16 %v291, %v287
    %v324 = vpack.c.b16 %v292, %v288
    %v325 = vpack.c.b16 %v293, %v289
    %358 = vmatpush.bf16.msra.mxu0 %v322
    %359 = vmatpush.bf16.msra.mxu0 %v318
    %360 = vmatpush.bf16.msra.mxu0 %v314
    %361 = vmatpush.bf16.msra.mxu0 %v310
    %362 = vmatpush.bf16.msra.mxu0 %v306
    %363 = vmatpush.bf16.msra.mxu0 %v302
    %364 = vmatpush.bf16.msra.mxu0 %v298
    %365 = vmatpush.bf16.msra.mxu0 %v294
    %366 = vmatmul.bf16.gmra.mxu0 %v190
    %v367 = vpop.f32.mrf.mxu0
    %v368 = vadd.f32 %v166, %v367
    %v369 = vpop.f32.mrf.mxu0
    %v370 = vadd.f32 %v166, %v369
    %371 = vmatmul.bf16.gmra.mxu0 %v191
    %v372 = vpop.f32.mrf.mxu0
    %v373 = vadd.f32 %v166, %v372
    %v374 = vpop.f32.mrf.mxu0
    %v375 = vadd.f32 %v166, %v374
    %376 = vmatmul.bf16.gmra.mxu0 %v192
    %v377 = vpop.f32.mrf.mxu0
    %v378 = vadd.f32 %v166, %v377
    %v379 = vpop.f32.mrf.mxu0
    %v380 = vadd.f32 %v166, %v379
    %381 = vmatmul.bf16.gmra.mxu0 %v193
    %v382 = vpop.f32.mrf.mxu0
    %v383 = vadd.f32 %v166, %v382
    %v384 = vpop.f32.mrf.mxu0
    %v385 = vadd.f32 %v166, %v384
    %386 = vdwg.mxu0
    %387 = vmatpush.bf16.msra.mxu0 %v323
    %388 = vmatpush.bf16.msra.mxu0 %v319
    %389 = vmatpush.bf16.msra.mxu0 %v315
    %390 = vmatpush.bf16.msra.mxu0 %v311
    %391 = vmatpush.bf16.msra.mxu0 %v307
    %392 = vmatpush.bf16.msra.mxu0 %v303
    %393 = vmatpush.bf16.msra.mxu0 %v299
    %394 = vmatpush.bf16.msra.mxu0 %v295
    %395 = vmatmul.bf16.gmra.mxu0 %v190
    %v396 = vpop.f32.mrf.mxu0
    %v397 = vadd.f32 %v167, %v396
    %v398 = vpop.f32.mrf.mxu0
    %v399 = vadd.f32 %v167, %v398
    %400 = vmatmul.bf16.gmra.mxu0 %v191
    %v401 = vpop.f32.mrf.mxu0
    %v402 = vadd.f32 %v167, %v401
    %v403 = vpop.f32.mrf.mxu0
    %v404 = vadd.f32 %v167, %v403
    %405 = vmatmul.bf16.gmra.mxu0 %v192
    %v406 = vpop.f32.mrf.mxu0
    %v407 = vadd.f32 %v167, %v406
    %v408 = vpop.f32.mrf.mxu0
    %v409 = vadd.f32 %v167, %v408
    %410 = vmatmul.bf16.gmra.mxu0 %v193
    %v411 = vpop.f32.mrf.mxu0
    %v412 = vadd.f32 %v167, %v411
    %v413 = vpop.f32.mrf.mxu0
    %v414 = vadd.f32 %v167, %v413
    %415 = vdwg.mxu0
    %416 = vmatpush.bf16.msra.mxu0 %v324
    %417 = vmatpush.bf16.msra.mxu0 %v320
    %418 = vmatpush.bf16.msra.mxu0 %v316
    %419 = vmatpush.bf16.msra.mxu0 %v312
    %420 = vmatpush.bf16.msra.mxu0 %v308
    %421 = vmatpush.bf16.msra.mxu0 %v304
    %422 = vmatpush.bf16.msra.mxu0 %v300
    %423 = vmatpush.bf16.msra.mxu0 %v296
    %424 = vmatmul.bf16.gmra.mxu0 %v190
    %v425 = vpop.f32.mrf.mxu0
    %v426 = vadd.f32 %v168, %v425
    %v427 = vpop.f32.mrf.mxu0
    %v428 = vadd.f32 %v168, %v427
    %429 = vmatmul.bf16.gmra.mxu0 %v191
    %v430 = vpop.f32.mrf.mxu0
    %v431 = vadd.f32 %v168, %v430
    %v432 = vpop.f32.mrf.mxu0
    %v433 = vadd.f32 %v168, %v432
    %434 = vmatmul.bf16.gmra.mxu0 %v192
    %v435 = vpop.f32.mrf.mxu0
    %v436 = vadd.f32 %v168, %v435
    %v437 = vpop.f32.mrf.mxu0
    %v438 = vadd.f32 %v168, %v437
    %439 = vmatmul.bf16.gmra.mxu0 %v193
    %v440 = vpop.f32.mrf.mxu0
    %v441 = vadd.f32 %v168, %v440
    %v442 = vpop.f32.mrf.mxu0
    %v443 = vadd.f32 %v168, %v442
    %444 = vdwg.mxu0
    %445 = vmatpush.bf16.msra.mxu0 %v325
    %446 = vmatpush.bf16.msra.mxu0 %v321
    %447 = vmatpush.bf16.msra.mxu0 %v317
    %448 = vmatpush.bf16.msra.mxu0 %v313
    %449 = vmatpush.bf16.msra.mxu0 %v309
    %450 = vmatpush.bf16.msra.mxu0 %v305
    %451 = vmatpush.bf16.msra.mxu0 %v301
    %452 = vmatpush.bf16.msra.mxu0 %v297
    %453 = vmatmul.bf16.gmra.mxu0 %v190
    %v454 = vpop.f32.mrf.mxu0
    %v455 = vadd.f32 %v169, %v454
    %v456 = vpop.f32.mrf.mxu0
    %v457 = vadd.f32 %v169, %v456
    %458 = vmatmul.bf16.gmra.mxu0 %v191
    %v459 = vpop.f32.mrf.mxu0
    %v460 = vadd.f32 %v169, %v459
    %v461 = vpop.f32.mrf.mxu0
    %v462 = vadd.f32 %v169, %v461
    %463 = vmatmul.bf16.gmra.mxu0 %v192
    %v464 = vpop.f32.mrf.mxu0
    %v465 = vadd.f32 %v169, %v464
    %v466 = vpop.f32.mrf.mxu0
    %v467 = vadd.f32 %v169, %v466
    %468 = vmatmul.bf16.gmra.mxu0 %v193
    %v469 = vpop.f32.mrf.mxu0
    %v470 = vadd.f32 %v169, %v469
    %v471 = vpop.f32.mrf.mxu0
    %v472 = vadd.f32 %v169, %v471
    %473 = vdwg.mxu0
    %474 = vst [vmem:[#allocation4] sm:$0xff] %v368
    %475 = vst [vmem:[#allocation4 + $0x8] sm:$0xff] %v397
    %476 = vst [vmem:[#allocation4 + $0x10] sm:$0xff] %v426
    %477 = vst [vmem:[#allocation4 + $0x18] sm:$0xff] %v455
    %478 = vst [vmem:[#allocation4 + $0x20] sm:$0xff] %v370
    %479 = vst [vmem:[#allocation4 + $0x28] sm:$0xff] %v399
    %480 = vst [vmem:[#allocation4 + $0x30] sm:$0xff] %v428
    %481 = vst [vmem:[#allocation4 + $0x38] sm:$0xff] %v457
    %482 = vst [vmem:[#allocation4 + $0x40] sm:$0xff] %v373
    %483 = vst [vmem:[#allocation4 + $0x48] sm:$0xff] %v402
    %484 = vst [vmem:[#allocation4 + $0x50] sm:$0xff] %v431
    %485 = vst [vmem:[#allocation4 + $0x58] sm:$0xff] %v460
    %486 = vst [vmem:[#allocation4 + $0x60] sm:$0xff] %v375
    %487 = vst [vmem:[#allocation4 + $0x68] sm:$0xff] %v404
    %488 = vst [vmem:[#allocation4 + $0x70] sm:$0xff] %v433
    %489 = vst [vmem:[#allocation4 + $0x78] sm:$0xff] %v462
    %490 = vst [vmem:[#allocation4 + $0x80] sm:$0xff] %v378
    %491 = vst [vmem:[#allocation4 + $0x88] sm:$0xff] %v407
    %492 = vst [vmem:[#allocation4 + $0x90] sm:$0xff] %v436
    %493 = vst [vmem:[#allocation4 + $0x98] sm:$0xff] %v465
    %494 = vst [vmem:[#allocation4 + $0xa0] sm:$0xff] %v380
    %495 = vst [vmem:[#allocation4 + $0xa8] sm:$0xff] %v409
    %496 = vst [vmem:[#allocation4 + $0xb0] sm:$0xff] %v438
    %497 = vst [vmem:[#allocation4 + $0xb8] sm:$0xff] %v467
    %498 = vst [vmem:[#allocation4 + $0xc0] sm:$0xff] %v383
    %499 = vst [vmem:[#allocation4 + $0xc8] sm:$0xff] %v412
    %500 = vst [vmem:[#allocation4 + $0xd0] sm:$0xff] %v441
    %501 = vst [vmem:[#allocation4 + $0xd8] sm:$0xff] %v470
    %502 = vst [vmem:[#allocation4 + $0xe0] sm:$0xff] %v385
    %503 = vst [vmem:[#allocation4 + $0xe8] sm:$0xff] %v414
    %504 = vst [vmem:[#allocation4 + $0xf0] sm:$0xff] %v443
    %505 = vst [vmem:[#allocation4 + $0xf8] sm:$0xff] %v472
    %v506 = vld [vmem:[#allocation10] sm:$0xff]
    %v507 = vld [vmem:[#allocation10 + $0x8] sm:$0xff]
    %v508 = vld [vmem:[#allocation10 + $0x10] sm:$0xff]
    %v509 = vld [vmem:[#allocation10 + $0x18] sm:$0xff]
    %v510 = vld [vmem:[#allocation10 + $0x20] sm:$0xff]
    %v511 = vld [vmem:[#allocation10 + $0x28] sm:$0xff]
    %v512 = vld [vmem:[#allocation10 + $0x30] sm:$0xff]
    %v513 = vld [vmem:[#allocation10 + $0x38] sm:$0xff]
    %v514 = vld [vmem:[#allocation10 + $0x40] sm:$0xff]
    %v515 = vld [vmem:[#allocation10 + $0x48] sm:$0xff]
    %v516 = vld [vmem:[#allocation10 + $0x50] sm:$0xff]
    %v517 = vld [vmem:[#allocation10 + $0x58] sm:$0xff]
    %v518 = vld [vmem:[#allocation10 + $0x60] sm:$0xff]
    %v519 = vld [vmem:[#allocation10 + $0x68] sm:$0xff]
    %v520 = vld [vmem:[#allocation10 + $0x70] sm:$0xff]
    %v521 = vld [vmem:[#allocation10 + $0x78] sm:$0xff]
    %v522 = vld [vmem:[#allocation10 + $0x80] sm:$0xff]
    %v523 = vld [vmem:[#allocation10 + $0x88] sm:$0xff]
    %v524 = vld [vmem:[#allocation10 + $0x90] sm:$0xff]
    %v525 = vld [vmem:[#allocation10 + $0x98] sm:$0xff]
    %v526 = vld [vmem:[#allocation10 + $0xa0] sm:$0xff]
    %v527 = vld [vmem:[#allocation10 + $0xa8] sm:$0xff]
    %v528 = vld [vmem:[#allocation10 + $0xb0] sm:$0xff]
    %v529 = vld [vmem:[#allocation10 + $0xb8] sm:$0xff]
    %v530 = vld [vmem:[#allocation10 + $0xc0] sm:$0xff]
    %v531 = vld [vmem:[#allocation10 + $0xc8] sm:$0xff]
    %v532 = vld [vmem:[#allocation10 + $0xd0] sm:$0xff]
    %v533 = vld [vmem:[#allocation10 + $0xd8] sm:$0xff]
    %v534 = vld [vmem:[#allocation10 + $0xe0] sm:$0xff]
    %v535 = vld [vmem:[#allocation10 + $0xe8] sm:$0xff]
    %v536 = vld [vmem:[#allocation10 + $0xf0] sm:$0xff]
    %v537 = vld [vmem:[#allocation10 + $0xf8] sm:$0xff]
    %v538 = vld [vmem:[#allocation2] sm:$0xff]
    %v539 = vld [vmem:[#allocation3] sm:$0xff]
    %s540 = smul.u32 0, 4
    %s541 = smul.addr %s540, 8
    %s542 = scalar_lea.vmem [#allocation4], %s541
    %v543 = vld [vmem:[%s542] sm:$0xff]
    %v544 = vld [vmem:[%s542 + $0x8] sm:$0xff]
    %v545 = vld [vmem:[%s542 + $0x10] sm:$0xff]
    %v546 = vld [vmem:[%s542 + $0x18] sm:$0xff]
    %v547 = vpack.c.bf16 %v538, %v538
    %v580 = vunpack.c.l.b16 %v506
    %v581 = vunpack.c.h.b16 %v506
    %v582 = vunpack.c.l.b16 %v507
    %v583 = vunpack.c.h.b16 %v507
    %v584 = vunpack.c.l.b16 %v508
    %v585 = vunpack.c.h.b16 %v508
    %v586 = vunpack.c.l.b16 %v509
    %v587 = vunpack.c.h.b16 %v509
    %v588 = vunpack.c.l.b16 %v510
    %v589 = vunpack.c.h.b16 %v510
    %v590 = vunpack.c.l.b16 %v511
    %v591 = vunpack.c.h.b16 %v511
    %v592 = vunpack.c.l.b16 %v512
    %v593 = vunpack.c.h.b16 %v512
    %v594 = vunpack.c.l.b16 %v513
    %v595 = vunpack.c.h.b16 %v513
    %v596 = vunpack.c.l.b16 %v514
    %v597 = vunpack.c.h.b16 %v514
    %v598 = vunpack.c.l.b16 %v515
    %v599 = vunpack.c.h.b16 %v515
    %v600 = vunpack.c.l.b16 %v516
    %v601 = vunpack.c.h.b16 %v516
    %v602 = vunpack.c.l.b16 %v517
    %v603 = vunpack.c.h.b16 %v517
    %v604 = vunpack.c.l.b16 %v518
    %v605 = vunpack.c.h.b16 %v518
    %v606 = vunpack.c.l.b16 %v519
    %v607 = vunpack.c.h.b16 %v519
    %v608 = vunpack.c.l.b16 %v520
    %v609 = vunpack.c.h.b16 %v520
    %v610 = vunpack.c.l.b16 %v521
    %v611 = vunpack.c.h.b16 %v521
    %v612 = vunpack.c.l.b16 %v522
    %v613 = vunpack.c.h.b16 %v522
    %v614 = vunpack.c.l.b16 %v523
    %v615 = vunpack.c.h.b16 %v523
    %v616 = vunpack.c.l.b16 %v524
    %v617 = vunpack.c.h.b16 %v524
    %v618 = vunpack.c.l.b16 %v525
    %v619 = vunpack.c.h.b16 %v525
    %v620 = vunpack.c.l.b16 %v526
    %v621 = vunpack.c.h.b16 %v526
    %v622 = vunpack.c.l.b16 %v527
    %v623 = vunpack.c.h.b16 %v527
    %v624 = vunpack.c.l.b16 %v528
    %v625 = vunpack.c.h.b16 %v528
    %v626 = vunpack.c.l.b16 %v529
    %v627 = vunpack.c.h.b16 %v529
    %v628 = vunpack.c.l.b16 %v530
    %v629 = vunpack.c.h.b16 %v530
    %v630 = vunpack.c.l.b16 %v531
    %v631 = vunpack.c.h.b16 %v531
    %v632 = vunpack.c.l.b16 %v532
    %v633 = vunpack.c.h.b16 %v532
    %v634 = vunpack.c.l.b16 %v533
    %v635 = vunpack.c.h.b16 %v533
    %v636 = vunpack.c.l.b16 %v534
    %v637 = vunpack.c.h.b16 %v534
    %v638 = vunpack.c.l.b16 %v535
    %v639 = vunpack.c.h.b16 %v535
    %v640 = vunpack.c.l.b16 %v536
    %v641 = vunpack.c.h.b16 %v536
    %v642 = vunpack.c.l.b16 %v537
    %v643 = vunpack.c.h.b16 %v537
    %v644 = vpack.c.b16 %v584, %v580
    %v645 = vpack.c.b16 %v585, %v581
    %v646 = vpack.c.b16 %v586, %v582
    %v647 = vpack.c.b16 %v587, %v583
    %v648 = vpack.c.b16 %v592, %v588
    %v649 = vpack.c.b16 %v593, %v589
    %v650 = vpack.c.b16 %v594, %v590
    %v651 = vpack.c.b16 %v595, %v591
    %v652 = vpack.c.b16 %v600, %v596
    %v653 = vpack.c.b16 %v601, %v597
    %v654 = vpack.c.b16 %v602, %v598
    %v655 = vpack.c.b16 %v603, %v599
    %v656 = vpack.c.b16 %v608, %v604
    %v657 = vpack.c.b16 %v609, %v605
    %v658 = vpack.c.b16 %v610, %v606
    %v659 = vpack.c.b16 %v611, %v607
    %v660 = vpack.c.b16 %v616, %v612
    %v661 = vpack.c.b16 %v617, %v613
    %v662 = vpack.c.b16 %v618, %v614
    %v663 = vpack.c.b16 %v619, %v615
    %v664 = vpack.c.b16 %v624, %v620
    %v665 = vpack.c.b16 %v625, %v621
    %v666 = vpack.c.b16 %v626, %v622
    %v667 = vpack.c.b16 %v627, %v623
    %v668 = vpack.c.b16 %v632, %v628
    %v669 = vpack.c.b16 %v633, %v629
    %v670 = vpack.c.b16 %v634, %v630
    %v671 = vpack.c.b16 %v635, %v631
    %v672 = vpack.c.b16 %v640, %v636
    %v673 = vpack.c.b16 %v641, %v637
    %v674 = vpack.c.b16 %v642, %v638
    %v675 = vpack.c.b16 %v643, %v639
    %708 = vmatpush.bf16.msra.mxu0 %v672
    %709 = vmatpush.bf16.msra.mxu0 %v668
    %710 = vmatpush.bf16.msra.mxu0 %v664
    %711 = vmatpush.bf16.msra.mxu0 %v660
    %712 = vmatpush.bf16.msra.mxu0 %v656
    %713 = vmatpush.bf16.msra.mxu0 %v652
    %714 = vmatpush.bf16.msra.mxu0 %v648
    %715 = vmatpush.bf16.msra.mxu0 %v644
    %716 = vmatmul.bf16.gmra.mxu0 %v547
    %v717 = vpop.f32.mrf.mxu0
    %v718 = vadd.f32 0.0, %v717
    %v719 = vpop.f32.mrf.mxu0
    %720 = vdwg.mxu0
    %721 = vmatpush.bf16.msra.mxu0 %v673
    %722 = vmatpush.bf16.msra.mxu0 %v669
    %723 = vmatpush.bf16.msra.mxu0 %v665
    %724 = vmatpush.bf16.msra.mxu0 %v661
    %725 = vmatpush.bf16.msra.mxu0 %v657
    %726 = vmatpush.bf16.msra.mxu0 %v653
    %727 = vmatpush.bf16.msra.mxu0 %v649
    %728 = vmatpush.bf16.msra.mxu0 %v645
    %729 = vmatmul.bf16.gmra.mxu0 %v547
    %v730 = vpop.f32.mrf.mxu0
    %v731 = vadd.f32 0.0, %v730
    %v732 = vpop.f32.mrf.mxu0
    %733 = vdwg.mxu0
    %734 = vmatpush.bf16.msra.mxu0 %v674
    %735 = vmatpush.bf16.msra.mxu0 %v670
    %736 = vmatpush.bf16.msra.mxu0 %v666
    %737 = vmatpush.bf16.msra.mxu0 %v662
    %738 = vmatpush.bf16.msra.mxu0 %v658
    %739 = vmatpush.bf16.msra.mxu0 %v654
    %740 = vmatpush.bf16.msra.mxu0 %v650
    %741 = vmatpush.bf16.msra.mxu0 %v646
    %742 = vmatmul.bf16.gmra.mxu0 %v547
    %v743 = vpop.f32.mrf.mxu0
    %v744 = vadd.f32 0.0, %v743
    %v745 = vpop.f32.mrf.mxu0
    %746 = vdwg.mxu0
    %747 = vmatpush.bf16.msra.mxu0 %v675
    %748 = vmatpush.bf16.msra.mxu0 %v671
    %749 = vmatpush.bf16.msra.mxu0 %v667
    %750 = vmatpush.bf16.msra.mxu0 %v663
    %751 = vmatpush.bf16.msra.mxu0 %v659
    %752 = vmatpush.bf16.msra.mxu0 %v655
    %753 = vmatpush.bf16.msra.mxu0 %v651
    %754 = vmatpush.bf16.msra.mxu0 %v647
    %755 = vmatmul.bf16.gmra.mxu0 %v547
    %v756 = vpop.f32.mrf.mxu0
    %v757 = vadd.f32 0.0, %v756
    %v758 = vpop.f32.mrf.mxu0
    %759 = vdwg.mxu0
    %v760 = vadd.f32 %v543, %v718
    %v761 = vadd.f32 %v544, %v731
    %v762 = vadd.f32 %v545, %v744
    %v763 = vadd.f32 %v546, %v757
    %v764 = vmul.f32 %v760, 0.2
    %v765 = vmul.f32 %v761, 0.2
    %v766 = vmul.f32 %v762, 0.2
    %v767 = vadd.f32 %v764, 0.5
    %v768 = vadd.f32 %v765, 0.5
    %v769 = vadd.f32 %v766, 0.5
    %v770 = vmax.f32 %v767, 0.0
    %v771 = vmax.f32 %v768, 0.0
    %v772 = vmax.f32 %v769, 0.0
    %v773 = vmin.f32 %v770, 1.0
    %v774 = vmin.f32 %v771, 1.0
    %v775 = vmin.f32 %v772, 1.0
    %v776 = vtanh.pop %v763
    %v777 = vmul.f32 %v774, %v539
    %v778 = vmul.f32 %v773, %v776
    %v779 = vadd.f32 %v777, %v778
    %v780 = vtanh.pop %v779
    %v781 = vmul.f32 %v775, %v780
    %782 = vst [vmem:[#allocation16] sm:$0xff] %v781
    %s783 = smul.u32 1, 4
    %s784 = smul.addr %s783, 8
    %s785 = scalar_lea.vmem [#allocation4], %s784
    %v786 = vld [vmem:[%s785] sm:$0xff]
    %v787 = vld [vmem:[%s785 + $0x8] sm:$0xff]
    %v788 = vld [vmem:[%s785 + $0x10] sm:$0xff]
    %v789 = vld [vmem:[%s785 + $0x18] sm:$0xff]
    %v790 = vpack.c.bf16 %v781, %v781
    %791 = vmatpush.bf16.msra.mxu0 %v672
    %792 = vmatpush.bf16.msra.mxu0 %v668
    %793 = vmatpush.bf16.msra.mxu0 %v664
    %794 = vmatpush.bf16.msra.mxu0 %v660
    %795 = vmatpush.bf16.msra.mxu0 %v656
    %796 = vmatpush.bf16.msra.mxu0 %v652
    %797 = vmatpush.bf16.msra.mxu0 %v648
    %798 = vmatpush.bf16.msra.mxu0 %v644
    %799 = vmatmul.bf16.gmra.mxu0 %v790
    %v800 = vpop.f32.mrf.mxu0
    %v801 = vadd.f32 0.0, %v800
    %v802 = vpop.f32.mrf.mxu0
    %803 = vdwg.mxu0
    %804 = vmatpush.bf16.msra.mxu0 %v673
    %805 = vmatpush.bf16.msra.mxu0 %v669
    %806 = vmatpush.bf16.msra.mxu0 %v665
    %807 = vmatpush.bf16.msra.mxu0 %v661
    %808 = vmatpush.bf16.msra.mxu0 %v657
    %809 = vmatpush.bf16.msra.mxu0 %v653
    %810 = vmatpush.bf16.msra.mxu0 %v649
    %811 = vmatpush.bf16.msra.mxu0 %v645
    %812 = vmatmul.bf16.gmra.mxu0 %v790
    %v813 = vpop.f32.mrf.mxu0
    %v814 = vadd.f32 0.0, %v813
    %v815 = vpop.f32.mrf.mxu0
    %816 = vdwg.mxu0
    %817 = vmatpush.bf16.msra.mxu0 %v674
    %818 = vmatpush.bf16.msra.mxu0 %v670
    %819 = vmatpush.bf16.msra.mxu0 %v666
    %820 = vmatpush.bf16.msra.mxu0 %v662
    %821 = vmatpush.bf16.msra.mxu0 %v658
    %822 = vmatpush.bf16.msra.mxu0 %v654
    %823 = vmatpush.bf16.msra.mxu0 %v650
    %824 = vmatpush.bf16.msra.mxu0 %v646
    %825 = vmatmul.bf16.gmra.mxu0 %v790
    %v826 = vpop.f32.mrf.mxu0
    %v827 = vadd.f32 0.0, %v826
    %v828 = vpop.f32.mrf.mxu0
    %829 = vdwg.mxu0
    %830 = vmatpush.bf16.msra.mxu0 %v675
    %831 = vmatpush.bf16.msra.mxu0 %v671
    %832 = vmatpush.bf16.msra.mxu0 %v667
    %833 = vmatpush.bf16.msra.mxu0 %v663
    %834 = vmatpush.bf16.msra.mxu0 %v659
    %835 = vmatpush.bf16.msra.mxu0 %v655
    %836 = vmatpush.bf16.msra.mxu0 %v651
    %837 = vmatpush.bf16.msra.mxu0 %v647
    %838 = vmatmul.bf16.gmra.mxu0 %v790
    %v839 = vpop.f32.mrf.mxu0
    %v840 = vadd.f32 0.0, %v839
    %v841 = vpop.f32.mrf.mxu0
    %842 = vdwg.mxu0
    %v843 = vadd.f32 %v786, %v801
    %v844 = vadd.f32 %v787, %v814
    %v845 = vadd.f32 %v788, %v827
    %v846 = vadd.f32 %v789, %v840
    %v847 = vmul.f32 %v843, 0.2
    %v848 = vmul.f32 %v844, 0.2
    %v849 = vmul.f32 %v845, 0.2
    %v850 = vadd.f32 %v847, 0.5
    %v851 = vadd.f32 %v848, 0.5
    %v852 = vadd.f32 %v849, 0.5
    %v853 = vmax.f32 %v850, 0.0
    %v854 = vmax.f32 %v851, 0.0
    %v855 = vmax.f32 %v852, 0.0
    %v856 = vmin.f32 %v853, 1.0
    %v857 = vmin.f32 %v854, 1.0
    %v858 = vmin.f32 %v855, 1.0
    %v859 = vtanh.pop %v846
    %v860 = vmul.f32 %v857, %v779
    %v861 = vmul.f32 %v856, %v859
    %v862 = vadd.f32 %v860, %v861
    %v863 = vtanh.pop %v862
    %v864 = vmul.f32 %v858, %v863
    %s865 = scalar_lea.vmem [#allocation16], 8
    %866 = vst [vmem:[%s865] sm:$0xff] %v864
    %s867 = smul.u32 2, 4
    %s868 = smul.addr %s867, 8
    %s869 = scalar_lea.vmem [#allocation4], %s868
    %v870 = vld [vmem:[%s869] sm:$0xff]
    %v871 = vld [vmem:[%s869 + $0x8] sm:$0xff]
    %v872 = vld [vmem:[%s869 + $0x10] sm:$0xff]
    %v873 = vld [vmem:[%s869 + $0x18] sm:$0xff]
    %v874 = vpack.c.bf16 %v864, %v864
    %875 = vmatpush.bf16.msra.mxu0 %v672
    %876 = vmatpush.bf16.msra.mxu0 %v668
    %877 = vmatpush.bf16.msra.mxu0 %v664
    %878 = vmatpush.bf16.msra.mxu0 %v660
    %879 = vmatpush.bf16.msra.mxu0 %v656
    %880 = vmatpush.bf16.msra.mxu0 %v652
    %881 = vmatpush.bf16.msra.mxu0 %v648
    %882 = vmatpush.bf16.msra.mxu0 %v644
    %883 = vmatmul.bf16.gmra.mxu0 %v874
    %v884 = vpop.f32.mrf.mxu0
    %v885 = vadd.f32 0.0, %v884
    %v886 = vpop.f32.mrf.mxu0
    %887 = vdwg.mxu0
    %888 = vmatpush.bf16.msra.mxu0 %v673
    %889 = vmatpush.bf16.msra.mxu0 %v669
    %890 = vmatpush.bf16.msra.mxu0 %v665
    %891 = vmatpush.bf16.msra.mxu0 %v661
    %892 = vmatpush.bf16.msra.mxu0 %v657
    %893 = vmatpush.bf16.msra.mxu0 %v653
    %894 = vmatpush.bf16.msra.mxu0 %v649
    %895 = vmatpush.bf16.msra.mxu0 %v645
    %896 = vmatmul.bf16.gmra.mxu0 %v874
    %v897 = vpop.f32.mrf.mxu0
    %v898 = vadd.f32 0.0, %v897
    %v899 = vpop.f32.mrf.mxu0
    %900 = vdwg.mxu0
    %901 = vmatpush.bf16.msra.mxu0 %v674
    %902 = vmatpush.bf16.msra.mxu0 %v670
    %903 = vmatpush.bf16.msra.mxu0 %v666
    %904 = vmatpush.bf16.msra.mxu0 %v662
    %905 = vmatpush.bf16.msra.mxu0 %v658
    %906 = vmatpush.bf16.msra.mxu0 %v654
    %907 = vmatpush.bf16.msra.mxu0 %v650
    %908 = vmatpush.bf16.msra.mxu0 %v646
    %909 = vmatmul.bf16.gmra.mxu0 %v874
    %v910 = vpop.f32.mrf.mxu0
    %v911 = vadd.f32 0.0, %v910
    %v912 = vpop.f32.mrf.mxu0
    %913 = vdwg.mxu0
    %914 = vmatpush.bf16.msra.mxu0 %v675
    %915 = vmatpush.bf16.msra.mxu0 %v671
    %916 = vmatpush.bf16.msra.mxu0 %v667
    %917 = vmatpush.bf16.msra.mxu0 %v663
    %918 = vmatpush.bf16.msra.mxu0 %v659
    %919 = vmatpush.bf16.msra.mxu0 %v655
    %920 = vmatpush.bf16.msra.mxu0 %v651
    %921 = vmatpush.bf16.msra.mxu0 %v647
    %922 = vmatmul.bf16.gmra.mxu0 %v874
    %v923 = vpop.f32.mrf.mxu0
    %v924 = vadd.f32 0.0, %v923
    %v925 = vpop.f32.mrf.mxu0
    %926 = vdwg.mxu0
    %v927 = vadd.f32 %v870, %v885
    %v928 = vadd.f32 %v871, %v898
    %v929 = vadd.f32 %v872, %v911
    %v930 = vadd.f32 %v873, %v924
    %v931 = vmul.f32 %v927, 0.2
    %v932 = vmul.f32 %v928, 0.2
    %v933 = vmul.f32 %v929, 0.2
    %v934 = vadd.f32 %v931, 0.5
    %v935 = vadd.f32 %v932, 0.5
    %v936 = vadd.f32 %v933, 0.5
    %v937 = vmax.f32 %v934, 0.0
    %v938 = vmax.f32 %v935, 0.0
    %v939 = vmax.f32 %v936, 0.0
    %v940 = vmin.f32 %v937, 1.0
    %v941 = vmin.f32 %v938, 1.0
    %v942 = vmin.f32 %v939, 1.0
    %v943 = vtanh.pop %v930
    %v944 = vmul.f32 %v941, %v862
    %v945 = vmul.f32 %v940, %v943
    %v946 = vadd.f32 %v944, %v945
    %v947 = vtanh.pop %v946
    %v948 = vmul.f32 %v942, %v947
    %s949 = scalar_lea.vmem [#allocation16], 16
    %950 = vst [vmem:[%s949] sm:$0xff] %v948
    %s951 = smul.u32 3, 4
    %s952 = smul.addr %s951, 8
    %s953 = scalar_lea.vmem [#allocation4], %s952
    %v954 = vld [vmem:[%s953] sm:$0xff]
    %v955 = vld [vmem:[%s953 + $0x8] sm:$0xff]
    %v956 = vld [vmem:[%s953 + $0x10] sm:$0xff]
    %v957 = vld [vmem:[%s953 + $0x18] sm:$0xff]
    %v958 = vpack.c.bf16 %v948, %v948
    %959 = vmatpush.bf16.msra.mxu0 %v672
    %960 = vmatpush.bf16.msra.mxu0 %v668
    %961 = vmatpush.bf16.msra.mxu0 %v664
    %962 = vmatpush.bf16.msra.mxu0 %v660
    %963 = vmatpush.bf16.msra.mxu0 %v656
    %964 = vmatpush.bf16.msra.mxu0 %v652
    %965 = vmatpush.bf16.msra.mxu0 %v648
    %966 = vmatpush.bf16.msra.mxu0 %v644
    %967 = vmatmul.bf16.gmra.mxu0 %v958
    %v968 = vpop.f32.mrf.mxu0
    %v969 = vadd.f32 0.0, %v968
    %v970 = vpop.f32.mrf.mxu0
    %971 = vdwg.mxu0
    %972 = vmatpush.bf16.msra.mxu0 %v673
    %973 = vmatpush.bf16.msra.mxu0 %v669
    %974 = vmatpush.bf16.msra.mxu0 %v665
    %975 = vmatpush.bf16.msra.mxu0 %v661
    %976 = vmatpush.bf16.msra.mxu0 %v657
    %977 = vmatpush.bf16.msra.mxu0 %v653
    %978 = vmatpush.bf16.msra.mxu0 %v649
    %979 = vmatpush.bf16.msra.mxu0 %v645
    %980 = vmatmul.bf16.gmra.mxu0 %v958
    %v981 = vpop.f32.mrf.mxu0
    %v982 = vadd.f32 0.0, %v981
    %v983 = vpop.f32.mrf.mxu0
    %984 = vdwg.mxu0
    %985 = vmatpush.bf16.msra.mxu0 %v674
    %986 = vmatpush.bf16.msra.mxu0 %v670
    %987 = vmatpush.bf16.msra.mxu0 %v666
    %988 = vmatpush.bf16.msra.mxu0 %v662
    %989 = vmatpush.bf16.msra.mxu0 %v658
    %990 = vmatpush.bf16.msra.mxu0 %v654
    %991 = vmatpush.bf16.msra.mxu0 %v650
    %992 = vmatpush.bf16.msra.mxu0 %v646
    %993 = vmatmul.bf16.gmra.mxu0 %v958
    %v994 = vpop.f32.mrf.mxu0
    %v995 = vadd.f32 0.0, %v994
    %v996 = vpop.f32.mrf.mxu0
    %997 = vdwg.mxu0
    %998 = vmatpush.bf16.msra.mxu0 %v675
    %999 = vmatpush.bf16.msra.mxu0 %v671
    %1000 = vmatpush.bf16.msra.mxu0 %v667
    %1001 = vmatpush.bf16.msra.mxu0 %v663
    %1002 = vmatpush.bf16.msra.mxu0 %v659
    %1003 = vmatpush.bf16.msra.mxu0 %v655
    %1004 = vmatpush.bf16.msra.mxu0 %v651
    %1005 = vmatpush.bf16.msra.mxu0 %v647
    %1006 = vmatmul.bf16.gmra.mxu0 %v958
    %v1007 = vpop.f32.mrf.mxu0
    %v1008 = vadd.f32 0.0, %v1007
    %v1009 = vpop.f32.mrf.mxu0
    %1010 = vdwg.mxu0
    %v1011 = vadd.f32 %v954, %v969
    %v1012 = vadd.f32 %v955, %v982
    %v1013 = vadd.f32 %v956, %v995
    %v1014 = vadd.f32 %v957, %v1008
    %v1015 = vmul.f32 %v1011, 0.2
    %v1016 = vmul.f32 %v1012, 0.2
    %v1017 = vmul.f32 %v1013, 0.2
    %v1018 = vadd.f32 %v1015, 0.5
    %v1019 = vadd.f32 %v1016, 0.5
    %v1020 = vadd.f32 %v1017, 0.5
    %v1021 = vmax.f32 %v1018, 0.0
    %v1022 = vmax.f32 %v1019, 0.0
    %v1023 = vmax.f32 %v1020, 0.0
    %v1024 = vmin.f32 %v1021, 1.0
    %v1025 = vmin.f32 %v1022, 1.0
    %v1026 = vmin.f32 %v1023, 1.0
    %v1027 = vtanh.pop %v1014
    %v1028 = vmul.f32 %v1025, %v946
    %v1029 = vmul.f32 %v1024, %v1027
    %v1030 = vadd.f32 %v1028, %v1029
    %v1031 = vtanh.pop %v1030
    %v1032 = vmul.f32 %v1026, %v1031
    %s1033 = scalar_lea.vmem [#allocation16], 24
    %1034 = vst [vmem:[%s1033] sm:$0xff] %v1032
    %s1035 = smul.u32 4, 4
    %s1036 = smul.addr %s1035, 8
    %s1037 = scalar_lea.vmem [#allocation4], %s1036
    %v1038 = vld [vmem:[%s1037] sm:$0xff]
    %v1039 = vld [vmem:[%s1037 + $0x8] sm:$0xff]
    %v1040 = vld [vmem:[%s1037 + $0x10] sm:$0xff]
    %v1041 = vld [vmem:[%s1037 + $0x18] sm:$0xff]
    %v1042 = vpack.c.bf16 %v1032, %v1032
    %1043 = vmatpush.bf16.msra.mxu0 %v672
    %1044 = vmatpush.bf16.msra.mxu0 %v668
    %1045 = vmatpush.bf16.msra.mxu0 %v664
    %1046 = vmatpush.bf16.msra.mxu0 %v660
    %1047 = vmatpush.bf16.msra.mxu0 %v656
    %1048 = vmatpush.bf16.msra.mxu0 %v652
    %1049 = vmatpush.bf16.msra.mxu0 %v648
    %1050 = vmatpush.bf16.msra.mxu0 %v644
    %1051 = vmatmul.bf16.gmra.mxu0 %v1042
    %v1052 = vpop.f32.mrf.mxu0
    %v1053 = vadd.f32 0.0, %v1052
    %v1054 = vpop.f32.mrf.mxu0
    %1055 = vdwg.mxu0
    %1056 = vmatpush.bf16.msra.mxu0 %v673
    %1057 = vmatpush.bf16.msra.mxu0 %v669
    %1058 = vmatpush.bf16.msra.mxu0 %v665
    %1059 = vmatpush.bf16.msra.mxu0 %v661
    %1060 = vmatpush.bf16.msra.mxu0 %v657
    %1061 = vmatpush.bf16.msra.mxu0 %v653
    %1062 = vmatpush.bf16.msra.mxu0 %v649
    %1063 = vmatpush.bf16.msra.mxu0 %v645
    %1064 = vmatmul.bf16.gmra.mxu0 %v1042
    %v1065 = vpop.f32.mrf.mxu0
    %v1066 = vadd.f32 0.0, %v1065
    %v1067 = vpop.f32.mrf.mxu0
    %1068 = vdwg.mxu0
    %1069 = vmatpush.bf16.msra.mxu0 %v674
    %1070 = vmatpush.bf16.msra.mxu0 %v670
    %1071 = vmatpush.bf16.msra.mxu0 %v666
    %1072 = vmatpush.bf16.msra.mxu0 %v662
    %1073 = vmatpush.bf16.msra.mxu0 %v658
    %1074 = vmatpush.bf16.msra.mxu0 %v654
    %1075 = vmatpush.bf16.msra.mxu0 %v650
    %1076 = vmatpush.bf16.msra.mxu0 %v646
    %1077 = vmatmul.bf16.gmra.mxu0 %v1042
    %v1078 = vpop.f32.mrf.mxu0
    %v1079 = vadd.f32 0.0, %v1078
    %v1080 = vpop.f32.mrf.mxu0
    %1081 = vdwg.mxu0
    %1082 = vmatpush.bf16.msra.mxu0 %v675
    %1083 = vmatpush.bf16.msra.mxu0 %v671
    %1084 = vmatpush.bf16.msra.mxu0 %v667
    %1085 = vmatpush.bf16.msra.mxu0 %v663
    %1086 = vmatpush.bf16.msra.mxu0 %v659
    %1087 = vmatpush.bf16.msra.mxu0 %v655
    %1088 = vmatpush.bf16.msra.mxu0 %v651
    %1089 = vmatpush.bf16.msra.mxu0 %v647
    %1090 = vmatmul.bf16.gmra.mxu0 %v1042
    %v1091 = vpop.f32.mrf.mxu0
    %v1092 = vadd.f32 0.0, %v1091
    %v1093 = vpop.f32.mrf.mxu0
    %1094 = vdwg.mxu0
    %v1095 = vadd.f32 %v1038, %v1053
    %v1096 = vadd.f32 %v1039, %v1066
    %v1097 = vadd.f32 %v1040, %v1079
    %v1098 = vadd.f32 %v1041, %v1092
    %v1099 = vmul.f32 %v1095, 0.2
    %v1100 = vmul.f32 %v1096, 0.2
    %v1101 = vmul.f32 %v1097, 0.2
    %v1102 = vadd.f32 %v1099, 0.5
    %v1103 = vadd.f32 %v1100, 0.5
    %v1104 = vadd.f32 %v1101, 0.5
    %v1105 = vmax.f32 %v1102, 0.0
    %v1106 = vmax.f32 %v1103, 0.0
    %v1107 = vmax.f32 %v1104, 0.0
    %v1108 = vmin.f32 %v1105, 1.0
    %v1109 = vmin.f32 %v1106, 1.0
    %v1110 = vmin.f32 %v1107, 1.0
    %v1111 = vtanh.pop %v1098
    %v1112 = vmul.f32 %v1109, %v1030
    %v1113 = vmul.f32 %v1108, %v1111
    %v1114 = vadd.f32 %v1112, %v1113
    %v1115 = vtanh.pop %v1114
    %v1116 = vmul.f32 %v1110, %v1115
    %s1117 = scalar_lea.vmem [#allocation16], 32
    %1118 = vst [vmem:[%s1117] sm:$0xff] %v1116
    %s1119 = smul.u32 5, 4
    %s1120 = smul.addr %s1119, 8
    %s1121 = scalar_lea.vmem [#allocation4], %s1120
    %v1122 = vld [vmem:[%s1121] sm:$0xff]
    %v1123 = vld [vmem:[%s1121 + $0x8] sm:$0xff]
    %v1124 = vld [vmem:[%s1121 + $0x10] sm:$0xff]
    %v1125 = vld [vmem:[%s1121 + $0x18] sm:$0xff]
    %v1126 = vpack.c.bf16 %v1116, %v1116
    %1127 = vmatpush.bf16.msra.mxu0 %v672
    %1128 = vmatpush.bf16.msra.mxu0 %v668
    %1129 = vmatpush.bf16.msra.mxu0 %v664
    %1130 = vmatpush.bf16.msra.mxu0 %v660
    %1131 = vmatpush.bf16.msra.mxu0 %v656
    %1132 = vmatpush.bf16.msra.mxu0 %v652
    %1133 = vmatpush.bf16.msra.mxu0 %v648
    %1134 = vmatpush.bf16.msra.mxu0 %v644
    %1135 = vmatmul.bf16.gmra.mxu0 %v1126
    %v1136 = vpop.f32.mrf.mxu0
    %v1137 = vadd.f32 0.0, %v1136
    %v1138 = vpop.f32.mrf.mxu0
    %1139 = vdwg.mxu0
    %1140 = vmatpush.bf16.msra.mxu0 %v673
    %1141 = vmatpush.bf16.msra.mxu0 %v669
    %1142 = vmatpush.bf16.msra.mxu0 %v665
    %1143 = vmatpush.bf16.msra.mxu0 %v661
    %1144 = vmatpush.bf16.msra.mxu0 %v657
    %1145 = vmatpush.bf16.msra.mxu0 %v653
    %1146 = vmatpush.bf16.msra.mxu0 %v649
    %1147 = vmatpush.bf16.msra.mxu0 %v645
    %1148 = vmatmul.bf16.gmra.mxu0 %v1126
    %v1149 = vpop.f32.mrf.mxu0
    %v1150 = vadd.f32 0.0, %v1149
    %v1151 = vpop.f32.mrf.mxu0
    %1152 = vdwg.mxu0
    %1153 = vmatpush.bf16.msra.mxu0 %v674
    %1154 = vmatpush.bf16.msra.mxu0 %v670
    %1155 = vmatpush.bf16.msra.mxu0 %v666
    %1156 = vmatpush.bf16.msra.mxu0 %v662
    %1157 = vmatpush.bf16.msra.mxu0 %v658
    %1158 = vmatpush.bf16.msra.mxu0 %v654
    %1159 = vmatpush.bf16.msra.mxu0 %v650
    %1160 = vmatpush.bf16.msra.mxu0 %v646
    %1161 = vmatmul.bf16.gmra.mxu0 %v1126
    %v1162 = vpop.f32.mrf.mxu0
    %v1163 = vadd.f32 0.0, %v1162
    %v1164 = vpop.f32.mrf.mxu0
    %1165 = vdwg.mxu0
    %1166 = vmatpush.bf16.msra.mxu0 %v675
    %1167 = vmatpush.bf16.msra.mxu0 %v671
    %1168 = vmatpush.bf16.msra.mxu0 %v667
    %1169 = vmatpush.bf16.msra.mxu0 %v663
    %1170 = vmatpush.bf16.msra.mxu0 %v659
    %1171 = vmatpush.bf16.msra.mxu0 %v655
    %1172 = vmatpush.bf16.msra.mxu0 %v651
    %1173 = vmatpush.bf16.msra.mxu0 %v647
    %1174 = vmatmul.bf16.gmra.mxu0 %v1126
    %v1175 = vpop.f32.mrf.mxu0
    %v1176 = vadd.f32 0.0, %v1175
    %v1177 = vpop.f32.mrf.mxu0
    %1178 = vdwg.mxu0
    %v1179 = vadd.f32 %v1122, %v1137
    %v1180 = vadd.f32 %v1123, %v1150
    %v1181 = vadd.f32 %v1124, %v1163
    %v1182 = vadd.f32 %v1125, %v1176
    %v1183 = vmul.f32 %v1179, 0.2
    %v1184 = vmul.f32 %v1180, 0.2
    %v1185 = vmul.f32 %v1181, 0.2
    %v1186 = vadd.f32 %v1183, 0.5
    %v1187 = vadd.f32 %v1184, 0.5
    %v1188 = vadd.f32 %v1185, 0.5
    %v1189 = vmax.f32 %v1186, 0.0
    %v1190 = vmax.f32 %v1187, 0.0
    %v1191 = vmax.f32 %v1188, 0.0
    %v1192 = vmin.f32 %v1189, 1.0
    %v1193 = vmin.f32 %v1190, 1.0
    %v1194 = vmin.f32 %v1191, 1.0
    %v1195 = vtanh.pop %v1182
    %v1196 = vmul.f32 %v1193, %v1114
    %v1197 = vmul.f32 %v1192, %v1195
    %v1198 = vadd.f32 %v1196, %v1197
    %v1199 = vtanh.pop %v1198
    %v1200 = vmul.f32 %v1194, %v1199
    %s1201 = scalar_lea.vmem [#allocation16], 40
    %1202 = vst [vmem:[%s1201] sm:$0xff] %v1200
    %s1203 = smul.u32 6, 4
    %s1204 = smul.addr %s1203, 8
    %s1205 = scalar_lea.vmem [#allocation4], %s1204
    %v1206 = vld [vmem:[%s1205] sm:$0xff]
    %v1207 = vld [vmem:[%s1205 + $0x8] sm:$0xff]
    %v1208 = vld [vmem:[%s1205 + $0x10] sm:$0xff]
    %v1209 = vld [vmem:[%s1205 + $0x18] sm:$0xff]
    %v1210 = vpack.c.bf16 %v1200, %v1200
    %1211 = vmatpush.bf16.msra.mxu0 %v672
    %1212 = vmatpush.bf16.msra.mxu0 %v668
    %1213 = vmatpush.bf16.msra.mxu0 %v664
    %1214 = vmatpush.bf16.msra.mxu0 %v660
    %1215 = vmatpush.bf16.msra.mxu0 %v656
    %1216 = vmatpush.bf16.msra.mxu0 %v652
    %1217 = vmatpush.bf16.msra.mxu0 %v648
    %1218 = vmatpush.bf16.msra.mxu0 %v644
    %1219 = vmatmul.bf16.gmra.mxu0 %v1210
    %v1220 = vpop.f32.mrf.mxu0
    %v1221 = vadd.f32 0.0, %v1220
    %v1222 = vpop.f32.mrf.mxu0
    %1223 = vdwg.mxu0
    %1224 = vmatpush.bf16.msra.mxu0 %v673
    %1225 = vmatpush.bf16.msra.mxu0 %v669
    %1226 = vmatpush.bf16.msra.mxu0 %v665
    %1227 = vmatpush.bf16.msra.mxu0 %v661
    %1228 = vmatpush.bf16.msra.mxu0 %v657
    %1229 = vmatpush.bf16.msra.mxu0 %v653
    %1230 = vmatpush.bf16.msra.mxu0 %v649
    %1231 = vmatpush.bf16.msra.mxu0 %v645
    %1232 = vmatmul.bf16.gmra.mxu0 %v1210
    %v1233 = vpop.f32.mrf.mxu0
    %v1234 = vadd.f32 0.0, %v1233
    %v1235 = vpop.f32.mrf.mxu0
    %1236 = vdwg.mxu0
    %1237 = vmatpush.bf16.msra.mxu0 %v674
    %1238 = vmatpush.bf16.msra.mxu0 %v670
    %1239 = vmatpush.bf16.msra.mxu0 %v666
    %1240 = vmatpush.bf16.msra.mxu0 %v662
    %1241 = vmatpush.bf16.msra.mxu0 %v658
    %1242 = vmatpush.bf16.msra.mxu0 %v654
    %1243 = vmatpush.bf16.msra.mxu0 %v650
    %1244 = vmatpush.bf16.msra.mxu0 %v646
    %1245 = vmatmul.bf16.gmra.mxu0 %v1210
    %v1246 = vpop.f32.mrf.mxu0
    %v1247 = vadd.f32 0.0, %v1246
    %v1248 = vpop.f32.mrf.mxu0
    %1249 = vdwg.mxu0
    %1250 = vmatpush.bf16.msra.mxu0 %v675
    %1251 = vmatpush.bf16.msra.mxu0 %v671
    %1252 = vmatpush.bf16.msra.mxu0 %v667
    %1253 = vmatpush.bf16.msra.mxu0 %v663
    %1254 = vmatpush.bf16.msra.mxu0 %v659
    %1255 = vmatpush.bf16.msra.mxu0 %v655
    %1256 = vmatpush.bf16.msra.mxu0 %v651
    %1257 = vmatpush.bf16.msra.mxu0 %v647
    %1258 = vmatmul.bf16.gmra.mxu0 %v1210
    %v1259 = vpop.f32.mrf.mxu0
    %v1260 = vadd.f32 0.0, %v1259
    %v1261 = vpop.f32.mrf.mxu0
    %1262 = vdwg.mxu0
    %v1263 = vadd.f32 %v1206, %v1221
    %v1264 = vadd.f32 %v1207, %v1234
    %v1265 = vadd.f32 %v1208, %v1247
    %v1266 = vadd.f32 %v1209, %v1260
    %v1267 = vmul.f32 %v1263, 0.2
    %v1268 = vmul.f32 %v1264, 0.2
    %v1269 = vmul.f32 %v1265, 0.2
    %v1270 = vadd.f32 %v1267, 0.5
    %v1271 = vadd.f32 %v1268, 0.5
    %v1272 = vadd.f32 %v1269, 0.5
    %v1273 = vmax.f32 %v1270, 0.0
    %v1274 = vmax.f32 %v1271, 0.0
    %v1275 = vmax.f32 %v1272, 0.0
    %v1276 = vmin.f32 %v1273, 1.0
    %v1277 = vmin.f32 %v1274, 1.0
    %v1278 = vmin.f32 %v1275, 1.0
    %v1279 = vtanh.pop %v1266
    %v1280 = vmul.f32 %v1277, %v1198
    %v1281 = vmul.f32 %v1276, %v1279
    %v1282 = vadd.f32 %v1280, %v1281
    %v1283 = vtanh.pop %v1282
    %v1284 = vmul.f32 %v1278, %v1283
    %s1285 = scalar_lea.vmem [#allocation16], 48
    %1286 = vst [vmem:[%s1285] sm:$0xff] %v1284
    %s1287 = smul.u32 7, 4
    %s1288 = smul.addr %s1287, 8
    %s1289 = scalar_lea.vmem [#allocation4], %s1288
    %v1290 = vld [vmem:[%s1289] sm:$0xff]
    %v1291 = vld [vmem:[%s1289 + $0x8] sm:$0xff]
    %v1292 = vld [vmem:[%s1289 + $0x10] sm:$0xff]
    %v1293 = vld [vmem:[%s1289 + $0x18] sm:$0xff]
    %v1294 = vpack.c.bf16 %v1284, %v1284
    %1295 = vmatpush.bf16.msra.mxu0 %v672
    %1296 = vmatpush.bf16.msra.mxu0 %v668
    %1297 = vmatpush.bf16.msra.mxu0 %v664
    %1298 = vmatpush.bf16.msra.mxu0 %v660
    %1299 = vmatpush.bf16.msra.mxu0 %v656
    %1300 = vmatpush.bf16.msra.mxu0 %v652
    %1301 = vmatpush.bf16.msra.mxu0 %v648
    %1302 = vmatpush.bf16.msra.mxu0 %v644
    %1303 = vmatmul.bf16.gmra.mxu0 %v1294
    %v1304 = vpop.f32.mrf.mxu0
    %v1305 = vadd.f32 0.0, %v1304
    %v1306 = vpop.f32.mrf.mxu0
    %1307 = vdwg.mxu0
    %1308 = vmatpush.bf16.msra.mxu0 %v673
    %1309 = vmatpush.bf16.msra.mxu0 %v669
    %1310 = vmatpush.bf16.msra.mxu0 %v665
    %1311 = vmatpush.bf16.msra.mxu0 %v661
    %1312 = vmatpush.bf16.msra.mxu0 %v657
    %1313 = vmatpush.bf16.msra.mxu0 %v653
    %1314 = vmatpush.bf16.msra.mxu0 %v649
    %1315 = vmatpush.bf16.msra.mxu0 %v645
    %1316 = vmatmul.bf16.gmra.mxu0 %v1294
    %v1317 = vpop.f32.mrf.mxu0
    %v1318 = vadd.f32 0.0, %v1317
    %v1319 = vpop.f32.mrf.mxu0
    %1320 = vdwg.mxu0
    %1321 = vmatpush.bf16.msra.mxu0 %v674
    %1322 = vmatpush.bf16.msra.mxu0 %v670
    %1323 = vmatpush.bf16.msra.mxu0 %v666
    %1324 = vmatpush.bf16.msra.mxu0 %v662
    %1325 = vmatpush.bf16.msra.mxu0 %v658
    %1326 = vmatpush.bf16.msra.mxu0 %v654
    %1327 = vmatpush.bf16.msra.mxu0 %v650
    %1328 = vmatpush.bf16.msra.mxu0 %v646
    %1329 = vmatmul.bf16.gmra.mxu0 %v1294
    %v1330 = vpop.f32.mrf.mxu0
    %v1331 = vadd.f32 0.0, %v1330
    %v1332 = vpop.f32.mrf.mxu0
    %1333 = vdwg.mxu0
    %1334 = vmatpush.bf16.msra.mxu0 %v675
    %1335 = vmatpush.bf16.msra.mxu0 %v671
    %1336 = vmatpush.bf16.msra.mxu0 %v667
    %1337 = vmatpush.bf16.msra.mxu0 %v663
    %1338 = vmatpush.bf16.msra.mxu0 %v659
    %1339 = vmatpush.bf16.msra.mxu0 %v655
    %1340 = vmatpush.bf16.msra.mxu0 %v651
    %1341 = vmatpush.bf16.msra.mxu0 %v647
    %1342 = vmatmul.bf16.gmra.mxu0 %v1294
    %v1343 = vpop.f32.mrf.mxu0
    %v1344 = vadd.f32 0.0, %v1343
    %v1345 = vpop.f32.mrf.mxu0
    %1346 = vdwg.mxu0
    %v1347 = vadd.f32 %v1290, %v1305
    %v1348 = vadd.f32 %v1291, %v1318
    %v1349 = vadd.f32 %v1292, %v1331
    %v1350 = vadd.f32 %v1293, %v1344
    %v1351 = vmul.f32 %v1347, 0.2
    %v1352 = vmul.f32 %v1348, 0.2
    %v1353 = vmul.f32 %v1349, 0.2
    %v1354 = vadd.f32 %v1351, 0.5
    %v1355 = vadd.f32 %v1352, 0.5
    %v1356 = vadd.f32 %v1353, 0.5
    %v1357 = vmax.f32 %v1354, 0.0
    %v1358 = vmax.f32 %v1355, 0.0
    %v1359 = vmax.f32 %v1356, 0.0
    %v1360 = vmin.f32 %v1357, 1.0
    %v1361 = vmin.f32 %v1358, 1.0
    %v1362 = vmin.f32 %v1359, 1.0
    %v1363 = vtanh.pop %v1350
    %v1364 = vmul.f32 %v1361, %v1282
    %v1365 = vmul.f32 %v1360, %v1363
    %v1366 = vadd.f32 %v1364, %v1365
    %v1367 = vtanh.pop %v1366
    %v1368 = vmul.f32 %v1362, %v1367
    %s1369 = scalar_lea.vmem [#allocation16], 56
    %1370 = vst [vmem:[%s1369] sm:$0xff] %v1368
    %1371 = vst [vmem:[#allocation2] sm:$0xff] %v1368
    %1372 = vst [vmem:[#allocation3] sm:$0xff] %v1366
    // Predicated region
    $region54: #{tpu_custom_call.1} parent=1 // pred_check
      %p1373 = pneg %p116
    $region55: #{tpu_custom_call.1} parent=1 // pred_check_branch
      %1375 = sbr.rel (%p1373) target = $region57
    $region56: #{tpu_custom_call.1} parent=1 // pred_region
      %1376 = vst [vmem:[#allocation17] sm:$0xff] %v1368
      %1377 = vst [vmem:[#allocation19] sm:$0xff] %v1366
    $region57: #{tpu_custom_call.1} parent=1 // pred_fallthru
      _
    // Predicated region
    $region58: #{tpu_custom_call.1} parent=1 // pred_check
      _
    $region59: #{tpu_custom_call.1} parent=1 // pred_check_branch
      %1379 = sbr.rel (0) target = $region61
    $region60: #{tpu_custom_call.1} parent=1 // pred_region
      %1381 = vsyncadd [#allocation7], 0
      %s1382 = sshll.u32 [#allocation16], 4
      %s1383 = int_to_ptr.vmem [resolvable:$true] %s1382
      %s1384 = sshll.u32 %s6, 4
      %s1385 = int_to_ptr.hbm [resolvable:$true] %s1384
      %1390 = dma.vmem_to_hbm [thread:$0]  %s1383, 1024, %s1385, [#allocation7], 128, 128, 8
    $region61: #{tpu_custom_call.1} parent=1 // pred_fallthru
      _
    // Predicated region
    $region62: #{tpu_custom_call.1} parent=1 // pred_check
      _
    $region63: #{tpu_custom_call.1} parent=1 // pred_check_branch
      %1392 = sbr.rel (0) target = $region65
    $region64: #{tpu_custom_call.1} parent=1 // pred_region
      %1394 = vsyncadd [#allocation18], 0
      %s1396 = sshll.u32 [#allocation17], 4
      %s1397 = int_to_ptr.vmem [resolvable:$true] %s1396
      %s1398 = sshll.u32 %s7, 4
      %s1399 = int_to_ptr.hbm [resolvable:$true] %s1398
      %1401 = dma.vmem_to_hbm [thread:$0]  %s1397, 128, %s1399, [#allocation18]
    $region65: #{tpu_custom_call.1} parent=1 // pred_fallthru
      _
    // Predicated region
    $region66: #{tpu_custom_call.1} parent=1 // pred_check
      _
    $region67: #{tpu_custom_call.1} parent=1 // pred_check_branch
      %1403 = sbr.rel (0) target = $region69
    $region68: #{tpu_custom_call.1} parent=1 // pred_region
      %1405 = vsyncadd [#allocation18], 0
      %s1407 = sshll.u32 [#allocation19], 4
      %s1408 = int_to_ptr.vmem [resolvable:$true] %s1407
      %s1409 = sshll.u32 %s8, 4
      %s1410 = int_to_ptr.hbm [resolvable:$true] %s1409
      %1412 = dma.vmem_to_hbm [thread:$0]  %s1408, 128, %s1410, [#allocation18]
    $region69: #{tpu_custom_call.1} parent=1 // pred_fallthru
      _
    // Predicated region
    $region70: #{tpu_custom_call.1} parent=1 // pred_check
      _
    $region71: #{tpu_custom_call.1} parent=1 // pred_check_branch
      %1414 = sbr.rel (0) target = $region73
    $region72: #{tpu_custom_call.1} parent=1 // pred_region
      %1416 = dma.done [#allocation7], 1024
    $region73: #{tpu_custom_call.1} parent=1 // pred_fallthru
      _
    // Predicated region
    $region74: #{tpu_custom_call.1} parent=1 // pred_check
      _
    $region75: #{tpu_custom_call.1} parent=1 // pred_check_branch
      %1418 = sbr.rel (0) target = $region77
    $region76: #{tpu_custom_call.1} parent=1 // pred_region
      %1420 = dma.done [#allocation18], 128
    $region77: #{tpu_custom_call.1} parent=1 // pred_fallthru
      _
    // Predicated region
    $region78: #{tpu_custom_call.1} parent=1 // pred_check
      _
    $region79: #{tpu_custom_call.1} parent=1 // pred_check_branch
      %1422 = sbr.rel (0) target = $region81
    $region80: #{tpu_custom_call.1} parent=1 // pred_region
      %1424 = dma.done [#allocation18], 128
    $region81: #{tpu_custom_call.1} parent=1 // pred_fallthru
      _
    %1425 = vsyncpa [#allocation6], 1
    %1426 = vsyncpa [#allocation9], 1
    %1427 = vsyncpa [#allocation12], 1
    %1428 = vsyncpa [#allocation15], 1
    %1429 = vsyncpa [#allocation7], 1
    %1430 = vsyncpa [#allocation18], 1

// kernel: tpu_custom_call.1
$region0: #{tpu_custom_call.1}
  #allocation0 [shape = 'u32[]', space=smem, size = 0x4, offset = 0x4, fixed_abs, tag = 'smem constant byte address 0x4 - core index']
  #allocation1 [shape = 'u32[72,128]{1,0:T(1,128)}', space=vmem, size = 0x9000, scoped, tag = 'internal scratch']
  #allocation2 [shape = 'f32[8,128]{1,0:T(8,128)}', space=vmem, size = 0x1000, scoped, tag = 'scratch operand']
  #allocation3 [shape = 'f32[8,128]{1,0:T(8,128)}', space=vmem, size = 0x1000, scoped, tag = 'scratch operand']
  #allocation4 [shape = 'f32[64,512]{1,0:T(8,128)}', space=vmem, size = 0x20000, scoped, tag = 'scratch operand']
  %s0 = inlined_call_operand.hbm [shape: bf16[64,128], index: 0, kind: input, shape index: {}]
  %s1 = inlined_call_operand.hbm [shape: bf16[128,512], index: 1, kind: input, shape index: {}]
  %s2 = inlined_call_operand.hbm [shape: bf16[128,512], index: 2, kind: input, shape index: {}]
  %s3 = inlined_call_operand.hbm [shape: f32[1,512], index: 3, kind: input, shape index: {}]
  %s4 = inlined_call_operand.hbm [shape: f32[8,128], index: 4, kind: input, shape index: {}]
  %s5 = inlined_call_operand.hbm [shape: f32[8,128], index: 5, kind: input, shape index: {}]
  %s6 = inlined_call_operand.hbm [shape: f32[64,128], index: 6, kind: output, shape index: {0}]
  %s7 = inlined_call_operand.hbm [shape: f32[8,128], index: 7, kind: output, shape index: {1}]
  %s8 = inlined_call_operand.hbm [shape: f32[8,128], index: 8, kind: output, shape index: {2}]
  %9 = xla_tuple %s6, %s7, %s8
  %s10 = sld [smem:[#allocation0]]
  $region82: #{tpu_custom_call.1} parent=0
    _
  %s12 = ssub.s32 1, %s10
  %s13 = scalar_select 0, %s12, %s10
  $region1: #{tpu_custom_call.1} parent=0
    #allocation5 [shape = 'u8[16384]{0}', space=vmem, size = 0x4000, scoped, tag = 'input window, operand 0, single buffered']
    #allocation6 [shape = 's32[1]{0}', space=sflag, size = 0x4, scoped, tag = 'scoped memory for tpu_custom_call.1']
    #allocation7 [shape = 's32[1]{0}', space=sflag, size = 0x4, scoped, tag = 'scoped memory for tpu_custom_call.1']
    #allocation8 [shape = 'u8[131072]{0}', space=vmem, size = 0x20000, scoped, tag = 'input window, operand 1, single buffered']
    #allocation9 [shape = 's32[1]{0}', space=sflag, size = 0x4, scoped, tag = 'scoped memory for tpu_custom_call.1']
    #allocation10 [shape = 'u8[131072]{0}', space=vmem, size = 0x20000, scoped, tag = 'input window, operand 2, single buffered']
    #allocation11 [shape = 'u8[2048]{0}', space=vmem, size = 0x800, scoped, tag = 'input window, operand 3, single buffered']
    #allocation12 [shape = 's32[1]{0}', space=sflag, size = 0x4, scoped, tag = 'scoped memory for tpu_custom_call.1']
    #allocation13 [shape = 'u8[4096]{0}', space=vmem, size = 0x1000, scoped, tag = 'input window, operand 4, single buffered']
    #allocation14 [shape = 'u8[4096]{0}', space=vmem, size = 0x1000, scoped, tag = 'input window, operand 5, single buffered']
    #allocation15 [shape = 's32[1]{0}', space=sflag, size = 0x4, scoped, tag = 'scoped memory for tpu_custom_call.1']
    #allocation16 [shape = 'u8[32768]{0}', space=vmem, size = 0x8000, scoped, tag = 'output window, operand 0, single buffered']
    #allocation17 [shape = 'u8[4096]{0}', space=vmem, size = 0x1000, scoped, tag = 'output window, operand 1, single buffered']
    #allocation18 [shape = 's32[1]{0}', space=sflag, size = 0x4, scoped, tag = 'scoped memory for tpu_custom_call.1']
    #allocation19 [shape = 'u8[4096]{0}', space=vmem, size = 0x1000, scoped, tag = 'output window, operand 2, single buffered']
    %14 = vsyncpa [#allocation6], 0
    %15 = vsyncpa [#allocation9], 0
    %16 = vsyncpa [#allocation12], 0
    %17 = vsyncpa [#allocation15], 0
    %18 = vsyncpa [#allocation7], 0
    %19 = vsyncpa [#allocation18], 0
    // Predicated region
    $region2: #{tpu_custom_call.1} parent=1 // pred_check
      _
    $region3: #{tpu_custom_call.1} parent=1 // pred_check_branch
      %21 = sbr.rel (0) target = $region5
    $region4: #{tpu_custom_call.1} parent=1 // pred_region
      %23 = vsyncadd [#allocation6], 0
      %s24 = sshll.u32 %s0, 4
      %s25 = int_to_ptr.hbm [resolvable:$true] %s24
      %s26 = sshll.u32 [#allocation5], 4
      %s27 = int_to_ptr.vmem [resolvable:$true] %s26
      %32 = dma.hbm_to_vmem [thread:$0]  %s25, 512, %s27, [#allocation6], 64, 64, 4
    $region5: #{tpu_custom_call.1} parent=1 // pred_fallthru
      _
    // Predicated region
    $region6: #{tpu_custom_call.1} parent=1 // pred_check
      _
    $region7: #{tpu_custom_call.1} parent=1 // pred_check_branch
      %34 = sbr.rel (0) target = $region9
    $region8: #{tpu_custom_call.1} parent=1 // pred_region
      %36 = vsyncadd [#allocation9], 0
      %s37 = sshll.u32 %s1, 4
      %s38 = int_to_ptr.hbm [resolvable:$true] %s37
      %s39 = sshll.u32 [#allocation8], 4
      %s40 = int_to_ptr.vmem [resolvable:$true] %s39
      %45 = dma.hbm_to_vmem [thread:$0]  %s38, 4096, %s40, [#allocation9], 256, 256, 16
    $region9: #{tpu_custom_call.1} parent=1 // pred_fallthru
      _
    // Predicated region
    $region10: #{tpu_custom_call.1} parent=1 // pred_check
      _
    $region11: #{tpu_custom_call.1} parent=1 // pred_check_branch
      %47 = sbr.rel (0) target = $region13
    $region12: #{tpu_custom_call.1} parent=1 // pred_region
      %49 = vsyncadd [#allocation9], 0
      %s50 = sshll.u32 %s2, 4
      %s51 = int_to_ptr.hbm [resolvable:$true] %s50
      %s52 = sshll.u32 [#allocation10], 4
      %s53 = int_to_ptr.vmem [resolvable:$true] %s52
      %58 = dma.hbm_to_vmem [thread:$0]  %s51, 4096, %s53, [#allocation9], 256, 256, 16
    $region13: #{tpu_custom_call.1} parent=1 // pred_fallthru
      _
    // Predicated region
    $region14: #{tpu_custom_call.1} parent=1 // pred_check
      _
    $region15: #{tpu_custom_call.1} parent=1 // pred_check_branch
      %60 = sbr.rel (0) target = $region17
    $region16: #{tpu_custom_call.1} parent=1 // pred_region
      %62 = vsyncadd [#allocation12], 0
      %s64 = sshll.u32 %s3, 4
      %s65 = int_to_ptr.hbm [resolvable:$true] %s64
      %s66 = sshll.u32 [#allocation11], 4
      %s67 = int_to_ptr.vmem [resolvable:$true] %s66
      %69 = dma.hbm_to_vmem [thread:$0]  %s65, 64, %s67, [#allocation12]
    $region17: #{tpu_custom_call.1} parent=1 // pred_fallthru
      _
    // Predicated region
    $region18: #{tpu_custom_call.1} parent=1 // pred_check
      _
    $region19: #{tpu_custom_call.1} parent=1 // pred_check_branch
      %71 = sbr.rel (0) target = $region21
    $region20: #{tpu_custom_call.1} parent=1 // pred_region
      %73 = vsyncadd [#allocation12], 0
      %s75 = sshll.u32 %s4, 4
      %s76 = int_to_ptr.hbm [resolvable:$true] %s75
      %s77 = sshll.u32 [#allocation13], 4
      %s78 = int_to_ptr.vmem [resolvable:$true] %s77
      %80 = dma.hbm_to_vmem [thread:$0]  %s76, 128, %s78, [#allocation12]
    $region21: #{tpu_custom_call.1} parent=1 // pred_fallthru
      _
    // Predicated region
    $region22: #{tpu_custom_call.1} parent=1 // pred_check
      _
    $region23: #{tpu_custom_call.1} parent=1 // pred_check_branch
      %82 = sbr.rel (0) target = $region25
    $region24: #{tpu_custom_call.1} parent=1 // pred_region
      %84 = vsyncadd [#allocation15], 0
      %s86 = sshll.u32 %s5, 4
      %s87 = int_to_ptr.hbm [resolvable:$true] %s86
      %s88 = sshll.u32 [#allocation14], 4
      %s89 = int_to_ptr.vmem [resolvable:$true] %s88
      %91 = dma.hbm_to_vmem [thread:$0]  %s87, 128, %s89, [#allocation15]
    $region25: #{tpu_custom_call.1} parent=1 // pred_fallthru
      _
    // Predicated region
    $region26: #{tpu_custom_call.1} parent=1 // pred_check
      _
    $region27: #{tpu_custom_call.1} parent=1 // pred_check_branch
      %93 = sbr.rel (0) target = $region29
    $region28: #{tpu_custom_call.1} parent=1 // pred_region
      %95 = dma.done [#allocation6], 512
    $region29: #{tpu_custom_call.1} parent=1 // pred_fallthru
      _
    // Predicated region
    $region30: #{tpu_custom_call.1} parent=1 // pred_check
      _
    $region31: #{tpu_custom_call.1} parent=1 // pred_check_branch
      %97 = sbr.rel (0) target = $region33
    $region32: #{tpu_custom_call.1} parent=1 // pred_region
      %99 = dma.done [#allocation9], 4096
    $region33: #{tpu_custom_call.1} parent=1 // pred_fallthru
      _
    // Predicated region
    $region34: #{tpu_custom_call.1} parent=1 // pred_check
      _
    $region35: #{tpu_custom_call.1} parent=1 // pred_check_branch
      %101 = sbr.rel (0) target = $region37
    $region36: #{tpu_custom_call.1} parent=1 // pred_region
      %103 = dma.done [#allocation9], 4096
    $region37: #{tpu_custom_call.1} parent=1 // pred_fallthru
      _
    // Predicated region
    $region38: #{tpu_custom_call.1} parent=1 // pred_check
      _
    $region39: #{tpu_custom_call.1} parent=1 // pred_check_branch
      %105 = sbr.rel (0) target = $region41
    $region40: #{tpu_custom_call.1} parent=1 // pred_region
      %107 = dma.done [#allocation12], 64
    $region41: #{tpu_custom_call.1} parent=1 // pred_fallthru
      _
    // Predicated region
    $region42: #{tpu_custom_call.1} parent=1 // pred_check
      _
    $region43: #{tpu_custom_call.1} parent=1 // pred_check_branch
      %109 = sbr.rel (0) target = $region45
    $region44: #{tpu_custom_call.1} parent=1 // pred_region
      %111 = dma.done [#allocation12], 128
    $region45: #{tpu_custom_call.1} parent=1 // pred_fallthru
      _
    // Predicated region
    $region46: #{tpu_custom_call.1} parent=1 // pred_check
      _
    $region47: #{tpu_custom_call.1} parent=1 // pred_check_branch
      %113 = sbr.rel (0) target = $region49
    $region48: #{tpu_custom_call.1} parent=1 // pred_region
      %115 = dma.done [#allocation15], 128
    $region49: #{tpu_custom_call.1} parent=1 // pred_fallthru
      _
    %p116 = scmp.eq.s32.totalorder 0, 0
    // Predicated region
    $region50: #{tpu_custom_call.1} parent=1 // pred_check
      %p117 = pneg %p116
    $region51: #{tpu_custom_call.1} parent=1 // pred_check_branch
      %119 = sbr.rel (%p117) target = $region53
    $region52: #{tpu_custom_call.1} parent=1 // pred_region
      %v120 = vld [vmem:[#allocation13] sm:$0xff]
      %121 = vst [vmem:[#allocation2] sm:$0xff] %v120
      %v122 = vld [vmem:[#allocation14] sm:$0xff]
      %123 = vst [vmem:[#allocation3] sm:$0xff] %v122
    $region53: #{tpu_custom_call.1} parent=1 // pred_fallthru
      _
    %v124 = vld [vmem:[#allocation5] sm:$0xf]
    %v125 = vld [vmem:[#allocation5 + $0x4] sm:$0xf]
    %v126 = vld [vmem:[#allocation5 + $0x8] sm:$0xf]
    %v127 = vld [vmem:[#allocation5 + $0xc] sm:$0xf]
    %v128 = vld [vmem:[#allocation5 + $0x10] sm:$0xf]
    %v129 = vld [vmem:[#allocation5 + $0x14] sm:$0xf]
    %v130 = vld [vmem:[#allocation5 + $0x18] sm:$0xf]
    %v131 = vld [vmem:[#allocation5 + $0x1c] sm:$0xf]
    %v132 = vld [vmem:[#allocation8] sm:$0xff]
    %v133 = vld [vmem:[#allocation8 + $0x8] sm:$0xff]
    %v134 = vld [vmem:[#allocation8 + $0x10] sm:$0xff]
    %v135 = vld [vmem:[#allocation8 + $0x18] sm:$0xff]
    %v136 = vld [vmem:[#allocation8 + $0x20] sm:$0xff]
    %v137 = vld [vmem:[#allocation8 + $0x28] sm:$0xff]
    %v138 = vld [vmem:[#allocation8 + $0x30] sm:$0xff]
    %v139 = vld [vmem:[#allocation8 + $0x38] sm:$0xff]
    %v140 = vld [vmem:[#allocation8 + $0x40] sm:$0xff]
    %v141 = vld [vmem:[#allocation8 + $0x48] sm:$0xff]
    %v142 = vld [vmem:[#allocation8 + $0x50] sm:$0xff]
    %v143 = vld [vmem:[#allocation8 + $0x58] sm:$0xff]
    %v144 = vld [vmem:[#allocation8 + $0x60] sm:$0xff]
    %v145 = vld [vmem:[#allocation8 + $0x68] sm:$0xff]
    %v146 = vld [vmem:[#allocation8 + $0x70] sm:$0xff]
    %v147 = vld [vmem:[#allocation8 + $0x78] sm:$0xff]
    %v148 = vld [vmem:[#allocation8 + $0x80] sm:$0xff]
    %v149 = vld [vmem:[#allocation8 + $0x88] sm:$0xff]
    %v150 = vld [vmem:[#allocation8 + $0x90] sm:$0xff]
    %v151 = vld [vmem:[#allocation8 + $0x98] sm:$0xff]
    %v152 = vld [vmem:[#allocation8 + $0xa0] sm:$0xff]
    %v153 = vld [vmem:[#allocation8 + $0xa8] sm:$0xff]
    %v154 = vld [vmem:[#allocation8 + $0xb0] sm:$0xff]
    %v155 = vld [vmem:[#allocation8 + $0xb8] sm:$0xff]
    %v156 = vld [vmem:[#allocation8 + $0xc0] sm:$0xff]
    %v157 = vld [vmem:[#allocation8 + $0xc8] sm:$0xff]
    %v158 = vld [vmem:[#allocation8 + $0xd0] sm:$0xff]
    %v159 = vld [vmem:[#allocation8 + $0xd8] sm:$0xff]
    %v160 = vld [vmem:[#allocation8 + $0xe0] sm:$0xff]
    %v161 = vld [vmem:[#allocation8 + $0xe8] sm:$0xff]
    %v162 = vld [vmem:[#allocation8 + $0xf0] sm:$0xff]
    %v163 = vld [vmem:[#allocation8 + $0xf8] sm:$0xff]
    %v164 = vld [vmem:[#allocation11] sm:$0xf]
    %v166 = vperm.slane %v164, 0
    %v167 = vperm.slane %v164, 1
    %v168 = vperm.slane %v164, 2
    %v169 = vperm.slane %v164, 3
    %v182 = vunpack.c.l.b16 %v124
    %v183 = vunpack.c.l.b16 %v125
    %v184 = vunpack.c.l.b16 %v126
    %v185 = vunpack.c.l.b16 %v127
    %v186 = vunpack.c.l.b16 %v128
    %v187 = vunpack.c.l.b16 %v129
    %v188 = vunpack.c.l.b16 %v130
    %v189 = vunpack.c.l.b16 %v131
    %v190 = vpack.c.b16 %v183, %v182
    %v191 = vpack.c.b16 %v185, %v184
    %v192 = vpack.c.b16 %v187, %v186
    %v193 = vpack.c.b16 %v189, %v188
    %v230 = vunpack.c.l.b16 %v132
    %v231 = vunpack.c.h.b16 %v132
    %v232 = vunpack.c.l.b16 %v133
    %v233 = vunpack.c.h.b16 %v133
    %v234 = vunpack.c.l.b16 %v134
    %v235 = vunpack.c.h.b16 %v134
    %v236 = vunpack.c.l.b16 %v135
    %v237 = vunpack.c.h.b16 %v135
    %v238 = vunpack.c.l.b16 %v136
    %v239 = vunpack.c.h.b16 %v136
    %v240 = vunpack.c.l.b16 %v137
    %v241 = vunpack.c.h.b16 %v137
    %v242 = vunpack.c.l.b16 %v138
    %v243 = vunpack.c.h.b16 %v138
    %v244 = vunpack.c.l.b16 %v139
    %v245 = vunpack.c.h.b16 %v139
    %v246 = vunpack.c.l.b16 %v140
    %v247 = vunpack.c.h.b16 %v140
    %v248 = vunpack.c.l.b16 %v141
    %v249 = vunpack.c.h.b16 %v141
    %v250 = vunpack.c.l.b16 %v142
    %v251 = vunpack.c.h.b16 %v142
    %v252 = vunpack.c.l.b16 %v143
    %v253 = vunpack.c.h.b16 %v143
    %v254 = vunpack.c.l.b16 %v144
    %v255 = vunpack.c.h.b16 %v144
    %v256 = vunpack.c.l.b16 %v145
    %v257 = vunpack.c.h.b16 %v145
    %v258 = vunpack.c.l.b16 %v146
    %v259 = vunpack.c.h.b16 %v146
    %v260 = vunpack.c.l.b16 %v147
    %v261 = vunpack.c.h.b16 %v147
    %v262 = vunpack.c.l.b16 %v148
    %v263 = vunpack.c.h.b16 %v148
    %v264 = vunpack.c.l.b16 %v149
    %v265 = vunpack.c.h.b16 %v149
    %v266 = vunpack.c.l.b16 %v150
    %v267 = vunpack.c.h.b16 %v150
    %v268 = vunpack.c.l.b16 %v151
    %v269 = vunpack.c.h.b16 %v151
    %v270 = vunpack.c.l.b16 %v152
    %v271 = vunpack.c.h.b16 %v152
    %v272 = vunpack.c.l.b16 %v153
    %v273 = vunpack.c.h.b16 %v153
    %v274 = vunpack.c.l.b16 %v154
    %v275 = vunpack.c.h.b16 %v154
    %v276 = vunpack.c.l.b16 %v155
    %v277 = vunpack.c.h.b16 %v155
    %v278 = vunpack.c.l.b16 %v156
    %v279 = vunpack.c.h.b16 %v156
    %v280 = vunpack.c.l.b16 %v157
    %v281 = vunpack.c.h.b16 %v157
    %v282 = vunpack.c.l.b16 %v158
    %v283 = vunpack.c.h.b16 %v158
    %v284 = vunpack.c.l.b16 %v159
    %v285 = vunpack.c.h.b16 %v159
    %v286 = vunpack.c.l.b16 %v160
    %v287 = vunpack.c.h.b16 %v160
    %v288 = vunpack.c.l.b16 %v161
    %v289 = vunpack.c.h.b16 %v161
    %v290 = vunpack.c.l.b16 %v162
    %v291 = vunpack.c.h.b16 %v162
    %v292 = vunpack.c.l.b16 %v163
    %v293 = vunpack.c.h.b16 %v163
    %v294 = vpack.c.b16 %v234, %v230
    %v295 = vpack.c.b16 %v235, %v231
    %v296 = vpack.c.b16 %v236, %v232
    %v297 = vpack.c.b16 %v237, %v233
    %v298 = vpack.c.b16 %v242, %v238
    %v299 = vpack.c.b16 %v243, %v239
    %v300 = vpack.c.b16 %v244, %v240
    %v301 = vpack.c.b16 %v245, %v241
    %v302 = vpack.c.b16 %v250, %v246
    %v303 = vpack.c.b16 %v251, %v247
    %v304 = vpack.c.b16 %v252, %v248
    %v305 = vpack.c.b16 %v253, %v249
    %v306 = vpack.c.b16 %v258, %v254
    %v307 = vpack.c.b16 %v259, %v255
    %v308 = vpack.c.b16 %v260, %v256
    %v309 = vpack.c.b16 %v261, %v257
    %v310 = vpack.c.b16 %v266, %v262
    %v311 = vpack.c.b16 %v267, %v263
    %v312 = vpack.c.b16 %v268, %v264
    %v313 = vpack.c.b16 %v269, %v265
    %v314 = vpack.c.b16 %v274, %v270
    %v315 = vpack.c.b16 %v275, %v271
    %v316 = vpack.c.b16 %v276, %v272
    %v317 = vpack.c.b16 %v277, %v273
    %v318 = vpack.c.b16 %v282, %v278
    %v319 = vpack.c.b16 %v283, %v279
    %v320 = vpack.c.b16 %v284, %v280
    %v321 = vpack.c.b16 %v285, %v281
    %v322 = vpack.c.b16 %v290, %v286
    %v323 = vpack.c.b16 %v291, %v287
    %v324 = vpack.c.b16 %v292, %v288
    %v325 = vpack.c.b16 %v293, %v289
    %358 = vmatpush.bf16.msra.mxu0 %v322
    %359 = vmatpush.bf16.msra.mxu0 %v318
    %360 = vmatpush.bf16.msra.mxu0 %v314
    %361 = vmatpush.bf16.msra.mxu0 %v310
    %362 = vmatpush.bf16.msra.mxu0 %v306
    %363 = vmatpush.bf16.msra.mxu0 %v302
    %364 = vmatpush.bf16.msra.mxu0 %v298
    %365 = vmatpush.bf16.msra.mxu0 %v294
    %366 = vmatmul.bf16.gmra.mxu0 %v190
    %v367 = vpop.f32.mrf.mxu0
    %v368 = vadd.f32 %v166, %v367
    %v369 = vpop.f32.mrf.mxu0
    %v370 = vadd.f32 %v166, %v369
    %371 = vmatmul.bf16.gmra.mxu0 %v191
    %v372 = vpop.f32.mrf.mxu0
    %v373 = vadd.f32 %v166, %v372
    %v374 = vpop.f32.mrf.mxu0
    %v375 = vadd.f32 %v166, %v374
    %376 = vmatmul.bf16.gmra.mxu0 %v192
    %v377 = vpop.f32.mrf.mxu0
    %v378 = vadd.f32 %v166, %v377
    %v379 = vpop.f32.mrf.mxu0
    %v380 = vadd.f32 %v166, %v379
    %381 = vmatmul.bf16.gmra.mxu0 %v193
    %v382 = vpop.f32.mrf.mxu0
    %v383 = vadd.f32 %v166, %v382
    %v384 = vpop.f32.mrf.mxu0
    %v385 = vadd.f32 %v166, %v384
    %386 = vdwg.mxu0
    %387 = vmatpush.bf16.msra.mxu0 %v323
    %388 = vmatpush.bf16.msra.mxu0 %v319
    %389 = vmatpush.bf16.msra.mxu0 %v315
    %390 = vmatpush.bf16.msra.mxu0 %v311
    %391 = vmatpush.bf16.msra.mxu0 %v307
    %392 = vmatpush.bf16.msra.mxu0 %v303
    %393 = vmatpush.bf16.msra.mxu0 %v299
    %394 = vmatpush.bf16.msra.mxu0 %v295
    %395 = vmatmul.bf16.gmra.mxu0 %v190
    %v396 = vpop.f32.mrf.mxu0
    %v397 = vadd.f32 %v167, %v396
    %v398 = vpop.f32.mrf.mxu0
    %v399 = vadd.f32 %v167, %v398
    %400 = vmatmul.bf16.gmra.mxu0 %v191
    %v401 = vpop.f32.mrf.mxu0
    %v402 = vadd.f32 %v167, %v401
    %v403 = vpop.f32.mrf.mxu0
    %v404 = vadd.f32 %v167, %v403
    %405 = vmatmul.bf16.gmra.mxu0 %v192
    %v406 = vpop.f32.mrf.mxu0
    %v407 = vadd.f32 %v167, %v406
    %v408 = vpop.f32.mrf.mxu0
    %v409 = vadd.f32 %v167, %v408
    %410 = vmatmul.bf16.gmra.mxu0 %v193
    %v411 = vpop.f32.mrf.mxu0
    %v412 = vadd.f32 %v167, %v411
    %v413 = vpop.f32.mrf.mxu0
    %v414 = vadd.f32 %v167, %v413
    %415 = vdwg.mxu0
    %416 = vmatpush.bf16.msra.mxu0 %v324
    %417 = vmatpush.bf16.msra.mxu0 %v320
    %418 = vmatpush.bf16.msra.mxu0 %v316
    %419 = vmatpush.bf16.msra.mxu0 %v312
    %420 = vmatpush.bf16.msra.mxu0 %v308
    %421 = vmatpush.bf16.msra.mxu0 %v304
    %422 = vmatpush.bf16.msra.mxu0 %v300
    %423 = vmatpush.bf16.msra.mxu0 %v296
    %424 = vmatmul.bf16.gmra.mxu0 %v190
    %v425 = vpop.f32.mrf.mxu0
    %v426 = vadd.f32 %v168, %v425
    %v427 = vpop.f32.mrf.mxu0
    %v428 = vadd.f32 %v168, %v427
    %429 = vmatmul.bf16.gmra.mxu0 %v191
    %v430 = vpop.f32.mrf.mxu0
    %v431 = vadd.f32 %v168, %v430
    %v432 = vpop.f32.mrf.mxu0
    %v433 = vadd.f32 %v168, %v432
    %434 = vmatmul.bf16.gmra.mxu0 %v192
    %v435 = vpop.f32.mrf.mxu0
    %v436 = vadd.f32 %v168, %v435
    %v437 = vpop.f32.mrf.mxu0
    %v438 = vadd.f32 %v168, %v437
    %439 = vmatmul.bf16.gmra.mxu0 %v193
    %v440 = vpop.f32.mrf.mxu0
    %v441 = vadd.f32 %v168, %v440
    %v442 = vpop.f32.mrf.mxu0
    %v443 = vadd.f32 %v168, %v442
    %444 = vdwg.mxu0
    %445 = vmatpush.bf16.msra.mxu0 %v325
    %446 = vmatpush.bf16.msra.mxu0 %v321
    %447 = vmatpush.bf16.msra.mxu0 %v317
    %448 = vmatpush.bf16.msra.mxu0 %v313
    %449 = vmatpush.bf16.msra.mxu0 %v309
    %450 = vmatpush.bf16.msra.mxu0 %v305
    %451 = vmatpush.bf16.msra.mxu0 %v301
    %452 = vmatpush.bf16.msra.mxu0 %v297
    %453 = vmatmul.bf16.gmra.mxu0 %v190
    %v454 = vpop.f32.mrf.mxu0
    %v455 = vadd.f32 %v169, %v454
    %v456 = vpop.f32.mrf.mxu0
    %v457 = vadd.f32 %v169, %v456
    %458 = vmatmul.bf16.gmra.mxu0 %v191
    %v459 = vpop.f32.mrf.mxu0
    %v460 = vadd.f32 %v169, %v459
    %v461 = vpop.f32.mrf.mxu0
    %v462 = vadd.f32 %v169, %v461
    %463 = vmatmul.bf16.gmra.mxu0 %v192
    %v464 = vpop.f32.mrf.mxu0
    %v465 = vadd.f32 %v169, %v464
    %v466 = vpop.f32.mrf.mxu0
    %v467 = vadd.f32 %v169, %v466
    %468 = vmatmul.bf16.gmra.mxu0 %v193
    %v469 = vpop.f32.mrf.mxu0
    %v470 = vadd.f32 %v169, %v469
    %v471 = vpop.f32.mrf.mxu0
    %v472 = vadd.f32 %v169, %v471
    %473 = vdwg.mxu0
    %474 = vst [vmem:[#allocation4] sm:$0xff] %v368
    %475 = vst [vmem:[#allocation4 + $0x8] sm:$0xff] %v397
    %476 = vst [vmem:[#allocation4 + $0x10] sm:$0xff] %v426
    %477 = vst [vmem:[#allocation4 + $0x18] sm:$0xff] %v455
    %478 = vst [vmem:[#allocation4 + $0x20] sm:$0xff] %v370
    %479 = vst [vmem:[#allocation4 + $0x28] sm:$0xff] %v399
    %480 = vst [vmem:[#allocation4 + $0x30] sm:$0xff] %v428
    %481 = vst [vmem:[#allocation4 + $0x38] sm:$0xff] %v457
    %482 = vst [vmem:[#allocation4 + $0x40] sm:$0xff] %v373
    %483 = vst [vmem:[#allocation4 + $0x48] sm:$0xff] %v402
    %484 = vst [vmem:[#allocation4 + $0x50] sm:$0xff] %v431
    %485 = vst [vmem:[#allocation4 + $0x58] sm:$0xff] %v460
    %486 = vst [vmem:[#allocation4 + $0x60] sm:$0xff] %v375
    %487 = vst [vmem:[#allocation4 + $0x68] sm:$0xff] %v404
    %488 = vst [vmem:[#allocation4 + $0x70] sm:$0xff] %v433
    %489 = vst [vmem:[#allocation4 + $0x78] sm:$0xff] %v462
    %490 = vst [vmem:[#allocation4 + $0x80] sm:$0xff] %v378
    %491 = vst [vmem:[#allocation4 + $0x88] sm:$0xff] %v407
    %492 = vst [vmem:[#allocation4 + $0x90] sm:$0xff] %v436
    %493 = vst [vmem:[#allocation4 + $0x98] sm:$0xff] %v465
    %494 = vst [vmem:[#allocation4 + $0xa0] sm:$0xff] %v380
    %495 = vst [vmem:[#allocation4 + $0xa8] sm:$0xff] %v409
    %496 = vst [vmem:[#allocation4 + $0xb0] sm:$0xff] %v438
    %497 = vst [vmem:[#allocation4 + $0xb8] sm:$0xff] %v467
    %498 = vst [vmem:[#allocation4 + $0xc0] sm:$0xff] %v383
    %499 = vst [vmem:[#allocation4 + $0xc8] sm:$0xff] %v412
    %500 = vst [vmem:[#allocation4 + $0xd0] sm:$0xff] %v441
    %501 = vst [vmem:[#allocation4 + $0xd8] sm:$0xff] %v470
    %502 = vst [vmem:[#allocation4 + $0xe0] sm:$0xff] %v385
    %503 = vst [vmem:[#allocation4 + $0xe8] sm:$0xff] %v414
    %504 = vst [vmem:[#allocation4 + $0xf0] sm:$0xff] %v443
    %505 = vst [vmem:[#allocation4 + $0xf8] sm:$0xff] %v472
    %v506 = vld [vmem:[#allocation10] sm:$0xff]
    %v507 = vld [vmem:[#allocation10 + $0x8] sm:$0xff]
    %v508 = vld [vmem:[#allocation10 + $0x10] sm:$0xff]
    %v509 = vld [vmem:[#allocation10 + $0x18] sm:$0xff]
    %v510 = vld [vmem:[#allocation10 + $0x20] sm:$0xff]
    %v511 = vld [vmem:[#allocation10 + $0x28] sm:$0xff]
    %v512 = vld [vmem:[#allocation10 + $0x30] sm:$0xff]
    %v513 = vld [vmem:[#allocation10 + $0x38] sm:$0xff]
    %v514 = vld [vmem:[#allocation10 + $0x40] sm:$0xff]
    %v515 = vld [vmem:[#allocation10 + $0x48] sm:$0xff]
    %v516 = vld [vmem:[#allocation10 + $0x50] sm:$0xff]
    %v517 = vld [vmem:[#allocation10 + $0x58] sm:$0xff]
    %v518 = vld [vmem:[#allocation10 + $0x60] sm:$0xff]
    %v519 = vld [vmem:[#allocation10 + $0x68] sm:$0xff]
    %v520 = vld [vmem:[#allocation10 + $0x70] sm:$0xff]
    %v521 = vld [vmem:[#allocation10 + $0x78] sm:$0xff]
    %v522 = vld [vmem:[#allocation10 + $0x80] sm:$0xff]
    %v523 = vld [vmem:[#allocation10 + $0x88] sm:$0xff]
    %v524 = vld [vmem:[#allocation10 + $0x90] sm:$0xff]
    %v525 = vld [vmem:[#allocation10 + $0x98] sm:$0xff]
    %v526 = vld [vmem:[#allocation10 + $0xa0] sm:$0xff]
    %v527 = vld [vmem:[#allocation10 + $0xa8] sm:$0xff]
    %v528 = vld [vmem:[#allocation10 + $0xb0] sm:$0xff]
    %v529 = vld [vmem:[#allocation10 + $0xb8] sm:$0xff]
    %v530 = vld [vmem:[#allocation10 + $0xc0] sm:$0xff]
    %v531 = vld [vmem:[#allocation10 + $0xc8] sm:$0xff]
    %v532 = vld [vmem:[#allocation10 + $0xd0] sm:$0xff]
    %v533 = vld [vmem:[#allocation10 + $0xd8] sm:$0xff]
    %v534 = vld [vmem:[#allocation10 + $0xe0] sm:$0xff]
    %v535 = vld [vmem:[#allocation10 + $0xe8] sm:$0xff]
    %v536 = vld [vmem:[#allocation10 + $0xf0] sm:$0xff]
    %v537 = vld [vmem:[#allocation10 + $0xf8] sm:$0xff]
    %v538 = vld [vmem:[#allocation2] sm:$0xff]
    %v539 = vld [vmem:[#allocation3] sm:$0xff]
    %s540 = smul.u32 0, 4
    %s541 = smul.addr %s540, 8
    %s542 = scalar_lea.vmem [#allocation4], %s541
    %v543 = vld [vmem:[%s542] sm:$0xff]
    %v544 = vld [vmem:[%s542 + $0x8] sm:$0xff]
    %v545 = vld [vmem:[%s542 + $0x10] sm:$0xff]
    %v546 = vld [vmem:[%s542 + $0x18] sm:$0xff]
    %v547 = vpack.c.bf16 %v538, %v538
    %v580 = vunpack.c.l.b16 %v506
    %v581 = vunpack.c.h.b16 %v506
    %v582 = vunpack.c.l.b16 %v507
    %v583 = vunpack.c.h.b16 %v507
    %v584 = vunpack.c.l.b16 %v508
    %v585 = vunpack.c.h.b16 %v508
    %v586 = vunpack.c.l.b16 %v509
    %v587 = vunpack.c.h.b16 %v509
    %v588 = vunpack.c.l.b16 %v510
    %v589 = vunpack.c.h.b16 %v510
    %v590 = vunpack.c.l.b16 %v511
    %v591 = vunpack.c.h.b16 %v511
    %v592 = vunpack.c.l.b16 %v512
    %v593 = vunpack.c.h.b16 %v512
    %v594 = vunpack.c.l.b16 %v513
    %v595 = vunpack.c.h.b16 %v513
    %v596 = vunpack.c.l.b16 %v514
    %v597 = vunpack.c.h.b16 %v514
    %v598 = vunpack.c.l.b16 %v515
    %v599 = vunpack.c.h.b16 %v515
    %v600 = vunpack.c.l.b16 %v516
    %v601 = vunpack.c.h.b16 %v516
    %v602 = vunpack.c.l.b16 %v517
    %v603 = vunpack.c.h.b16 %v517
    %v604 = vunpack.c.l.b16 %v518
    %v605 = vunpack.c.h.b16 %v518
    %v606 = vunpack.c.l.b16 %v519
    %v607 = vunpack.c.h.b16 %v519
    %v608 = vunpack.c.l.b16 %v520
    %v609 = vunpack.c.h.b16 %v520
    %v610 = vunpack.c.l.b16 %v521
    %v611 = vunpack.c.h.b16 %v521
    %v612 = vunpack.c.l.b16 %v522
    %v613 = vunpack.c.h.b16 %v522
    %v614 = vunpack.c.l.b16 %v523
    %v615 = vunpack.c.h.b16 %v523
    %v616 = vunpack.c.l.b16 %v524
    %v617 = vunpack.c.h.b16 %v524
    %v618 = vunpack.c.l.b16 %v525
    %v619 = vunpack.c.h.b16 %v525
    %v620 = vunpack.c.l.b16 %v526
    %v621 = vunpack.c.h.b16 %v526
    %v622 = vunpack.c.l.b16 %v527
    %v623 = vunpack.c.h.b16 %v527
    %v624 = vunpack.c.l.b16 %v528
    %v625 = vunpack.c.h.b16 %v528
    %v626 = vunpack.c.l.b16 %v529
    %v627 = vunpack.c.h.b16 %v529
    %v628 = vunpack.c.l.b16 %v530
    %v629 = vunpack.c.h.b16 %v530
    %v630 = vunpack.c.l.b16 %v531
    %v631 = vunpack.c.h.b16 %v531
    %v632 = vunpack.c.l.b16 %v532
    %v633 = vunpack.c.h.b16 %v532
    %v634 = vunpack.c.l.b16 %v533
    %v635 = vunpack.c.h.b16 %v533
    %v636 = vunpack.c.l.b16 %v534
    %v637 = vunpack.c.h.b16 %v534
    %v638 = vunpack.c.l.b16 %v535
    %v639 = vunpack.c.h.b16 %v535
    %v640 = vunpack.c.l.b16 %v536
    %v641 = vunpack.c.h.b16 %v536
    %v642 = vunpack.c.l.b16 %v537
    %v643 = vunpack.c.h.b16 %v537
    %v644 = vpack.c.b16 %v584, %v580
    %v645 = vpack.c.b16 %v585, %v581
    %v646 = vpack.c.b16 %v586, %v582
    %v647 = vpack.c.b16 %v587, %v583
    %v648 = vpack.c.b16 %v592, %v588
    %v649 = vpack.c.b16 %v593, %v589
    %v650 = vpack.c.b16 %v594, %v590
    %v651 = vpack.c.b16 %v595, %v591
    %v652 = vpack.c.b16 %v600, %v596
    %v653 = vpack.c.b16 %v601, %v597
    %v654 = vpack.c.b16 %v602, %v598
    %v655 = vpack.c.b16 %v603, %v599
    %v656 = vpack.c.b16 %v608, %v604
    %v657 = vpack.c.b16 %v609, %v605
    %v658 = vpack.c.b16 %v610, %v606
    %v659 = vpack.c.b16 %v611, %v607
    %v660 = vpack.c.b16 %v616, %v612
    %v661 = vpack.c.b16 %v617, %v613
    %v662 = vpack.c.b16 %v618, %v614
    %v663 = vpack.c.b16 %v619, %v615
    %v664 = vpack.c.b16 %v624, %v620
    %v665 = vpack.c.b16 %v625, %v621
    %v666 = vpack.c.b16 %v626, %v622
    %v667 = vpack.c.b16 %v627, %v623
    %v668 = vpack.c.b16 %v632, %v628
    %v669 = vpack.c.b16 %v633, %v629
    %v670 = vpack.c.b16 %v634, %v630
    %v671 = vpack.c.b16 %v635, %v631
    %v672 = vpack.c.b16 %v640, %v636
    %v673 = vpack.c.b16 %v641, %v637
    %v674 = vpack.c.b16 %v642, %v638
    %v675 = vpack.c.b16 %v643, %v639
    %708 = vmatpush.bf16.msra.mxu0 %v672
    %709 = vmatpush.bf16.msra.mxu0 %v668
    %710 = vmatpush.bf16.msra.mxu0 %v664
    %711 = vmatpush.bf16.msra.mxu0 %v660
    %712 = vmatpush.bf16.msra.mxu0 %v656
    %713 = vmatpush.bf16.msra.mxu0 %v652
    %714 = vmatpush.bf16.msra.mxu0 %v648
    %715 = vmatpush.bf16.msra.mxu0 %v644
    %716 = vmatmul.bf16.gmra.mxu0 %v547
    %v717 = vpop.f32.mrf.mxu0
    %v718 = vadd.f32 0.0, %v717
    %v719 = vpop.f32.mrf.mxu0
    %720 = vdwg.mxu0
    %721 = vmatpush.bf16.msra.mxu0 %v673
    %722 = vmatpush.bf16.msra.mxu0 %v669
    %723 = vmatpush.bf16.msra.mxu0 %v665
    %724 = vmatpush.bf16.msra.mxu0 %v661
    %725 = vmatpush.bf16.msra.mxu0 %v657
    %726 = vmatpush.bf16.msra.mxu0 %v653
    %727 = vmatpush.bf16.msra.mxu0 %v649
    %728 = vmatpush.bf16.msra.mxu0 %v645
    %729 = vmatmul.bf16.gmra.mxu0 %v547
    %v730 = vpop.f32.mrf.mxu0
    %v731 = vadd.f32 0.0, %v730
    %v732 = vpop.f32.mrf.mxu0
    %733 = vdwg.mxu0
    %734 = vmatpush.bf16.msra.mxu0 %v674
    %735 = vmatpush.bf16.msra.mxu0 %v670
    %736 = vmatpush.bf16.msra.mxu0 %v666
    %737 = vmatpush.bf16.msra.mxu0 %v662
    %738 = vmatpush.bf16.msra.mxu0 %v658
    %739 = vmatpush.bf16.msra.mxu0 %v654
    %740 = vmatpush.bf16.msra.mxu0 %v650
    %741 = vmatpush.bf16.msra.mxu0 %v646
    %742 = vmatmul.bf16.gmra.mxu0 %v547
    %v743 = vpop.f32.mrf.mxu0
    %v744 = vadd.f32 0.0, %v743
    %v745 = vpop.f32.mrf.mxu0
    %746 = vdwg.mxu0
    %747 = vmatpush.bf16.msra.mxu0 %v675
    %748 = vmatpush.bf16.msra.mxu0 %v671
    %749 = vmatpush.bf16.msra.mxu0 %v667
    %750 = vmatpush.bf16.msra.mxu0 %v663
    %751 = vmatpush.bf16.msra.mxu0 %v659
    %752 = vmatpush.bf16.msra.mxu0 %v655
    %753 = vmatpush.bf16.msra.mxu0 %v651
    %754 = vmatpush.bf16.msra.mxu0 %v647
    %755 = vmatmul.bf16.gmra.mxu0 %v547
    %v756 = vpop.f32.mrf.mxu0
    %v757 = vadd.f32 0.0, %v756
    %v758 = vpop.f32.mrf.mxu0
    %759 = vdwg.mxu0
    %v760 = vadd.f32 %v543, %v718
    %v761 = vadd.f32 %v544, %v731
    %v762 = vadd.f32 %v545, %v744
    %v763 = vadd.f32 %v546, %v757
    %v764 = vmul.f32 %v760, 0.2
    %v765 = vmul.f32 %v761, 0.2
    %v766 = vmul.f32 %v762, 0.2
    %v767 = vadd.f32 %v764, 0.5
    %v768 = vadd.f32 %v765, 0.5
    %v769 = vadd.f32 %v766, 0.5
    %v770 = vmax.f32 %v767, 0.0
    %v771 = vmax.f32 %v768, 0.0
    %v772 = vmax.f32 %v769, 0.0
    %v773 = vmin.f32 %v770, 1.0
    %v774 = vmin.f32 %v771, 1.0
    %v775 = vmin.f32 %v772, 1.0
    %v776 = vtanh.pop %v763
    %v777 = vmul.f32 %v774, %v539
    %v778 = vmul.f32 %v773, %v776
    %v779 = vadd.f32 %v777, %v778
    %v780 = vtanh.pop %v779
    %v781 = vmul.f32 %v775, %v780
    %782 = vst [vmem:[#allocation16] sm:$0xff] %v781
    %s783 = smul.u32 1, 4
    %s784 = smul.addr %s783, 8
    %s785 = scalar_lea.vmem [#allocation4], %s784
    %v786 = vld [vmem:[%s785] sm:$0xff]
    %v787 = vld [vmem:[%s785 + $0x8] sm:$0xff]
    %v788 = vld [vmem:[%s785 + $0x10] sm:$0xff]
    %v789 = vld [vmem:[%s785 + $0x18] sm:$0xff]
    %v790 = vpack.c.bf16 %v781, %v781
    %791 = vmatpush.bf16.msra.mxu0 %v672
    %792 = vmatpush.bf16.msra.mxu0 %v668
    %793 = vmatpush.bf16.msra.mxu0 %v664
    %794 = vmatpush.bf16.msra.mxu0 %v660
    %795 = vmatpush.bf16.msra.mxu0 %v656
    %796 = vmatpush.bf16.msra.mxu0 %v652
    %797 = vmatpush.bf16.msra.mxu0 %v648
    %798 = vmatpush.bf16.msra.mxu0 %v644
    %799 = vmatmul.bf16.gmra.mxu0 %v790
    %v800 = vpop.f32.mrf.mxu0
    %v801 = vadd.f32 0.0, %v800
    %v802 = vpop.f32.mrf.mxu0
    %803 = vdwg.mxu0
    %804 = vmatpush.bf16.msra.mxu0 %v673
    %805 = vmatpush.bf16.msra.mxu0 %v669
    %806 = vmatpush.bf16.msra.mxu0 %v665
    %807 = vmatpush.bf16.msra.mxu0 %v661
    %808 = vmatpush.bf16.msra.mxu0 %v657
    %809 = vmatpush.bf16.msra.mxu0 %v653
    %810 = vmatpush.bf16.msra.mxu0 %v649
    %811 = vmatpush.bf16.msra.mxu0 %v645
    %812 = vmatmul.bf16.gmra.mxu0 %v790
    %v813 = vpop.f32.mrf.mxu0
    %v814 = vadd.f32 0.0, %v813
    %v815 = vpop.f32.mrf.mxu0
    %816 = vdwg.mxu0
    %817 = vmatpush.bf16.msra.mxu0 %v674
    %818 = vmatpush.bf16.msra.mxu0 %v670
    %819 = vmatpush.bf16.msra.mxu0 %v666
    %820 = vmatpush.bf16.msra.mxu0 %v662
    %821 = vmatpush.bf16.msra.mxu0 %v658
    %822 = vmatpush.bf16.msra.mxu0 %v654
    %823 = vmatpush.bf16.msra.mxu0 %v650
    %824 = vmatpush.bf16.msra.mxu0 %v646
    %825 = vmatmul.bf16.gmra.mxu0 %v790
    %v826 = vpop.f32.mrf.mxu0
    %v827 = vadd.f32 0.0, %v826
    %v828 = vpop.f32.mrf.mxu0
    %829 = vdwg.mxu0
    %830 = vmatpush.bf16.msra.mxu0 %v675
    %831 = vmatpush.bf16.msra.mxu0 %v671
    %832 = vmatpush.bf16.msra.mxu0 %v667
    %833 = vmatpush.bf16.msra.mxu0 %v663
    %834 = vmatpush.bf16.msra.mxu0 %v659
    %835 = vmatpush.bf16.msra.mxu0 %v655
    %836 = vmatpush.bf16.msra.mxu0 %v651
    %837 = vmatpush.bf16.msra.mxu0 %v647
    %838 = vmatmul.bf16.gmra.mxu0 %v790
    %v839 = vpop.f32.mrf.mxu0
    %v840 = vadd.f32 0.0, %v839
    %v841 = vpop.f32.mrf.mxu0
    %842 = vdwg.mxu0
    %v843 = vadd.f32 %v786, %v801
    %v844 = vadd.f32 %v787, %v814
    %v845 = vadd.f32 %v788, %v827
    %v846 = vadd.f32 %v789, %v840
    %v847 = vmul.f32 %v843, 0.2
    %v848 = vmul.f32 %v844, 0.2
    %v849 = vmul.f32 %v845, 0.2
    %v850 = vadd.f32 %v847, 0.5
    %v851 = vadd.f32 %v848, 0.5
    %v852 = vadd.f32 %v849, 0.5
    %v853 = vmax.f32 %v850, 0.0
    %v854 = vmax.f32 %v851, 0.0
    %v855 = vmax.f32 %v852, 0.0
    %v856 = vmin.f32 %v853, 1.0
    %v857 = vmin.f32 %v854, 1.0
    %v858 = vmin.f32 %v855, 1.0
    %v859 = vtanh.pop %v846
    %v860 = vmul.f32 %v857, %v779
    %v861 = vmul.f32 %v856, %v859
    %v862 = vadd.f32 %v860, %v861
    %v863 = vtanh.pop %v862
    %v864 = vmul.f32 %v858, %v863
    %s865 = scalar_lea.vmem [#allocation16], 8
    %866 = vst [vmem:[%s865] sm:$0xff] %v864
    %s867 = smul.u32 2, 4
    %s868 = smul.addr %s867, 8
    %s869 = scalar_lea.vmem [#allocation4], %s868
    %v870 = vld [vmem:[%s869] sm:$0xff]
    %v871 = vld [vmem:[%s869 + $0x8] sm:$0xff]
    %v872 = vld [vmem:[%s869 + $0x10] sm:$0xff]
    %v873 = vld [vmem:[%s869 + $0x18] sm:$0xff]
    %v874 = vpack.c.bf16 %v864, %v864
    %875 = vmatpush.bf16.msra.mxu0 %v672
    %876 = vmatpush.bf16.msra.mxu0 %v668
    %877 = vmatpush.bf16.msra.mxu0 %v664
    %878 = vmatpush.bf16.msra.mxu0 %v660
    %879 = vmatpush.bf16.msra.mxu0 %v656
    %880 = vmatpush.bf16.msra.mxu0 %v652
    %881 = vmatpush.bf16.msra.mxu0 %v648
    %882 = vmatpush.bf16.msra.mxu0 %v644
    %883 = vmatmul.bf16.gmra.mxu0 %v874
    %v884 = vpop.f32.mrf.mxu0
    %v885 = vadd.f32 0.0, %v884
    %v886 = vpop.f32.mrf.mxu0
    %887 = vdwg.mxu0
    %888 = vmatpush.bf16.msra.mxu0 %v673
    %889 = vmatpush.bf16.msra.mxu0 %v669
    %890 = vmatpush.bf16.msra.mxu0 %v665
    %891 = vmatpush.bf16.msra.mxu0 %v661
    %892 = vmatpush.bf16.msra.mxu0 %v657
    %893 = vmatpush.bf16.msra.mxu0 %v653
    %894 = vmatpush.bf16.msra.mxu0 %v649
    %895 = vmatpush.bf16.msra.mxu0 %v645
    %896 = vmatmul.bf16.gmra.mxu0 %v874
    %v897 = vpop.f32.mrf.mxu0
    %v898 = vadd.f32 0.0, %v897
    %v899 = vpop.f32.mrf.mxu0
    %900 = vdwg.mxu0
    %901 = vmatpush.bf16.msra.mxu0 %v674
    %902 = vmatpush.bf16.msra.mxu0 %v670
    %903 = vmatpush.bf16.msra.mxu0 %v666
    %904 = vmatpush.bf16.msra.mxu0 %v662
    %905 = vmatpush.bf16.msra.mxu0 %v658
    %906 = vmatpush.bf16.msra.mxu0 %v654
    %907 = vmatpush.bf16.msra.mxu0 %v650
    %908 = vmatpush.bf16.msra.mxu0 %v646
    %909 = vmatmul.bf16.gmra.mxu0 %v874
    %v910 = vpop.f32.mrf.mxu0
    %v911 = vadd.f32 0.0, %v910
    %v912 = vpop.f32.mrf.mxu0
    %913 = vdwg.mxu0
    %914 = vmatpush.bf16.msra.mxu0 %v675
    %915 = vmatpush.bf16.msra.mxu0 %v671
    %916 = vmatpush.bf16.msra.mxu0 %v667
    %917 = vmatpush.bf16.msra.mxu0 %v663
    %918 = vmatpush.bf16.msra.mxu0 %v659
    %919 = vmatpush.bf16.msra.mxu0 %v655
    %920 = vmatpush.bf16.msra.mxu0 %v651
    %921 = vmatpush.bf16.msra.mxu0 %v647
    %922 = vmatmul.bf16.gmra.mxu0 %v874
    %v923 = vpop.f32.mrf.mxu0
    %v924 = vadd.f32 0.0, %v923
    %v925 = vpop.f32.mrf.mxu0
    %926 = vdwg.mxu0
    %v927 = vadd.f32 %v870, %v885
    %v928 = vadd.f32 %v871, %v898
    %v929 = vadd.f32 %v872, %v911
    %v930 = vadd.f32 %v873, %v924
    %v931 = vmul.f32 %v927, 0.2
    %v932 = vmul.f32 %v928, 0.2
    %v933 = vmul.f32 %v929, 0.2
    %v934 = vadd.f32 %v931, 0.5
    %v935 = vadd.f32 %v932, 0.5
    %v936 = vadd.f32 %v933, 0.5
    %v937 = vmax.f32 %v934, 0.0
    %v938 = vmax.f32 %v935, 0.0
    %v939 = vmax.f32 %v936, 0.0
    %v940 = vmin.f32 %v937, 1.0
    %v941 = vmin.f32 %v938, 1.0
    %v942 = vmin.f32 %v939, 1.0
    %v943 = vtanh.pop %v930
    %v944 = vmul.f32 %v941, %v862
    %v945 = vmul.f32 %v940, %v943
    %v946 = vadd.f32 %v944, %v945
    %v947 = vtanh.pop %v946
    %v948 = vmul.f32 %v942, %v947
    %s949 = scalar_lea.vmem [#allocation16], 16
    %950 = vst [vmem:[%s949] sm:$0xff] %v948
    %s951 = smul.u32 3, 4
    %s952 = smul.addr %s951, 8
    %s953 = scalar_lea.vmem [#allocation4], %s952
    %v954 = vld [vmem:[%s953] sm:$0xff]
    %v955 = vld [vmem:[%s953 + $0x8] sm:$0xff]
    %v956 = vld [vmem:[%s953 + $0x10] sm:$0xff]
    %v957 = vld [vmem:[%s953 + $0x18] sm:$0xff]
    %v958 = vpack.c.bf16 %v948, %v948
    %959 = vmatpush.bf16.msra.mxu0 %v672
    %960 = vmatpush.bf16.msra.mxu0 %v668
    %961 = vmatpush.bf16.msra.mxu0 %v664
    %962 = vmatpush.bf16.msra.mxu0 %v660
    %963 = vmatpush.bf16.msra.mxu0 %v656
    %964 = vmatpush.bf16.msra.mxu0 %v652
    %965 = vmatpush.bf16.msra.mxu0 %v648
    %966 = vmatpush.bf16.msra.mxu0 %v644
    %967 = vmatmul.bf16.gmra.mxu0 %v958
    %v968 = vpop.f32.mrf.mxu0
    %v969 = vadd.f32 0.0, %v968
    %v970 = vpop.f32.mrf.mxu0
    %971 = vdwg.mxu0
    %972 = vmatpush.bf16.msra.mxu0 %v673
    %973 = vmatpush.bf16.msra.mxu0 %v669
    %974 = vmatpush.bf16.msra.mxu0 %v665
    %975 = vmatpush.bf16.msra.mxu0 %v661
    %976 = vmatpush.bf16.msra.mxu0 %v657
    %977 = vmatpush.bf16.msra.mxu0 %v653
    %978 = vmatpush.bf16.msra.mxu0 %v649
    %979 = vmatpush.bf16.msra.mxu0 %v645
    %980 = vmatmul.bf16.gmra.mxu0 %v958
    %v981 = vpop.f32.mrf.mxu0
    %v982 = vadd.f32 0.0, %v981
    %v983 = vpop.f32.mrf.mxu0
    %984 = vdwg.mxu0
    %985 = vmatpush.bf16.msra.mxu0 %v674
    %986 = vmatpush.bf16.msra.mxu0 %v670
    %987 = vmatpush.bf16.msra.mxu0 %v666
    %988 = vmatpush.bf16.msra.mxu0 %v662
    %989 = vmatpush.bf16.msra.mxu0 %v658
    %990 = vmatpush.bf16.msra.mxu0 %v654
    %991 = vmatpush.bf16.msra.mxu0 %v650
    %992 = vmatpush.bf16.msra.mxu0 %v646
    %993 = vmatmul.bf16.gmra.mxu0 %v958
    %v994 = vpop.f32.mrf.mxu0
    %v995 = vadd.f32 0.0, %v994
    %v996 = vpop.f32.mrf.mxu0
    %997 = vdwg.mxu0
    %998 = vmatpush.bf16.msra.mxu0 %v675
    %999 = vmatpush.bf16.msra.mxu0 %v671
    %1000 = vmatpush.bf16.msra.mxu0 %v667
    %1001 = vmatpush.bf16.msra.mxu0 %v663
    %1002 = vmatpush.bf16.msra.mxu0 %v659
    %1003 = vmatpush.bf16.msra.mxu0 %v655
    %1004 = vmatpush.bf16.msra.mxu0 %v651
    %1005 = vmatpush.bf16.msra.mxu0 %v647
    %1006 = vmatmul.bf16.gmra.mxu0 %v958
    %v1007 = vpop.f32.mrf.mxu0
    %v1008 = vadd.f32 0.0, %v1007
    %v1009 = vpop.f32.mrf.mxu0
    %1010 = vdwg.mxu0
    %v1011 = vadd.f32 %v954, %v969
    %v1012 = vadd.f32 %v955, %v982
    %v1013 = vadd.f32 %v956, %v995
    %v1014 = vadd.f32 %v957, %v1008
    %v1015 = vmul.f32 %v1011, 0.2
    %v1016 = vmul.f32 %v1012, 0.2
    %v1017 = vmul.f32 %v1013, 0.2
    %v1018 = vadd.f32 %v1015, 0.5
    %v1019 = vadd.f32 %v1016, 0.5
    %v1020 = vadd.f32 %v1017, 0.5
    %v1021 = vmax.f32 %v1018, 0.0
    %v1022 = vmax.f32 %v1019, 0.0
    %v1023 = vmax.f32 %v1020, 0.0
    %v1024 = vmin.f32 %v1021, 1.0
    %v1025 = vmin.f32 %v1022, 1.0
    %v1026 = vmin.f32 %v1023, 1.0
    %v1027 = vtanh.pop %v1014
    %v1028 = vmul.f32 %v1025, %v946
    %v1029 = vmul.f32 %v1024, %v1027
    %v1030 = vadd.f32 %v1028, %v1029
    %v1031 = vtanh.pop %v1030
    %v1032 = vmul.f32 %v1026, %v1031
    %s1033 = scalar_lea.vmem [#allocation16], 24
    %1034 = vst [vmem:[%s1033] sm:$0xff] %v1032
    %s1035 = smul.u32 4, 4
    %s1036 = smul.addr %s1035, 8
    %s1037 = scalar_lea.vmem [#allocation4], %s1036
    %v1038 = vld [vmem:[%s1037] sm:$0xff]
    %v1039 = vld [vmem:[%s1037 + $0x8] sm:$0xff]
    %v1040 = vld [vmem:[%s1037 + $0x10] sm:$0xff]
    %v1041 = vld [vmem:[%s1037 + $0x18] sm:$0xff]
    %v1042 = vpack.c.bf16 %v1032, %v1032
    %1043 = vmatpush.bf16.msra.mxu0 %v672
    %1044 = vmatpush.bf16.msra.mxu0 %v668
    %1045 = vmatpush.bf16.msra.mxu0 %v664
    %1046 = vmatpush.bf16.msra.mxu0 %v660
    %1047 = vmatpush.bf16.msra.mxu0 %v656
    %1048 = vmatpush.bf16.msra.mxu0 %v652
    %1049 = vmatpush.bf16.msra.mxu0 %v648
    %1050 = vmatpush.bf16.msra.mxu0 %v644
    %1051 = vmatmul.bf16.gmra.mxu0 %v1042
    %v1052 = vpop.f32.mrf.mxu0
    %v1053 = vadd.f32 0.0, %v1052
    %v1054 = vpop.f32.mrf.mxu0
    %1055 = vdwg.mxu0
    %1056 = vmatpush.bf16.msra.mxu0 %v673
    %1057 = vmatpush.bf16.msra.mxu0 %v669
    %1058 = vmatpush.bf16.msra.mxu0 %v665
    %1059 = vmatpush.bf16.msra.mxu0 %v661
    %1060 = vmatpush.bf16.msra.mxu0 %v657
    %1061 = vmatpush.bf16.msra.mxu0 %v653
    %1062 = vmatpush.bf16.msra.mxu0 %v649
    %1063 = vmatpush.bf16.msra.mxu0 %v645
    %1064 = vmatmul.bf16.gmra.mxu0 %v1042
    %v1065 = vpop.f32.mrf.mxu0
    %v1066 = vadd.f32 0.0, %v1065
    %v1067 = vpop.f32.mrf.mxu0
    %1068 = vdwg.mxu0
    %1069 = vmatpush.bf16.msra.mxu0 %v674
    %1070 = vmatpush.bf16.msra.mxu0 %v670
    %1071 = vmatpush.bf16.msra.mxu0 %v666
    %1072 = vmatpush.bf16.msra.mxu0 %v662
    %1073 = vmatpush.bf16.msra.mxu0 %v658
    %1074 = vmatpush.bf16.msra.mxu0 %v654
    %1075 = vmatpush.bf16.msra.mxu0 %v650
    %1076 = vmatpush.bf16.msra.mxu0 %v646
    %1077 = vmatmul.bf16.gmra.mxu0 %v1042
    %v1078 = vpop.f32.mrf.mxu0
    %v1079 = vadd.f32 0.0, %v1078
    %v1080 = vpop.f32.mrf.mxu0
    %1081 = vdwg.mxu0
    %1082 = vmatpush.bf16.msra.mxu0 %v675
    %1083 = vmatpush.bf16.msra.mxu0 %v671
    %1084 = vmatpush.bf16.msra.mxu0 %v667
    %1085 = vmatpush.bf16.msra.mxu0 %v663
    %1086 = vmatpush.bf16.msra.mxu0 %v659
    %1087 = vmatpush.bf16.msra.mxu0 %v655
    %1088 = vmatpush.bf16.msra.mxu0 %v651
    %1089 = vmatpush.bf16.msra.mxu0 %v647
    %1090 = vmatmul.bf16.gmra.mxu0 %v1042
    %v1091 = vpop.f32.mrf.mxu0
    %v1092 = vadd.f32 0.0, %v1091
    %v1093 = vpop.f32.mrf.mxu0
    %1094 = vdwg.mxu0
    %v1095 = vadd.f32 %v1038, %v1053
    %v1096 = vadd.f32 %v1039, %v1066
    %v1097 = vadd.f32 %v1040, %v1079
    %v1098 = vadd.f32 %v1041, %v1092
    %v1099 = vmul.f32 %v1095, 0.2
    %v1100 = vmul.f32 %v1096, 0.2
    %v1101 = vmul.f32 %v1097, 0.2
    %v1102 = vadd.f32 %v1099, 0.5
    %v1103 = vadd.f32 %v1100, 0.5
    %v1104 = vadd.f32 %v1101, 0.5
    %v1105 = vmax.f32 %v1102, 0.0
    %v1106 = vmax.f32 %v1103, 0.0
    %v1107 = vmax.f32 %v1104, 0.0
    %v1108 = vmin.f32 %v1105, 1.0
    %v1109 = vmin.f32 %v1106, 1.0
    %v1110 = vmin.f32 %v1107, 1.0
    %v1111 = vtanh.pop %v1098
    %v1112 = vmul.f32 %v1109, %v1030
    %v1113 = vmul.f32 %v1108, %v1111
    %v1114 = vadd.f32 %v1112, %v1113
    %v1115 = vtanh.pop %v1114
    %v1116 = vmul.f32 %v1110, %v1115
    %s1117 = scalar_lea.vmem [#allocation16], 32
    %1118 = vst [vmem:[%s1117] sm:$0xff] %v1116
    %s1119 = smul.u32 5, 4
    %s1120 = smul.addr %s1119, 8
    %s1121 = scalar_lea.vmem [#allocation4], %s1120
    %v1122 = vld [vmem:[%s1121] sm:$0xff]
    %v1123 = vld [vmem:[%s1121 + $0x8] sm:$0xff]
    %v1124 = vld [vmem:[%s1121 + $0x10] sm:$0xff]
    %v1125 = vld [vmem:[%s1121 + $0x18] sm:$0xff]
    %v1126 = vpack.c.bf16 %v1116, %v1116
    %1127 = vmatpush.bf16.msra.mxu0 %v672
    %1128 = vmatpush.bf16.msra.mxu0 %v668
    %1129 = vmatpush.bf16.msra.mxu0 %v664
    %1130 = vmatpush.bf16.msra.mxu0 %v660
    %1131 = vmatpush.bf16.msra.mxu0 %v656
    %1132 = vmatpush.bf16.msra.mxu0 %v652
    %1133 = vmatpush.bf16.msra.mxu0 %v648
    %1134 = vmatpush.bf16.msra.mxu0 %v644
    %1135 = vmatmul.bf16.gmra.mxu0 %v1126
    %v1136 = vpop.f32.mrf.mxu0
    %v1137 = vadd.f32 0.0, %v1136
    %v1138 = vpop.f32.mrf.mxu0
    %1139 = vdwg.mxu0
    %1140 = vmatpush.bf16.msra.mxu0 %v673
    %1141 = vmatpush.bf16.msra.mxu0 %v669
    %1142 = vmatpush.bf16.msra.mxu0 %v665
    %1143 = vmatpush.bf16.msra.mxu0 %v661
    %1144 = vmatpush.bf16.msra.mxu0 %v657
    %1145 = vmatpush.bf16.msra.mxu0 %v653
    %1146 = vmatpush.bf16.msra.mxu0 %v649
    %1147 = vmatpush.bf16.msra.mxu0 %v645
    %1148 = vmatmul.bf16.gmra.mxu0 %v1126
    %v1149 = vpop.f32.mrf.mxu0
    %v1150 = vadd.f32 0.0, %v1149
    %v1151 = vpop.f32.mrf.mxu0
    %1152 = vdwg.mxu0
    %1153 = vmatpush.bf16.msra.mxu0 %v674
    %1154 = vmatpush.bf16.msra.mxu0 %v670
    %1155 = vmatpush.bf16.msra.mxu0 %v666
    %1156 = vmatpush.bf16.msra.mxu0 %v662
    %1157 = vmatpush.bf16.msra.mxu0 %v658
    %1158 = vmatpush.bf16.msra.mxu0 %v654
    %1159 = vmatpush.bf16.msra.mxu0 %v650
    %1160 = vmatpush.bf16.msra.mxu0 %v646
    %1161 = vmatmul.bf16.gmra.mxu0 %v1126
    %v1162 = vpop.f32.mrf.mxu0
    %v1163 = vadd.f32 0.0, %v1162
    %v1164 = vpop.f32.mrf.mxu0
    %1165 = vdwg.mxu0
    %1166 = vmatpush.bf16.msra.mxu0 %v675
    %1167 = vmatpush.bf16.msra.mxu0 %v671
    %1168 = vmatpush.bf16.msra.mxu0 %v667
    %1169 = vmatpush.bf16.msra.mxu0 %v663
    %1170 = vmatpush.bf16.msra.mxu0 %v659
    %1171 = vmatpush.bf16.msra.mxu0 %v655
    %1172 = vmatpush.bf16.msra.mxu0 %v651
    %1173 = vmatpush.bf16.msra.mxu0 %v647
    %1174 = vmatmul.bf16.gmra.mxu0 %v1126
    %v1175 = vpop.f32.mrf.mxu0
    %v1176 = vadd.f32 0.0, %v1175
    %v1177 = vpop.f32.mrf.mxu0
    %1178 = vdwg.mxu0
    %v1179 = vadd.f32 %v1122, %v1137
    %v1180 = vadd.f32 %v1123, %v1150
    %v1181 = vadd.f32 %v1124, %v1163
    %v1182 = vadd.f32 %v1125, %v1176
    %v1183 = vmul.f32 %v1179, 0.2
    %v1184 = vmul.f32 %v1180, 0.2
    %v1185 = vmul.f32 %v1181, 0.2
    %v1186 = vadd.f32 %v1183, 0.5
    %v1187 = vadd.f32 %v1184, 0.5
    %v1188 = vadd.f32 %v1185, 0.5
    %v1189 = vmax.f32 %v1186, 0.0
    %v1190 = vmax.f32 %v1187, 0.0
    %v1191 = vmax.f32 %v1188, 0.0
    %v1192 = vmin.f32 %v1189, 1.0
    %v1193 = vmin.f32 %v1190, 1.0
    %v1194 = vmin.f32 %v1191, 1.0
    %v1195 = vtanh.pop %v1182
    %v1196 = vmul.f32 %v1193, %v1114
    %v1197 = vmul.f32 %v1192, %v1195
    %v1198 = vadd.f32 %v1196, %v1197
    %v1199 = vtanh.pop %v1198
    %v1200 = vmul.f32 %v1194, %v1199
    %s1201 = scalar_lea.vmem [#allocation16], 40
    %1202 = vst [vmem:[%s1201] sm:$0xff] %v1200
    %s1203 = smul.u32 6, 4
    %s1204 = smul.addr %s1203, 8
    %s1205 = scalar_lea.vmem [#allocation4], %s1204
    %v1206 = vld [vmem:[%s1205] sm:$0xff]
    %v1207 = vld [vmem:[%s1205 + $0x8] sm:$0xff]
    %v1208 = vld [vmem:[%s1205 + $0x10] sm:$0xff]
    %v1209 = vld [vmem:[%s1205 + $0x18] sm:$0xff]
    %v1210 = vpack.c.bf16 %v1200, %v1200
    %1211 = vmatpush.bf16.msra.mxu0 %v672
    %1212 = vmatpush.bf16.msra.mxu0 %v668
    %1213 = vmatpush.bf16.msra.mxu0 %v664
    %1214 = vmatpush.bf16.msra.mxu0 %v660
    %1215 = vmatpush.bf16.msra.mxu0 %v656
    %1216 = vmatpush.bf16.msra.mxu0 %v652
    %1217 = vmatpush.bf16.msra.mxu0 %v648
    %1218 = vmatpush.bf16.msra.mxu0 %v644
    %1219 = vmatmul.bf16.gmra.mxu0 %v1210
    %v1220 = vpop.f32.mrf.mxu0
    %v1221 = vadd.f32 0.0, %v1220
    %v1222 = vpop.f32.mrf.mxu0
    %1223 = vdwg.mxu0
    %1224 = vmatpush.bf16.msra.mxu0 %v673
    %1225 = vmatpush.bf16.msra.mxu0 %v669
    %1226 = vmatpush.bf16.msra.mxu0 %v665
    %1227 = vmatpush.bf16.msra.mxu0 %v661
    %1228 = vmatpush.bf16.msra.mxu0 %v657
    %1229 = vmatpush.bf16.msra.mxu0 %v653
    %1230 = vmatpush.bf16.msra.mxu0 %v649
    %1231 = vmatpush.bf16.msra.mxu0 %v645
    %1232 = vmatmul.bf16.gmra.mxu0 %v1210
    %v1233 = vpop.f32.mrf.mxu0
    %v1234 = vadd.f32 0.0, %v1233
    %v1235 = vpop.f32.mrf.mxu0
    %1236 = vdwg.mxu0
    %1237 = vmatpush.bf16.msra.mxu0 %v674
    %1238 = vmatpush.bf16.msra.mxu0 %v670
    %1239 = vmatpush.bf16.msra.mxu0 %v666
    %1240 = vmatpush.bf16.msra.mxu0 %v662
    %1241 = vmatpush.bf16.msra.mxu0 %v658
    %1242 = vmatpush.bf16.msra.mxu0 %v654
    %1243 = vmatpush.bf16.msra.mxu0 %v650
    %1244 = vmatpush.bf16.msra.mxu0 %v646
    %1245 = vmatmul.bf16.gmra.mxu0 %v1210
    %v1246 = vpop.f32.mrf.mxu0
    %v1247 = vadd.f32 0.0, %v1246
    %v1248 = vpop.f32.mrf.mxu0
    %1249 = vdwg.mxu0
    %1250 = vmatpush.bf16.msra.mxu0 %v675
    %1251 = vmatpush.bf16.msra.mxu0 %v671
    %1252 = vmatpush.bf16.msra.mxu0 %v667
    %1253 = vmatpush.bf16.msra.mxu0 %v663
    %1254 = vmatpush.bf16.msra.mxu0 %v659
    %1255 = vmatpush.bf16.msra.mxu0 %v655
    %1256 = vmatpush.bf16.msra.mxu0 %v651
    %1257 = vmatpush.bf16.msra.mxu0 %v647
    %1258 = vmatmul.bf16.gmra.mxu0 %v1210
    %v1259 = vpop.f32.mrf.mxu0
    %v1260 = vadd.f32 0.0, %v1259
    %v1261 = vpop.f32.mrf.mxu0
    %1262 = vdwg.mxu0
    %v1263 = vadd.f32 %v1206, %v1221
    %v1264 = vadd.f32 %v1207, %v1234
    %v1265 = vadd.f32 %v1208, %v1247
    %v1266 = vadd.f32 %v1209, %v1260
    %v1267 = vmul.f32 %v1263, 0.2
    %v1268 = vmul.f32 %v1264, 0.2
    %v1269 = vmul.f32 %v1265, 0.2
    %v1270 = vadd.f32 %v1267, 0.5
    %v1271 = vadd.f32 %v1268, 0.5
    %v1272 = vadd.f32 %v1269, 0.5
    %v1273 = vmax.f32 %v1270, 0.0
    %v1274 = vmax.f32 %v1271, 0.0
    %v1275 = vmax.f32 %v1272, 0.0
    %v1276 = vmin.f32 %v1273, 1.0
    %v1277 = vmin.f32 %v1274, 1.0
    %v1278 = vmin.f32 %v1275, 1.0
    %v1279 = vtanh.pop %v1266
    %v1280 = vmul.f32 %v1277, %v1198
    %v1281 = vmul.f32 %v1276, %v1279
    %v1282 = vadd.f32 %v1280, %v1281
    %v1283 = vtanh.pop %v1282
    %v1284 = vmul.f32 %v1278, %v1283
    %s1285 = scalar_lea.vmem [#allocation16], 48
    %1286 = vst [vmem:[%s1285] sm:$0xff] %v1284
    %s1287 = smul.u32 7, 4
    %s1288 = smul.addr %s1287, 8
    %s1289 = scalar_lea.vmem [#allocation4], %s1288
    %v1290 = vld [vmem:[%s1289] sm:$0xff]
    %v1291 = vld [vmem:[%s1289 + $0x8] sm:$0xff]
    %v1292 = vld [vmem:[%s1289 + $0x10] sm:$0xff]
    %v1293 = vld [vmem:[%s1289 + $0x18] sm:$0xff]
    %v1294 = vpack.c.bf16 %v1284, %v1284
    %1295 = vmatpush.bf16.msra.mxu0 %v672
    %1296 = vmatpush.bf16.msra.mxu0 %v668
    %1297 = vmatpush.bf16.msra.mxu0 %v664
    %1298 = vmatpush.bf16.msra.mxu0 %v660
    %1299 = vmatpush.bf16.msra.mxu0 %v656
    %1300 = vmatpush.bf16.msra.mxu0 %v652
    %1301 = vmatpush.bf16.msra.mxu0 %v648
    %1302 = vmatpush.bf16.msra.mxu0 %v644
    %1303 = vmatmul.bf16.gmra.mxu0 %v1294
    %v1304 = vpop.f32.mrf.mxu0
    %v1305 = vadd.f32 0.0, %v1304
    %v1306 = vpop.f32.mrf.mxu0
    %1307 = vdwg.mxu0
    %1308 = vmatpush.bf16.msra.mxu0 %v673
    %1309 = vmatpush.bf16.msra.mxu0 %v669
    %1310 = vmatpush.bf16.msra.mxu0 %v665
    %1311 = vmatpush.bf16.msra.mxu0 %v661
    %1312 = vmatpush.bf16.msra.mxu0 %v657
    %1313 = vmatpush.bf16.msra.mxu0 %v653
    %1314 = vmatpush.bf16.msra.mxu0 %v649
    %1315 = vmatpush.bf16.msra.mxu0 %v645
    %1316 = vmatmul.bf16.gmra.mxu0 %v1294
    %v1317 = vpop.f32.mrf.mxu0
    %v1318 = vadd.f32 0.0, %v1317
    %v1319 = vpop.f32.mrf.mxu0
    %1320 = vdwg.mxu0
    %1321 = vmatpush.bf16.msra.mxu0 %v674
    %1322 = vmatpush.bf16.msra.mxu0 %v670
    %1323 = vmatpush.bf16.msra.mxu0 %v666
    %1324 = vmatpush.bf16.msra.mxu0 %v662
    %1325 = vmatpush.bf16.msra.mxu0 %v658
    %1326 = vmatpush.bf16.msra.mxu0 %v654
    %1327 = vmatpush.bf16.msra.mxu0 %v650
    %1328 = vmatpush.bf16.msra.mxu0 %v646
    %1329 = vmatmul.bf16.gmra.mxu0 %v1294
    %v1330 = vpop.f32.mrf.mxu0
    %v1331 = vadd.f32 0.0, %v1330
    %v1332 = vpop.f32.mrf.mxu0
    %1333 = vdwg.mxu0
    %1334 = vmatpush.bf16.msra.mxu0 %v675
    %1335 = vmatpush.bf16.msra.mxu0 %v671
    %1336 = vmatpush.bf16.msra.mxu0 %v667
    %1337 = vmatpush.bf16.msra.mxu0 %v663
    %1338 = vmatpush.bf16.msra.mxu0 %v659
    %1339 = vmatpush.bf16.msra.mxu0 %v655
    %1340 = vmatpush.bf16.msra.mxu0 %v651
    %1341 = vmatpush.bf16.msra.mxu0 %v647
    %1342 = vmatmul.bf16.gmra.mxu0 %v1294
    %v1343 = vpop.f32.mrf.mxu0
    %v1344 = vadd.f32 0.0, %v1343
    %v1345 = vpop.f32.mrf.mxu0
    %1346 = vdwg.mxu0
    %v1347 = vadd.f32 %v1290, %v1305
    %v1348 = vadd.f32 %v1291, %v1318
    %v1349 = vadd.f32 %v1292, %v1331
    %v1350 = vadd.f32 %v1293, %v1344
    %v1351 = vmul.f32 %v1347, 0.2
    %v1352 = vmul.f32 %v1348, 0.2
    %v1353 = vmul.f32 %v1349, 0.2
    %v1354 = vadd.f32 %v1351, 0.5
    %v1355 = vadd.f32 %v1352, 0.5
    %v1356 = vadd.f32 %v1353, 0.5
    %v1357 = vmax.f32 %v1354, 0.0
    %v1358 = vmax.f32 %v1355, 0.0
    %v1359 = vmax.f32 %v1356, 0.0
    %v1360 = vmin.f32 %v1357, 1.0
    %v1361 = vmin.f32 %v1358, 1.0
    %v1362 = vmin.f32 %v1359, 1.0
    %v1363 = vtanh.pop %v1350
    %v1364 = vmul.f32 %v1361, %v1282
    %v1365 = vmul.f32 %v1360, %v1363
    %v1366 = vadd.f32 %v1364, %v1365
    %v1367 = vtanh.pop %v1366
    %v1368 = vmul.f32 %v1362, %v1367
    %s1369 = scalar_lea.vmem [#allocation16], 56
    %1370 = vst [vmem:[%s1369] sm:$0xff] %v1368
    %1371 = vst [vmem:[#allocation2] sm:$0xff] %v1368
    %1372 = vst [vmem:[#allocation3] sm:$0xff] %v1366
    // Predicated region
    $region54: #{tpu_custom_call.1} parent=1 // pred_check
      %p1373 = pneg %p116
    $region55: #{tpu_custom_call.1} parent=1 // pred_check_branch
      %1375 = sbr.rel (%p1373) target = $region57
    $region56: #{tpu_custom_call.1} parent=1 // pred_region
      %1376 = vst [vmem:[#allocation17] sm:$0xff] %v1368
      %1377 = vst [vmem:[#allocation19] sm:$0xff] %v1366
    $region57: #{tpu_custom_call.1} parent=1 // pred_fallthru
      _
    // Predicated region
    $region58: #{tpu_custom_call.1} parent=1 // pred_check
      _
    $region59: #{tpu_custom_call.1} parent=1 // pred_check_branch
      %1379 = sbr.rel (0) target = $region61
    $region60: #{tpu_custom_call.1} parent=1 // pred_region
      %1381 = vsyncadd [#allocation7], 0
      %s1382 = sshll.u32 [#allocation16], 4
      %s1383 = int_to_ptr.vmem [resolvable:$true] %s1382
      %s1384 = sshll.u32 %s6, 4
      %s1385 = int_to_ptr.hbm [resolvable:$true] %s1384
      %1390 = dma.vmem_to_hbm [thread:$0]  %s1383, 1024, %s1385, [#allocation7], 128, 128, 8
    $region61: #{tpu_custom_call.1} parent=1 // pred_fallthru
      _
    // Predicated region
    $region62: #{tpu_custom_call.1} parent=1 // pred_check
      _
    $region63: #{tpu_custom_call.1} parent=1 // pred_check_branch
      %1392 = sbr.rel (0) target = $region65
    $region64: #{tpu_custom_call.1} parent=1 // pred_region
      %1394 = vsyncadd [#allocation18], 0
      %s1396 = sshll.u32 [#allocation17], 4
      %s1397 = int_to_ptr.vmem [resolvable:$true] %s1396
      %s1398 = sshll.u32 %s7, 4
      %s1399 = int_to_ptr.hbm [resolvable:$true] %s1398
      %1401 = dma.vmem_to_hbm [thread:$0]  %s1397, 128, %s1399, [#allocation18]
    $region65: #{tpu_custom_call.1} parent=1 // pred_fallthru
      _
    // Predicated region
    $region66: #{tpu_custom_call.1} parent=1 // pred_check
      _
    $region67: #{tpu_custom_call.1} parent=1 // pred_check_branch
      %1403 = sbr.rel (0) target = $region69
    $region68: #{tpu_custom_call.1} parent=1 // pred_region
      %1405 = vsyncadd [#allocation18], 0
      %s1407 = sshll.u32 [#allocation19], 4
      %s1408 = int_to_ptr.vmem [resolvable:$true] %s1407
      %s1409 = sshll.u32 %s8, 4
      %s1410 = int_to_ptr.hbm [resolvable:$true] %s1409
      %1412 = dma.vmem_to_hbm [thread:$0]  %s1408, 128, %s1410, [#allocation18]
    $region69: #{tpu_custom_call.1} parent=1 // pred_fallthru
      _
    // Predicated region
    $region70: #{tpu_custom_call.1} parent=1 // pred_check
      _
    $region71: #{tpu_custom_call.1} parent=1 // pred_check_branch
      %1414 = sbr.rel (0) target = $region73
    $region72: #{tpu_custom_call.1} parent=1 // pred_region
      %1416 = dma.done [#allocation7], 1024
    $region73: #{tpu_custom_call.1} parent=1 // pred_fallthru
      _
    // Predicated region
    $region74: #{tpu_custom_call.1} parent=1 // pred_check
      _
    $region75: #{tpu_custom_call.1} parent=1 // pred_check_branch
      %1418 = sbr.rel (0) target = $region77
    $region76: #{tpu_custom_call.1} parent=1 // pred_region
      %1420 = dma.done [#allocation18], 128
    $region77: #{tpu_custom_call.1} parent=1 // pred_fallthru
      _
    // Predicated region
    $region78: #{tpu_custom_call.1} parent=1 // pred_check
      _
    $region79: #{tpu_custom_call.1} parent=1 // pred_check_branch
      %1422 = sbr.rel (0) target = $region81
    $region80: #{tpu_custom_call.1} parent=1 // pred_region
      %1424 = dma.done [#allocation18], 128
    $region81: #{tpu_custom_call.1} parent=1 // pred_fallthru
      _
    %1425 = vsyncpa [#allocation6], 1
    %1426 = vsyncpa [#allocation9], 1
    %1427 = vsyncpa [#allocation12], 1
    %1428 = vsyncpa [#allocation15], 1
    %1429 = vsyncpa [#allocation7], 1
    %1430 = vsyncpa [#allocation18], 1

</llo_original>
